<compile_context>
chip_gen: v7x
topology: tpu7x:2x2x1
jax: 0.10.0
libtpu: 0.0.40
codegen_flags: <defaults>
</compile_context>

<pallas_src>
import math

import jax
import jax.numpy as jnp
from jax.experimental import pallas as pl
from jax.experimental.pallas import tpu as pltpu


# ----------------------------- kernels -------------------------------------


def _tap_matmul(x_f32, w_ref, shifts):
    """sum_t W[t] @ shift(x, s_t): 3x3 conv on a flattened padded slab.

    x_f32: (Cp, Ppad) f32 slab (zero at all pad positions).
    w_ref: (9, Cp, Cp) bf16 tap matrices, t = dy*3 + dx.
    The lane roll wraps only into positions that are discarded later.
    """
    p = x_f32.shape[-1]
    acc = None
    for t, s in enumerate(shifts):
        xt = x_f32 if s == 0 else pltpu.roll(x_f32, shift=(-s) % p, axis=1)
        d = jnp.dot(w_ref[t], xt.astype(jnp.bfloat16),
                    preferred_element_type=jnp.float32)
        acc = d if acc is None else acc + d
    return acc


def make_conv_stats_kernel(shifts):
    """conv1: conv(x) + masked per-image partial BN statistics."""
    def kernel(x_ref, w_ref, mask_ref, z_ref, s_ref, q_ref):
        x = x_ref[0]                                   # (Cp, Ppad) f32
        mask = mask_ref[...]                           # (1, Ppad) f32
        acc = _tap_matmul(x, w_ref, shifts)            # (Cp, Ppad) f32
        masked = acc * mask
        z_ref[0] = acc.astype(jnp.bfloat16)
        s_ref[0] = jnp.sum(masked, axis=1, keepdims=True)
        q_ref[0] = jnp.sum(masked * masked, axis=1, keepdims=True)
    return kernel


def make_bn_relu_conv_stats_kernel(shifts):
    """bn1(scale/shift) + relu + re-zero pad border + conv2 + partial stats."""
    def kernel(z_ref, w_ref, scale_ref, shift_ref, mask_ref,
               z2_ref, s_ref, q_ref):
        mask = mask_ref[...]                           # (1, Ppad)
        z = z_ref[0].astype(jnp.float32)               # (Cp, Ppad)
        h = jnp.maximum(z * scale_ref[...] + shift_ref[...], 0.0) * mask
        acc = _tap_matmul(h, w_ref, shifts)
        masked = acc * mask
        z2_ref[0] = acc.astype(jnp.bfloat16)
        s_ref[0] = jnp.sum(masked, axis=1, keepdims=True)
        q_ref[0] = jnp.sum(masked * masked, axis=1, keepdims=True)
    return kernel


def bn_residual_relu_kernel(z_ref, x_ref, scale_ref, shift_ref, o_ref):
    """bn2(scale/shift) + residual add + relu (pure lane-dense elementwise)."""
    z = z_ref[0].astype(jnp.float32)
    y = z * scale_ref[...] + shift_ref[...] + x_ref[0]
    o_ref[0] = jnp.maximum(y, 0.0)


# ----------------------------- wrapper --------------------------------------


def res_block_forward(x, w1, gamma1, beta1, w2, gamma2, beta2, eps=1e-5):
    """ResBlock forward.  x: (N, C, H, W) f32; w*: (C, C, 3, 3)."""
    N, C, H, W = x.shape
    Cp = ((C + 15) // 16) * 16          # channel pad -> bf16-friendly sublanes
    Hp, Wp = H + 2, W + 2
    P0 = Hp * Wp
    Pp = ((P0 + 127) // 128) * 128      # lane pad -> unmasked stores
    count = N * H * W                   # BN statistics population

    # --- glue (plain XLA): pad + flatten, masks, weight repack (all cheap) ---
    xpad = jnp.pad(x, ((0, 0), (0, Cp - C), (1, 1), (1, 1)))          # zero halo
    xflat = jnp.pad(xpad.reshape(N, Cp, P0), ((0, 0), (0, 0), (0, Pp - P0)))

    m = jnp.zeros((Hp, Wp), jnp.float32).at[1:H + 1, 1:W + 1].set(1.0)
    mask = jnp.pad(m.reshape(1, P0), ((0, 0), (0, Pp - P0)))          # valid pixels

    def prep_w(w):
        wt = jnp.transpose(w, (2, 3, 0, 1)).reshape(9, C, C)          # (dy,dx,o,i)
        return jnp.pad(wt, ((0, 0), (0, Cp - C), (0, Cp - C))).astype(jnp.bfloat16)

    w1m, w2m = prep_w(w1), prep_w(w2)
    # tap (dy, dx) reads flattened padded position p + (dy-1)*Wp + (dx-1)
    shifts = [(dy - 1) * Wp + (dx - 1) for dy in range(3) for dx in range(3)]

    img_spec = pl.BlockSpec((1, Cp, Pp), lambda n: (n, 0, 0))
    w_spec = pl.BlockSpec((9, Cp, Cp), lambda n: (0, 0, 0))
    mask_spec = pl.BlockSpec((1, Pp), lambda n: (0, 0))
    vec_spec = pl.BlockSpec((Cp, 1), lambda n: (0, 0))
    stat_spec = pl.BlockSpec((1, Cp, 1), lambda n: (n, 0, 0))

    cparams = pltpu.CompilerParams(
        dimension_semantics=("parallel",),          # shard batch across TCs (v7x)
        vmem_limit_bytes=32 * 1024 * 1024,          # explicit, safe on 64MiB v7x
    )

    conv_flops = 2 * N * 9 * Cp * Cp * Pp
    slab = N * Cp * Pp

    # ---- pass 1: conv1 + partial BN1 statistics --------------------------
    z1, s1, q1 = pl.pallas_call(
        make_conv_stats_kernel(shifts),
        grid=(N,),
        in_specs=[img_spec, w_spec, mask_spec],
        out_specs=(img_spec, stat_spec, stat_spec),
        out_shape=(
            jax.ShapeDtypeStruct((N, Cp, Pp), jnp.bfloat16),
            jax.ShapeDtypeStruct((N, Cp, 1), jnp.float32),
            jax.ShapeDtypeStruct((N, Cp, 1), jnp.float32),
        ),
        compiler_params=cparams,
        cost_estimate=pl.CostEstimate(
            flops=conv_flops, transcendentals=0,
            bytes_accessed=slab * 4 + slab * 2 + int(w1m.size) * 2),
    )(xflat, w1m, mask)

    def bn_affine(psum, psumsq, gamma, beta):
        # NOTE: E[x^2]-E[x]^2 form; accumulated in f32 from the f32 conv
        # accumulator.  Use the centered form if tighter tolerance is needed.
        mean = jnp.sum(psum[:, :, 0], axis=0) / count
        var = jnp.maximum(jnp.sum(psumsq[:, :, 0], axis=0) / count - mean * mean, 0.0)
        g = jnp.pad(gamma, (0, Cp - C), constant_values=1.0)
        b = jnp.pad(beta, (0, Cp - C))
        scale = g * jax.lax.rsqrt(var + eps)
        shift = b - mean * scale
        return scale.reshape(Cp, 1), shift.reshape(Cp, 1)

    scale1, shift1 = bn_affine(s1, q1, gamma1, beta1)

    # ---- pass 2: bn1 + relu + conv2 + partial BN2 statistics --------------
    z2, s2, q2 = pl.pallas_call(
        make_bn_relu_conv_stats_kernel(shifts),
        grid=(N,),
        in_specs=[img_spec, w_spec, vec_spec, vec_spec, mask_spec],
        out_specs=(img_spec, stat_spec, stat_spec),
        out_shape=(
            jax.ShapeDtypeStruct((N, Cp, Pp), jnp.bfloat16),
            jax.ShapeDtypeStruct((N, Cp, 1), jnp.float32),
            jax.ShapeDtypeStruct((N, Cp, 1), jnp.float32),
        ),
        compiler_params=cparams,
        cost_estimate=pl.CostEstimate(
            flops=conv_flops, transcendentals=0,
            bytes_accessed=slab * 2 * 2 + int(w2m.size) * 2),
    )(z1, w2m, scale1, shift1, mask)

    scale2, shift2 = bn_affine(s2, q2, gamma2, beta2)

    # ---- pass 3: bn2 + residual add + relu --------------------------------
    out_flat = pl.pallas_call(
        bn_residual_relu_kernel,
        grid=(N,),
        in_specs=[img_spec, img_spec, vec_spec, vec_spec],
        out_specs=pl.BlockSpec((1, Cp, Pp), lambda n: (n, 0, 0)),
        out_shape=jax.ShapeDtypeStruct((N, Cp, Pp), jnp.float32),
        compiler_params=cparams,
        cost_estimate=pl.CostEstimate(
            flops=3 * N * Cp * Pp, transcendentals=0,
            bytes_accessed=slab * 2 + 2 * slab * 4),
    )(z2, xflat, scale2, shift2)

    # back to dense NCHW (drop channel / spatial / lane padding)
    out = out_flat[:, :C, :P0].reshape(N, C, Hp, Wp)[:, :, 1:H + 1, 1:W + 1]
    return out


# ----------------------------- reference & test -----------------------------


def res_block_reference(x, w1, g1, b1, w2, g2, b2, eps=1e-5):
    def conv(v, w):
        return jax.lax.conv_general_dilated(
            v, w, window_strides=(1, 1), padding=((1, 1), (1, 1)),
            dimension_numbers=("NCHW", "OIHW", "NCHW"))

    def bn(v, g, b):
        mean = jnp.mean(v, axis=(0, 2, 3), keepdims=True)
        var = jnp.mean((v - mean) ** 2, axis=(0, 2, 3), keepdims=True)
        return ((v - mean) * jax.lax.rsqrt(var + eps) * g.reshape(1, -1, 1, 1)
                + b.reshape(1, -1, 1, 1))

    h = jax.nn.relu(bn(conv(x, w1), g1, b1))
    o = bn(conv(h, w2), g2, b2)
    return jax.nn.relu(o + x)


if __name__ == "__main__":
    N, C, H, W = 2, 4, 16, 16                      # ResBlock(in_channels=4)

    key = jax.random.PRNGKey(0)
    kx, k1, k2, kg1, kb1, kg2, kb2 = jax.random.split(key, 7)

    x = jax.random.normal(kx, (N, C, H, W), jnp.float32)
    bound = 1.0 / math.sqrt(C * 3 * 3)
    w1 = jax.random.uniform(k1, (C, C, 3, 3), jnp.float32, -bound, bound)
    w2 = jax.random.uniform(k2, (C, C, 3, 3), jnp.float32, -bound, bound)
    g1 = 1.0 + 0.1 * jax.random.normal(kg1, (C,), jnp.float32)
    b1 = 0.1 * jax.random.normal(kb1, (C,), jnp.float32)
    g2 = 1.0 + 0.1 * jax.random.normal(kg2, (C,), jnp.float32)
    b2 = 0.1 * jax.random.normal(kb2, (C,), jnp.float32)

    y = jax.jit(res_block_forward)(x, w1, g1, b1, w2, g2, b2)
    y = jax.block_until_ready(y)
    assert y.shape == (N, C, H, W)
    assert bool(jnp.all(y >= 0.0))                 # final ReLU sanity

    y_ref = res_block_reference(x, w1, g1, b1, w2, g2, b2)
    err = float(jnp.max(jnp.abs(y - y_ref)))
    assert err < 1e-1, f"max abs err vs reference: {err}"

    print("KERNEL_OK")
</pallas_src>

<mosaic_0001>
module attributes {stable_mosaic.version = 11 : i64} {
  func.func @kernel(%arg0: i32, %arg1: memref<1x16x384xbf16, #tpu.memory_space<vmem>>, %arg2: memref<9x16x16xbf16, #tpu.memory_space<vmem>>, %arg3: memref<16x1xf32, #tpu.memory_space<vmem>>, %arg4: memref<16x1xf32, #tpu.memory_space<vmem>>, %arg5: memref<1x384xf32, #tpu.memory_space<vmem>>, %arg6: memref<1x16x384xbf16, #tpu.memory_space<vmem>>, %arg7: memref<1x16x1xf32, #tpu.memory_space<vmem>>, %arg8: memref<1x16x1xf32, #tpu.memory_space<vmem>>) attributes {dimension_semantics = [#tpu.dimension_semantics<parallel>], iteration_bounds = array<i64: 2>, scalar_prefetch = 0 : i64, scratch_operands = 0 : i64, tpu.core_type = #tpu.core_type<tc>, window_params = [{transform_indices = @transform_0, window_bounds = array<i64: 1, 16, 384>}, {pipeline_mode = #tpu.pipeline_mode<synchronous>, transform_indices = @transform_1, window_bounds = array<i64: 9, 16, 16>}, {pipeline_mode = #tpu.pipeline_mode<synchronous>, transform_indices = @transform_2, window_bounds = array<i64: 16, 1>}, {pipeline_mode = #tpu.pipeline_mode<synchronous>, transform_indices = @transform_3, window_bounds = array<i64: 16, 1>}, {pipeline_mode = #tpu.pipeline_mode<synchronous>, transform_indices = @transform_4, window_bounds = array<i64: 1, 384>}, {transform_indices = @transform_5, window_bounds = array<i64: 1, 16, 384>}, {transform_indices = @transform_6, window_bounds = array<i64: 1, 16, 1>}, {transform_indices = @transform_7, window_bounds = array<i64: 1, 16, 1>}]} {
    %c0 = arith.constant 0 : index
    %c0_0 = arith.constant 0 : index
    %0 = vector.load %arg5[%c0, %c0_0] : memref<1x384xf32, #tpu.memory_space<vmem>>, vector<1x384xf32>
    %c0_1 = arith.constant 0 : index
    %c0_2 = arith.constant 0 : index
    %c0_3 = arith.constant 0 : index
    %1 = vector.load %arg1[%c0_1, %c0_2, %c0_3] : memref<1x16x384xbf16, #tpu.memory_space<vmem>>, vector<1x16x384xbf16>
    %2 = vector.shape_cast %1 : vector<1x16x384xbf16> to vector<16x384xbf16>
    %3 = arith.extf %2 : vector<16x384xbf16> to vector<16x384xf32>
    %c0_4 = arith.constant 0 : index
    %c0_5 = arith.constant 0 : index
    %4 = vector.load %arg3[%c0_4, %c0_5] : memref<16x1xf32, #tpu.memory_space<vmem>>, vector<16x1xf32>
    %5 = vector.broadcast %4 : vector<16x1xf32> to vector<16x384xf32>
    %6 = arith.mulf %3, %5 : vector<16x384xf32>
    %c0_6 = arith.constant 0 : index
    %c0_7 = arith.constant 0 : index
    %7 = vector.load %arg4[%c0_6, %c0_7] : memref<16x1xf32, #tpu.memory_space<vmem>>, vector<16x1xf32>
    %8 = vector.broadcast %7 : vector<16x1xf32> to vector<16x384xf32>
    %9 = arith.addf %6, %8 : vector<16x384xf32>
    %cst = arith.constant 0.000000e+00 : f32
    %10 = vector.broadcast %cst : f32 to vector<16x384xf32>
    %11 = arith.maximumf %9, %10 : vector<16x384xf32>
    %12 = vector.broadcast %0 : vector<1x384xf32> to vector<16x384xf32>
    %13 = arith.mulf %11, %12 : vector<16x384xf32>
    %c19_i32 = arith.constant 19 : i32
    %14 = tpu.dynamic_rotate %13 by %c19_i32 dim 1 : vector<16x384xf32>, i32 -> vector<16x384xf32>
    %c0_8 = arith.constant 0 : index
    %c0_9 = arith.constant 0 : index
    %c0_10 = arith.constant 0 : index
    %15 = vector.load %arg2[%c0_8, %c0_9, %c0_10] : memref<9x16x16xbf16, #tpu.memory_space<vmem>>, vector<1x16x16xbf16>
    %16 = vector.shape_cast %15 : vector<1x16x16xbf16> to vector<16x16xbf16>
    %17 = arith.truncf %14 : vector<16x384xf32> to vector<16x384xbf16>
    %cst_11 = arith.constant dense<0.000000e+00> : vector<16x384xf32>
    %18 = tpu.matmul %16, %17, %cst_11 {dimension_numbers = #tpu.dot_dimension_numbers<[1], [0], [0], [1], [0, 0, 1, 1], [], []>} : vector<16x16xbf16>, vector<16x384xbf16>, vector<16x384xf32> -> vector<16x384xf32>
    %c18_i32 = arith.constant 18 : i32
    %19 = tpu.dynamic_rotate %13 by %c18_i32 dim 1 : vector<16x384xf32>, i32 -> vector<16x384xf32>
    %c1 = arith.constant 1 : index
    %c0_12 = arith.constant 0 : index
    %c0_13 = arith.constant 0 : index
    %20 = vector.load %arg2[%c1, %c0_12, %c0_13] : memref<9x16x16xbf16, #tpu.memory_space<vmem>>, vector<1x16x16xbf16>
    %21 = vector.shape_cast %20 : vector<1x16x16xbf16> to vector<16x16xbf16>
    %22 = arith.truncf %19 : vector<16x384xf32> to vector<16x384xbf16>
    %cst_14 = arith.constant dense<0.000000e+00> : vector<16x384xf32>
    %23 = tpu.matmul %21, %22, %cst_14 {dimension_numbers = #tpu.dot_dimension_numbers<[1], [0], [0], [1], [0, 0, 1, 1], [], []>} : vector<16x16xbf16>, vector<16x384xbf16>, vector<16x384xf32> -> vector<16x384xf32>
    %24 = arith.addf %18, %23 : vector<16x384xf32>
    %c17_i32 = arith.constant 17 : i32
    %25 = tpu.dynamic_rotate %13 by %c17_i32 dim 1 : vector<16x384xf32>, i32 -> vector<16x384xf32>
    %c2 = arith.constant 2 : index
    %c0_15 = arith.constant 0 : index
    %c0_16 = arith.constant 0 : index
    %26 = vector.load %arg2[%c2, %c0_15, %c0_16] : memref<9x16x16xbf16, #tpu.memory_space<vmem>>, vector<1x16x16xbf16>
    %27 = vector.shape_cast %26 : vector<1x16x16xbf16> to vector<16x16xbf16>
    %28 = arith.truncf %25 : vector<16x384xf32> to vector<16x384xbf16>
    %cst_17 = arith.constant dense<0.000000e+00> : vector<16x384xf32>
    %29 = tpu.matmul %27, %28, %cst_17 {dimension_numbers = #tpu.dot_dimension_numbers<[1], [0], [0], [1], [0, 0, 1, 1], [], []>} : vector<16x16xbf16>, vector<16x384xbf16>, vector<16x384xf32> -> vector<16x384xf32>
    %30 = arith.addf %24, %29 : vector<16x384xf32>
    %c1_i32 = arith.constant 1 : i32
    %31 = tpu.dynamic_rotate %13 by %c1_i32 dim 1 : vector<16x384xf32>, i32 -> vector<16x384xf32>
    %c3 = arith.constant 3 : index
    %c0_18 = arith.constant 0 : index
    %c0_19 = arith.constant 0 : index
    %32 = vector.load %arg2[%c3, %c0_18, %c0_19] : memref<9x16x16xbf16, #tpu.memory_space<vmem>>, vector<1x16x16xbf16>
    %33 = vector.shape_cast %32 : vector<1x16x16xbf16> to vector<16x16xbf16>
    %34 = arith.truncf %31 : vector<16x384xf32> to vector<16x384xbf16>
    %cst_20 = arith.constant dense<0.000000e+00> : vector<16x384xf32>
    %35 = tpu.matmul %33, %34, %cst_20 {dimension_numbers = #tpu.dot_dimension_numbers<[1], [0], [0], [1], [0, 0, 1, 1], [], []>} : vector<16x16xbf16>, vector<16x384xbf16>, vector<16x384xf32> -> vector<16x384xf32>
    %36 = arith.addf %30, %35 : vector<16x384xf32>
    %c4 = arith.constant 4 : index
    %c0_21 = arith.constant 0 : index
    %c0_22 = arith.constant 0 : index
    %37 = vector.load %arg2[%c4, %c0_21, %c0_22] : memref<9x16x16xbf16, #tpu.memory_space<vmem>>, vector<1x16x16xbf16>
    %38 = vector.shape_cast %37 : vector<1x16x16xbf16> to vector<16x16xbf16>
    %39 = arith.truncf %13 : vector<16x384xf32> to vector<16x384xbf16>
    %cst_23 = arith.constant dense<0.000000e+00> : vector<16x384xf32>
    %40 = tpu.matmul %38, %39, %cst_23 {dimension_numbers = #tpu.dot_dimension_numbers<[1], [0], [0], [1], [0, 0, 1, 1], [], []>} : vector<16x16xbf16>, vector<16x384xbf16>, vector<16x384xf32> -> vector<16x384xf32>
    %41 = arith.addf %36, %40 : vector<16x384xf32>
    %c383_i32 = arith.constant 383 : i32
    %42 = tpu.dynamic_rotate %13 by %c383_i32 dim 1 : vector<16x384xf32>, i32 -> vector<16x384xf32>
    %c5 = arith.constant 5 : index
    %c0_24 = arith.constant 0 : index
    %c0_25 = arith.constant 0 : index
    %43 = vector.load %arg2[%c5, %c0_24, %c0_25] : memref<9x16x16xbf16, #tpu.memory_space<vmem>>, vector<1x16x16xbf16>
    %44 = vector.shape_cast %43 : vector<1x16x16xbf16> to vector<16x16xbf16>
    %45 = arith.truncf %42 : vector<16x384xf32> to vector<16x384xbf16>
    %cst_26 = arith.constant dense<0.000000e+00> : vector<16x384xf32>
    %46 = tpu.matmul %44, %45, %cst_26 {dimension_numbers = #tpu.dot_dimension_numbers<[1], [0], [0], [1], [0, 0, 1, 1], [], []>} : vector<16x16xbf16>, vector<16x384xbf16>, vector<16x384xf32> -> vector<16x384xf32>
    %47 = arith.addf %41, %46 : vector<16x384xf32>
    %c367_i32 = arith.constant 367 : i32
    %48 = tpu.dynamic_rotate %13 by %c367_i32 dim 1 : vector<16x384xf32>, i32 -> vector<16x384xf32>
    %c6 = arith.constant 6 : index
    %c0_27 = arith.constant 0 : index
    %c0_28 = arith.constant 0 : index
    %49 = vector.load %arg2[%c6, %c0_27, %c0_28] : memref<9x16x16xbf16, #tpu.memory_space<vmem>>, vector<1x16x16xbf16>
    %50 = vector.shape_cast %49 : vector<1x16x16xbf16> to vector<16x16xbf16>
    %51 = arith.truncf %48 : vector<16x384xf32> to vector<16x384xbf16>
    %cst_29 = arith.constant dense<0.000000e+00> : vector<16x384xf32>
    %52 = tpu.matmul %50, %51, %cst_29 {dimension_numbers = #tpu.dot_dimension_numbers<[1], [0], [0], [1], [0, 0, 1, 1], [], []>} : vector<16x16xbf16>, vector<16x384xbf16>, vector<16x384xf32> -> vector<16x384xf32>
    %53 = arith.addf %47, %52 : vector<16x384xf32>
    %c366_i32 = arith.constant 366 : i32
    %54 = tpu.dynamic_rotate %13 by %c366_i32 dim 1 : vector<16x384xf32>, i32 -> vector<16x384xf32>
    %c7 = arith.constant 7 : index
    %c0_30 = arith.constant 0 : index
    %c0_31 = arith.constant 0 : index
    %55 = vector.load %arg2[%c7, %c0_30, %c0_31] : memref<9x16x16xbf16, #tpu.memory_space<vmem>>, vector<1x16x16xbf16>
    %56 = vector.shape_cast %55 : vector<1x16x16xbf16> to vector<16x16xbf16>
    %57 = arith.truncf %54 : vector<16x384xf32> to vector<16x384xbf16>
    %cst_32 = arith.constant dense<0.000000e+00> : vector<16x384xf32>
    %58 = tpu.matmul %56, %57, %cst_32 {dimension_numbers = #tpu.dot_dimension_numbers<[1], [0], [0], [1], [0, 0, 1, 1], [], []>} : vector<16x16xbf16>, vector<16x384xbf16>, vector<16x384xf32> -> vector<16x384xf32>
    %59 = arith.addf %53, %58 : vector<16x384xf32>
    %c365_i32 = arith.constant 365 : i32
    %60 = tpu.dynamic_rotate %13 by %c365_i32 dim 1 : vector<16x384xf32>, i32 -> vector<16x384xf32>
    %c8 = arith.constant 8 : index
    %c0_33 = arith.constant 0 : index
    %c0_34 = arith.constant 0 : index
    %61 = vector.load %arg2[%c8, %c0_33, %c0_34] : memref<9x16x16xbf16, #tpu.memory_space<vmem>>, vector<1x16x16xbf16>
    %62 = vector.shape_cast %61 : vector<1x16x16xbf16> to vector<16x16xbf16>
    %63 = arith.truncf %60 : vector<16x384xf32> to vector<16x384xbf16>
    %cst_35 = arith.constant dense<0.000000e+00> : vector<16x384xf32>
    %64 = tpu.matmul %62, %63, %cst_35 {dimension_numbers = #tpu.dot_dimension_numbers<[1], [0], [0], [1], [0, 0, 1, 1], [], []>} : vector<16x16xbf16>, vector<16x384xbf16>, vector<16x384xf32> -> vector<16x384xf32>
    %65 = arith.addf %59, %64 : vector<16x384xf32>
    %66 = vector.broadcast %0 : vector<1x384xf32> to vector<16x384xf32>
    %67 = arith.mulf %65, %66 : vector<16x384xf32>
    %68 = arith.truncf %65 : vector<16x384xf32> to vector<16x384xbf16>
    %c0_36 = arith.constant 0 : index
    %c0_37 = arith.constant 0 : index
    %c0_38 = arith.constant 0 : index
    %69 = vector.load %arg6[%c0_36, %c0_37, %c0_38] : memref<1x16x384xbf16, #tpu.memory_space<vmem>>, vector<1x16x384xbf16>
    %70 = vector.shape_cast %69 : vector<1x16x384xbf16> to vector<16x384xbf16>
    %71 = vector.shape_cast %68 : vector<16x384xbf16> to vector<1x16x384xbf16>
    tpu.vector_store %arg6[%c0_36, %c0_37, %c0_38], %71 {strides = array<i32>} : memref<1x16x384xbf16, #tpu.memory_space<vmem>>, vector<1x16x384xbf16>,
    %cst_39 = arith.constant dense<0.000000e+00> : vector<16xf32>
    %72 = vector.multi_reduction <add>, %67, %cst_39 [1] : vector<16x384xf32> to vector<16xf32>
    %73 = vector.shape_cast %72 : vector<16xf32> to vector<16x1xf32>
    %c0_40 = arith.constant 0 : index
    %c0_41 = arith.constant 0 : index
    %c0_42 = arith.constant 0 : index
    %74 = vector.load %arg7[%c0_40, %c0_41, %c0_42] : memref<1x16x1xf32, #tpu.memory_space<vmem>>, vector<1x16x1xf32>
    %75 = vector.shape_cast %74 : vector<1x16x1xf32> to vector<16x1xf32>
    %76 = vector.shape_cast %73 : vector<16x1xf32> to vector<1x16x1xf32>
    tpu.vector_store %arg7[%c0_40, %c0_41, %c0_42], %76 {strides = array<i32>} : memref<1x16x1xf32, #tpu.memory_space<vmem>>, vector<1x16x1xf32>,
    %77 = arith.mulf %67, %67 : vector<16x384xf32>
    %cst_43 = arith.constant dense<0.000000e+00> : vector<16xf32>
    %78 = vector.multi_reduction <add>, %77, %cst_43 [1] : vector<16x384xf32> to vector<16xf32>
    %79 = vector.shape_cast %78 : vector<16xf32> to vector<16x1xf32>
    %c0_44 = arith.constant 0 : index
    %c0_45 = arith.constant 0 : index
    %c0_46 = arith.constant 0 : index
    %80 = vector.load %arg8[%c0_44, %c0_45, %c0_46] : memref<1x16x1xf32, #tpu.memory_space<vmem>>, vector<1x16x1xf32>
    %81 = vector.shape_cast %80 : vector<1x16x1xf32> to vector<16x1xf32>
    %82 = vector.shape_cast %79 : vector<16x1xf32> to vector<1x16x1xf32>
    tpu.vector_store %arg8[%c0_44, %c0_45, %c0_46], %82 {strides = array<i32>} : memref<1x16x1xf32, #tpu.memory_space<vmem>>, vector<1x16x1xf32>,
    return
  }
  func.func @transform_0(%arg0: i32) -> (i32, i32, i32) {
    %c0_i32 = arith.constant 0 : i32
    %c0_i32_0 = arith.constant 0 : i32
    %c0_i32_1 = arith.constant 0 : i32
    return %arg0, %c0_i32, %c0_i32_0 : i32, i32, i32
  }
  func.func @transform_1(%arg0: i32) -> (i32, i32, i32) {
    %c0_i32 = arith.constant 0 : i32
    %c0_i32_0 = arith.constant 0 : i32
    %c0_i32_1 = arith.constant 0 : i32
    %c0_i32_2 = arith.constant 0 : i32
    return %c0_i32, %c0_i32_0, %c0_i32_1 : i32, i32, i32
  }
  func.func @transform_2(%arg0: i32) -> (i32, i32) {
    %c0_i32 = arith.constant 0 : i32
    %c0_i32_0 = arith.constant 0 : i32
    %c0_i32_1 = arith.constant 0 : i32
    return %c0_i32, %c0_i32_0 : i32, i32
  }
  func.func @transform_3(%arg0: i32) -> (i32, i32) {
    %c0_i32 = arith.constant 0 : i32
    %c0_i32_0 = arith.constant 0 : i32
    %c0_i32_1 = arith.constant 0 : i32
    return %c0_i32, %c0_i32_0 : i32, i32
  }
  func.func @transform_4(%arg0: i32) -> (i32, i32) {
    %c0_i32 = arith.constant 0 : i32
    %c0_i32_0 = arith.constant 0 : i32
    %c0_i32_1 = arith.constant 0 : i32
    return %c0_i32, %c0_i32_0 : i32, i32
  }
  func.func @transform_5(%arg0: i32) -> (i32, i32, i32) {
    %c0_i32 = arith.constant 0 : i32
    %c0_i32_0 = arith.constant 0 : i32
    %c0_i32_1 = arith.constant 0 : i32
    return %arg0, %c0_i32, %c0_i32_0 : i32, i32, i32
  }
  func.func @transform_6(%arg0: i32) -> (i32, i32, i32) {
    %c0_i32 = arith.constant 0 : i32
    %c0_i32_0 = arith.constant 0 : i32
    %c0_i32_1 = arith.constant 0 : i32
    return %arg0, %c0_i32, %c0_i32_0 : i32, i32, i32
  }
  func.func @transform_7(%arg0: i32) -> (i32, i32, i32) {
    %c0_i32 = arith.constant 0 : i32
    %c0_i32_0 = arith.constant 0 : i32
    %c0_i32_1 = arith.constant 0 : i32
    return %arg0, %c0_i32, %c0_i32_0 : i32, i32, i32
  }
}

module attributes {stable_mosaic.version = 11 : i64} {
  func.func @kernel(%arg0: i32, %arg1: memref<1x16x384xf32, #tpu.memory_space<vmem>>, %arg2: memref<9x16x16xbf16, #tpu.memory_space<vmem>>, %arg3: memref<1x384xf32, #tpu.memory_space<vmem>>, %arg4: memref<1x16x384xbf16, #tpu.memory_space<vmem>>, %arg5: memref<1x16x1xf32, #tpu.memory_space<vmem>>, %arg6: memref<1x16x1xf32, #tpu.memory_space<vmem>>) attributes {dimension_semantics = [#tpu.dimension_semantics<parallel>], iteration_bounds = array<i64: 2>, scalar_prefetch = 0 : i64, scratch_operands = 0 : i64, tpu.core_type = #tpu.core_type<tc>, window_params = [{transform_indices = @transform_0, window_bounds = array<i64: 1, 16, 384>}, {pipeline_mode = #tpu.pipeline_mode<synchronous>, transform_indices = @transform_1, window_bounds = array<i64: 9, 16, 16>}, {pipeline_mode = #tpu.pipeline_mode<synchronous>, transform_indices = @transform_2, window_bounds = array<i64: 1, 384>}, {transform_indices = @transform_3, window_bounds = array<i64: 1, 16, 384>}, {transform_indices = @transform_4, window_bounds = array<i64: 1, 16, 1>}, {transform_indices = @transform_5, window_bounds = array<i64: 1, 16, 1>}]} {
    %c0 = arith.constant 0 : index
    %c0_0 = arith.constant 0 : index
    %c0_1 = arith.constant 0 : index
    %0 = vector.load %arg1[%c0, %c0_0, %c0_1] : memref<1x16x384xf32, #tpu.memory_space<vmem>>, vector<1x16x384xf32>
    %1 = vector.shape_cast %0 : vector<1x16x384xf32> to vector<16x384xf32>
    %c0_2 = arith.constant 0 : index
    %c0_3 = arith.constant 0 : index
    %2 = vector.load %arg3[%c0_2, %c0_3] : memref<1x384xf32, #tpu.memory_space<vmem>>, vector<1x384xf32>
    %c19_i32 = arith.constant 19 : i32
    %3 = tpu.dynamic_rotate %1 by %c19_i32 dim 1 : vector<16x384xf32>, i32 -> vector<16x384xf32>
    %c0_4 = arith.constant 0 : index
    %c0_5 = arith.constant 0 : index
    %c0_6 = arith.constant 0 : index
    %4 = vector.load %arg2[%c0_4, %c0_5, %c0_6] : memref<9x16x16xbf16, #tpu.memory_space<vmem>>, vector<1x16x16xbf16>
    %5 = vector.shape_cast %4 : vector<1x16x16xbf16> to vector<16x16xbf16>
    %6 = arith.truncf %3 : vector<16x384xf32> to vector<16x384xbf16>
    %cst = arith.constant dense<0.000000e+00> : vector<16x384xf32>
    %7 = tpu.matmul %5, %6, %cst {dimension_numbers = #tpu.dot_dimension_numbers<[1], [0], [0], [1], [0, 0, 1, 1], [], []>} : vector<16x16xbf16>, vector<16x384xbf16>, vector<16x384xf32> -> vector<16x384xf32>
    %c18_i32 = arith.constant 18 : i32
    %8 = tpu.dynamic_rotate %1 by %c18_i32 dim 1 : vector<16x384xf32>, i32 -> vector<16x384xf32>
    %c1 = arith.constant 1 : index
    %c0_7 = arith.constant 0 : index
    %c0_8 = arith.constant 0 : index
    %9 = vector.load %arg2[%c1, %c0_7, %c0_8] : memref<9x16x16xbf16, #tpu.memory_space<vmem>>, vector<1x16x16xbf16>
    %10 = vector.shape_cast %9 : vector<1x16x16xbf16> to vector<16x16xbf16>
    %11 = arith.truncf %8 : vector<16x384xf32> to vector<16x384xbf16>
    %cst_9 = arith.constant dense<0.000000e+00> : vector<16x384xf32>
    %12 = tpu.matmul %10, %11, %cst_9 {dimension_numbers = #tpu.dot_dimension_numbers<[1], [0], [0], [1], [0, 0, 1, 1], [], []>} : vector<16x16xbf16>, vector<16x384xbf16>, vector<16x384xf32> -> vector<16x384xf32>
    %13 = arith.addf %7, %12 : vector<16x384xf32>
    %c17_i32 = arith.constant 17 : i32
    %14 = tpu.dynamic_rotate %1 by %c17_i32 dim 1 : vector<16x384xf32>, i32 -> vector<16x384xf32>
    %c2 = arith.constant 2 : index
    %c0_10 = arith.constant 0 : index
    %c0_11 = arith.constant 0 : index
    %15 = vector.load %arg2[%c2, %c0_10, %c0_11] : memref<9x16x16xbf16, #tpu.memory_space<vmem>>, vector<1x16x16xbf16>
    %16 = vector.shape_cast %15 : vector<1x16x16xbf16> to vector<16x16xbf16>
    %17 = arith.truncf %14 : vector<16x384xf32> to vector<16x384xbf16>
    %cst_12 = arith.constant dense<0.000000e+00> : vector<16x384xf32>
    %18 = tpu.matmul %16, %17, %cst_12 {dimension_numbers = #tpu.dot_dimension_numbers<[1], [0], [0], [1], [0, 0, 1, 1], [], []>} : vector<16x16xbf16>, vector<16x384xbf16>, vector<16x384xf32> -> vector<16x384xf32>
    %19 = arith.addf %13, %18 : vector<16x384xf32>
    %c1_i32 = arith.constant 1 : i32
    %20 = tpu.dynamic_rotate %1 by %c1_i32 dim 1 : vector<16x384xf32>, i32 -> vector<16x384xf32>
    %c3 = arith.constant 3 : index
    %c0_13 = arith.constant 0 : index
    %c0_14 = arith.constant 0 : index
    %21 = vector.load %arg2[%c3, %c0_13, %c0_14] : memref<9x16x16xbf16, #tpu.memory_space<vmem>>, vector<1x16x16xbf16>
    %22 = vector.shape_cast %21 : vector<1x16x16xbf16> to vector<16x16xbf16>
    %23 = arith.truncf %20 : vector<16x384xf32> to vector<16x384xbf16>
    %cst_15 = arith.constant dense<0.000000e+00> : vector<16x384xf32>
    %24 = tpu.matmul %22, %23, %cst_15 {dimension_numbers = #tpu.dot_dimension_numbers<[1], [0], [0], [1], [0, 0, 1, 1], [], []>} : vector<16x16xbf16>, vector<16x384xbf16>, vector<16x384xf32> -> vector<16x384xf32>
    %25 = arith.addf %19, %24 : vector<16x384xf32>
    %c4 = arith.constant 4 : index
    %c0_16 = arith.constant 0 : index
    %c0_17 = arith.constant 0 : index
    %26 = vector.load %arg2[%c4, %c0_16, %c0_17] : memref<9x16x16xbf16, #tpu.memory_space<vmem>>, vector<1x16x16xbf16>
    %27 = vector.shape_cast %26 : vector<1x16x16xbf16> to vector<16x16xbf16>
    %28 = arith.truncf %1 : vector<16x384xf32> to vector<16x384xbf16>
    %cst_18 = arith.constant dense<0.000000e+00> : vector<16x384xf32>
    %29 = tpu.matmul %27, %28, %cst_18 {dimension_numbers = #tpu.dot_dimension_numbers<[1], [0], [0], [1], [0, 0, 1, 1], [], []>} : vector<16x16xbf16>, vector<16x384xbf16>, vector<16x384xf32> -> vector<16x384xf32>
    %30 = arith.addf %25, %29 : vector<16x384xf32>
    %c383_i32 = arith.constant 383 : i32
    %31 = tpu.dynamic_rotate %1 by %c383_i32 dim 1 : vector<16x384xf32>, i32 -> vector<16x384xf32>
    %c5 = arith.constant 5 : index
    %c0_19 = arith.constant 0 : index
    %c0_20 = arith.constant 0 : index
    %32 = vector.load %arg2[%c5, %c0_19, %c0_20] : memref<9x16x16xbf16, #tpu.memory_space<vmem>>, vector<1x16x16xbf16>
    %33 = vector.shape_cast %32 : vector<1x16x16xbf16> to vector<16x16xbf16>
    %34 = arith.truncf %31 : vector<16x384xf32> to vector<16x384xbf16>
    %cst_21 = arith.constant dense<0.000000e+00> : vector<16x384xf32>
    %35 = tpu.matmul %33, %34, %cst_21 {dimension_numbers = #tpu.dot_dimension_numbers<[1], [0], [0], [1], [0, 0, 1, 1], [], []>} : vector<16x16xbf16>, vector<16x384xbf16>, vector<16x384xf32> -> vector<16x384xf32>
    %36 = arith.addf %30, %35 : vector<16x384xf32>
    %c367_i32 = arith.constant 367 : i32
    %37 = tpu.dynamic_rotate %1 by %c367_i32 dim 1 : vector<16x384xf32>, i32 -> vector<16x384xf32>
    %c6 = arith.constant 6 : index
    %c0_22 = arith.constant 0 : index
    %c0_23 = arith.constant 0 : index
    %38 = vector.load %arg2[%c6, %c0_22, %c0_23] : memref<9x16x16xbf16, #tpu.memory_space<vmem>>, vector<1x16x16xbf16>
    %39 = vector.shape_cast %38 : vector<1x16x16xbf16> to vector<16x16xbf16>
    %40 = arith.truncf %37 : vector<16x384xf32> to vector<16x384xbf16>
    %cst_24 = arith.constant dense<0.000000e+00> : vector<16x384xf32>
    %41 = tpu.matmul %39, %40, %cst_24 {dimension_numbers = #tpu.dot_dimension_numbers<[1], [0], [0], [1], [0, 0, 1, 1], [], []>} : vector<16x16xbf16>, vector<16x384xbf16>, vector<16x384xf32> -> vector<16x384xf32>
    %42 = arith.addf %36, %41 : vector<16x384xf32>
    %c366_i32 = arith.constant 366 : i32
    %43 = tpu.dynamic_rotate %1 by %c366_i32 dim 1 : vector<16x384xf32>, i32 -> vector<16x384xf32>
    %c7 = arith.constant 7 : index
    %c0_25 = arith.constant 0 : index
    %c0_26 = arith.constant 0 : index
    %44 = vector.load %arg2[%c7, %c0_25, %c0_26] : memref<9x16x16xbf16, #tpu.memory_space<vmem>>, vector<1x16x16xbf16>
    %45 = vector.shape_cast %44 : vector<1x16x16xbf16> to vector<16x16xbf16>
    %46 = arith.truncf %43 : vector<16x384xf32> to vector<16x384xbf16>
    %cst_27 = arith.constant dense<0.000000e+00> : vector<16x384xf32>
    %47 = tpu.matmul %45, %46, %cst_27 {dimension_numbers = #tpu.dot_dimension_numbers<[1], [0], [0], [1], [0, 0, 1, 1], [], []>} : vector<16x16xbf16>, vector<16x384xbf16>, vector<16x384xf32> -> vector<16x384xf32>
    %48 = arith.addf %42, %47 : vector<16x384xf32>
    %c365_i32 = arith.constant 365 : i32
    %49 = tpu.dynamic_rotate %1 by %c365_i32 dim 1 : vector<16x384xf32>, i32 -> vector<16x384xf32>
    %c8 = arith.constant 8 : index
    %c0_28 = arith.constant 0 : index
    %c0_29 = arith.constant 0 : index
    %50 = vector.load %arg2[%c8, %c0_28, %c0_29] : memref<9x16x16xbf16, #tpu.memory_space<vmem>>, vector<1x16x16xbf16>
    %51 = vector.shape_cast %50 : vector<1x16x16xbf16> to vector<16x16xbf16>
    %52 = arith.truncf %49 : vector<16x384xf32> to vector<16x384xbf16>
    %cst_30 = arith.constant dense<0.000000e+00> : vector<16x384xf32>
    %53 = tpu.matmul %51, %52, %cst_30 {dimension_numbers = #tpu.dot_dimension_numbers<[1], [0], [0], [1], [0, 0, 1, 1], [], []>} : vector<16x16xbf16>, vector<16x384xbf16>, vector<16x384xf32> -> vector<16x384xf32>
    %54 = arith.addf %48, %53 : vector<16x384xf32>
    %55 = vector.broadcast %2 : vector<1x384xf32> to vector<16x384xf32>
    %56 = arith.mulf %54, %55 : vector<16x384xf32>
    %57 = arith.truncf %54 : vector<16x384xf32> to vector<16x384xbf16>
    %c0_31 = arith.constant 0 : index
    %c0_32 = arith.constant 0 : index
    %c0_33 = arith.constant 0 : index
    %58 = vector.load %arg4[%c0_31, %c0_32, %c0_33] : memref<1x16x384xbf16, #tpu.memory_space<vmem>>, vector<1x16x384xbf16>
    %59 = vector.shape_cast %58 : vector<1x16x384xbf16> to vector<16x384xbf16>
    %60 = vector.shape_cast %57 : vector<16x384xbf16> to vector<1x16x384xbf16>
    tpu.vector_store %arg4[%c0_31, %c0_32, %c0_33], %60 {strides = array<i32>} : memref<1x16x384xbf16, #tpu.memory_space<vmem>>, vector<1x16x384xbf16>,
    %cst_34 = arith.constant dense<0.000000e+00> : vector<16xf32>
    %61 = vector.multi_reduction <add>, %56, %cst_34 [1] : vector<16x384xf32> to vector<16xf32>
    %62 = vector.shape_cast %61 : vector<16xf32> to vector<16x1xf32>
    %c0_35 = arith.constant 0 : index
    %c0_36 = arith.constant 0 : index
    %c0_37 = arith.constant 0 : index
    %63 = vector.load %arg5[%c0_35, %c0_36, %c0_37] : memref<1x16x1xf32, #tpu.memory_space<vmem>>, vector<1x16x1xf32>
    %64 = vector.shape_cast %63 : vector<1x16x1xf32> to vector<16x1xf32>
    %65 = vector.shape_cast %62 : vector<16x1xf32> to vector<1x16x1xf32>
    tpu.vector_store %arg5[%c0_35, %c0_36, %c0_37], %65 {strides = array<i32>} : memref<1x16x1xf32, #tpu.memory_space<vmem>>, vector<1x16x1xf32>,
    %66 = arith.mulf %56, %56 : vector<16x384xf32>
    %cst_38 = arith.constant dense<0.000000e+00> : vector<16xf32>
    %67 = vector.multi_reduction <add>, %66, %cst_38 [1] : vector<16x384xf32> to vector<16xf32>
    %68 = vector.shape_cast %67 : vector<16xf32> to vector<16x1xf32>
    %c0_39 = arith.constant 0 : index
    %c0_40 = arith.constant 0 : index
    %c0_41 = arith.constant 0 : index
    %69 = vector.load %arg6[%c0_39, %c0_40, %c0_41] : memref<1x16x1xf32, #tpu.memory_space<vmem>>, vector<1x16x1xf32>
    %70 = vector.shape_cast %69 : vector<1x16x1xf32> to vector<16x1xf32>
    %71 = vector.shape_cast %68 : vector<16x1xf32> to vector<1x16x1xf32>
    tpu.vector_store %arg6[%c0_39, %c0_40, %c0_41], %71 {strides = array<i32>} : memref<1x16x1xf32, #tpu.memory_space<vmem>>, vector<1x16x1xf32>,
    return
  }
  func.func @transform_0(%arg0: i32) -> (i32, i32, i32) {
    %c0_i32 = arith.constant 0 : i32
    %c0_i32_0 = arith.constant 0 : i32
    %c0_i32_1 = arith.constant 0 : i32
    return %arg0, %c0_i32, %c0_i32_0 : i32, i32, i32
  }
  func.func @transform_1(%arg0: i32) -> (i32, i32, i32) {
    %c0_i32 = arith.constant 0 : i32
    %c0_i32_0 = arith.constant 0 : i32
    %c0_i32_1 = arith.constant 0 : i32
    %c0_i32_2 = arith.constant 0 : i32
    return %c0_i32, %c0_i32_0, %c0_i32_1 : i32, i32, i32
  }
  func.func @transform_2(%arg0: i32) -> (i32, i32) {
    %c0_i32 = arith.constant 0 : i32
    %c0_i32_0 = arith.constant 0 : i32
    %c0_i32_1 = arith.constant 0 : i32
    return %c0_i32, %c0_i32_0 : i32, i32
  }
  func.func @transform_3(%arg0: i32) -> (i32, i32, i32) {
    %c0_i32 = arith.constant 0 : i32
    %c0_i32_0 = arith.constant 0 : i32
    %c0_i32_1 = arith.constant 0 : i32
    return %arg0, %c0_i32, %c0_i32_0 : i32, i32, i32
  }
  func.func @transform_4(%arg0: i32) -> (i32, i32, i32) {
    %c0_i32 = arith.constant 0 : i32
    %c0_i32_0 = arith.constant 0 : i32
    %c0_i32_1 = arith.constant 0 : i32
    return %arg0, %c0_i32, %c0_i32_0 : i32, i32, i32
  }
  func.func @transform_5(%arg0: i32) -> (i32, i32, i32) {
    %c0_i32 = arith.constant 0 : i32
    %c0_i32_0 = arith.constant 0 : i32
    %c0_i32_1 = arith.constant 0 : i32
    return %arg0, %c0_i32, %c0_i32_0 : i32, i32, i32
  }
}

module attributes {stable_mosaic.version = 11 : i64} {
  func.func @bn_residual_relu_kernel(%arg0: i32, %arg1: memref<1x16x384xbf16, #tpu.memory_space<vmem>>, %arg2: memref<1x16x384xf32, #tpu.memory_space<vmem>>, %arg3: memref<16x1xf32, #tpu.memory_space<vmem>>, %arg4: memref<16x1xf32, #tpu.memory_space<vmem>>, %arg5: memref<1x16x384xf32, #tpu.memory_space<vmem>>) attributes {dimension_semantics = [#tpu.dimension_semantics<parallel>], iteration_bounds = array<i64: 2>, scalar_prefetch = 0 : i64, scratch_operands = 0 : i64, tpu.core_type = #tpu.core_type<tc>, window_params = [{transform_indices = @transform_0, window_bounds = array<i64: 1, 16, 384>}, {transform_indices = @transform_1, window_bounds = array<i64: 1, 16, 384>}, {pipeline_mode = #tpu.pipeline_mode<synchronous>, transform_indices = @transform_2, window_bounds = array<i64: 16, 1>}, {pipeline_mode = #tpu.pipeline_mode<synchronous>, transform_indices = @transform_3, window_bounds = array<i64: 16, 1>}, {transform_indices = @transform_4, window_bounds = array<i64: 1, 16, 384>}]} {
    %c0 = arith.constant 0 : index
    %c0_0 = arith.constant 0 : index
    %c0_1 = arith.constant 0 : index
    %0 = vector.load %arg1[%c0, %c0_0, %c0_1] : memref<1x16x384xbf16, #tpu.memory_space<vmem>>, vector<1x16x384xbf16>
    %1 = vector.shape_cast %0 : vector<1x16x384xbf16> to vector<16x384xbf16>
    %2 = arith.extf %1 : vector<16x384xbf16> to vector<16x384xf32>
    %c0_2 = arith.constant 0 : index
    %c0_3 = arith.constant 0 : index
    %3 = vector.load %arg3[%c0_2, %c0_3] : memref<16x1xf32, #tpu.memory_space<vmem>>, vector<16x1xf32>
    %4 = vector.broadcast %3 : vector<16x1xf32> to vector<16x384xf32>
    %5 = arith.mulf %2, %4 : vector<16x384xf32>
    %c0_4 = arith.constant 0 : index
    %c0_5 = arith.constant 0 : index
    %6 = vector.load %arg4[%c0_4, %c0_5] : memref<16x1xf32, #tpu.memory_space<vmem>>, vector<16x1xf32>
    %7 = vector.broadcast %6 : vector<16x1xf32> to vector<16x384xf32>
    %8 = arith.addf %5, %7 : vector<16x384xf32>
    %c0_6 = arith.constant 0 : index
    %c0_7 = arith.constant 0 : index
    %c0_8 = arith.constant 0 : index
    %9 = vector.load %arg2[%c0_6, %c0_7, %c0_8] : memref<1x16x384xf32, #tpu.memory_space<vmem>>, vector<1x16x384xf32>
    %10 = vector.shape_cast %9 : vector<1x16x384xf32> to vector<16x384xf32>
    %11 = arith.addf %8, %10 : vector<16x384xf32>
    %cst = arith.constant 0.000000e+00 : f32
    %12 = vector.broadcast %cst : f32 to vector<16x384xf32>
    %13 = arith.maximumf %11, %12 : vector<16x384xf32>
    %c0_9 = arith.constant 0 : index
    %c0_10 = arith.constant 0 : index
    %c0_11 = arith.constant 0 : index
    %14 = vector.load %arg5[%c0_9, %c0_10, %c0_11] : memref<1x16x384xf32, #tpu.memory_space<vmem>>, vector<1x16x384xf32>
    %15 = vector.shape_cast %14 : vector<1x16x384xf32> to vector<16x384xf32>
    %16 = vector.shape_cast %13 : vector<16x384xf32> to vector<1x16x384xf32>
    tpu.vector_store %arg5[%c0_9, %c0_10, %c0_11], %16 {strides = array<i32>} : memref<1x16x384xf32, #tpu.memory_space<vmem>>, vector<1x16x384xf32>,
    return
  }
  func.func @transform_0(%arg0: i32) -> (i32, i32, i32) {
    %c0_i32 = arith.constant 0 : i32
    %c0_i32_0 = arith.constant 0 : i32
    %c0_i32_1 = arith.constant 0 : i32
    return %arg0, %c0_i32, %c0_i32_0 : i32, i32, i32
  }
  func.func @transform_1(%arg0: i32) -> (i32, i32, i32) {
    %c0_i32 = arith.constant 0 : i32
    %c0_i32_0 = arith.constant 0 : i32
    %c0_i32_1 = arith.constant 0 : i32
    return %arg0, %c0_i32, %c0_i32_0 : i32, i32, i32
  }
  func.func @transform_2(%arg0: i32) -> (i32, i32) {
    %c0_i32 = arith.constant 0 : i32
    %c0_i32_0 = arith.constant 0 : i32
    %c0_i32_1 = arith.constant 0 : i32
    return %c0_i32, %c0_i32_0 : i32, i32
  }
  func.func @transform_3(%arg0: i32) -> (i32, i32) {
    %c0_i32 = arith.constant 0 : i32
    %c0_i32_0 = arith.constant 0 : i32
    %c0_i32_1 = arith.constant 0 : i32
    return %c0_i32, %c0_i32_0 : i32, i32
  }
  func.func @transform_4(%arg0: i32) -> (i32, i32, i32) {
    %c0_i32 = arith.constant 0 : i32
    %c0_i32_0 = arith.constant 0 : i32
    %c0_i32_1 = arith.constant 0 : i32
    return %arg0, %c0_i32, %c0_i32_0 : i32, i32, i32
  }
}

</mosaic_0001>

<llo_original>
// kernel: res_block_forward.5
$region0: #{res_block_forward.5}
  #allocation0 [shape = 'u32[]', space=smem, size = 0x4, offset = 0x4, fixed_abs, tag = 'smem constant byte address 0x4 - core index']
  #allocation1 [shape = 'u32[144,128]{1,0:T(1,128)}', space=vmem, size = 0x12000, scoped, tag = 'internal scratch']
  %s0 = inlined_call_operand.vmem [shape: bf16[2,16,384], index: 0, kind: input, shape index: {}]
  %s1 = inlined_call_operand.vmem [shape: f32[2,16,384], index: 1, kind: input, shape index: {}]
  %s2 = inlined_call_operand.vmem [shape: f32[16,1], index: 2, kind: input, shape index: {}]
  %s3 = inlined_call_operand.vmem [shape: f32[16,1], index: 3, kind: input, shape index: {}]
  %s4 = inlined_call_operand.vmem [shape: f32[2,16,384], index: 4, kind: output, shape index: {}]
  %s5 = sld [smem:[#allocation0]]
  $region49: #{res_block_forward.5} parent=0
    _
  %s7 = ssub.s32 1, %s5
  %s8 = scalar_select 0, %s7, %s5
  loop: start=0, step=1, limit=4
  $region2: #{res_block_forward.5} parent=0 // loop_pre_header
    _
  $region3: #{res_block_forward.5} parent=0 // loop_header
    %s10 = sphi 0, %s14
    %p11 = scmp.ge.s32.totalorder %s10, 4
    %s20 = sphi 0, %s22
    %s23 = sphi 0, %s20
    %s24 = sphi 0, %s23
    %s40 = sphi 0, %s24
    %s46 = sphi 0, %s48
    %s49 = sphi 0, %s46
    %s50 = sphi 0, %s49
    %s66 = sphi 0, %s50
    %s70 = sphi 0, %s70
    %s72 = sphi 0, %s70
    %s73 = sphi 0, %s72
    %s87 = sphi 0, %s73
    %s91 = sphi 0, %s91
    %s93 = sphi 0, %s91
    %s94 = sphi 0, %s93
    %s108 = sphi 0, %s94
    %s114 = sphi 0, %s116
    %s117 = sphi 0, %s114
    %s118 = sphi 0, %s117
    %s134 = sphi 0, %s118
  $region4: #{res_block_forward.5} parent=0 // loop_header_branch
    %13 = sbr.rel (%p11) target = $region8
  $region5: #{res_block_forward.5} parent=0 // loop_body
    %s15 = ssub.s32 %s10, 1
    %s16 = ssub.s32 %s10, 2
    %s17 = sadd.s32 %s10, 1
    %s18 = ssub.s32 %s10, %s17
    %p19 = scmp.eq.s32.totalorder %s18, 0
    %s21 = sadd.s32 %s20, 1
    %s22 = scalar_select %p19, %s20, %s21
    %p25 = pneg %p19
    %p26 = scmp.eq.s32.totalorder %s10, 1
    %p27 = por %p25, %p26
    %p28 = scmp.ne.s32.totalorder %s20, %s23
    %p29 = scmp.eq.s32.totalorder %s10, 0
    %p30 = por %p28, %p29
    %p31 = scmp.ne.s32.totalorder %s20, %s23
    %p32 = scmp.eq.s32.totalorder %s15, 1
    %p33 = por %p31, %p32
    %p34 = scmp.ne.s32.totalorder %s23, %s24
    %p35 = scmp.eq.s32.totalorder %s15, 0
    %p36 = por %p34, %p35
    %p37 = scmp.ne.s32.totalorder %s23, %s24
    %p38 = scmp.eq.s32.totalorder %s16, 1
    %p39 = por %p37, %p38
    %p41 = scmp.ne.s32.totalorder %s24, %s40
    %p42 = scmp.eq.s32.totalorder %s16, 0
    %p43 = por %p41, %p42
    %s44 = ssub.s32 %s10, %s17
    %p45 = scmp.eq.s32.totalorder %s44, 0
    %s47 = sadd.s32 %s46, 1
    %s48 = scalar_select %p45, %s46, %s47
    %p51 = pneg %p45
    %p52 = scmp.eq.s32.totalorder %s10, 1
    %p53 = por %p51, %p52
    %p54 = scmp.ne.s32.totalorder %s46, %s49
    %p55 = scmp.eq.s32.totalorder %s10, 0
    %p56 = por %p54, %p55
    %p57 = scmp.ne.s32.totalorder %s46, %s49
    %p58 = scmp.eq.s32.totalorder %s15, 1
    %p59 = por %p57, %p58
    %p60 = scmp.ne.s32.totalorder %s49, %s50
    %p61 = scmp.eq.s32.totalorder %s15, 0
    %p62 = por %p60, %p61
    %p63 = scmp.ne.s32.totalorder %s49, %s50
    %p64 = scmp.eq.s32.totalorder %s16, 1
    %p65 = por %p63, %p64
    %p67 = scmp.ne.s32.totalorder %s50, %s66
    %p68 = scmp.eq.s32.totalorder %s16, 0
    %p69 = por %p67, %p68
    %s71 = sadd.s32 %s70, 1
    %p74 = scmp.eq.s32.totalorder %s10, 1
    %p75 = scmp.ne.s32.totalorder %s70, %s72
    %p76 = scmp.eq.s32.totalorder %s10, 0
    %p77 = por %p75, %p76
    %p78 = scmp.ne.s32.totalorder %s70, %s72
    %p79 = scmp.eq.s32.totalorder %s15, 1
    %p80 = por %p78, %p79
    %p81 = scmp.ne.s32.totalorder %s72, %s73
    %p82 = scmp.eq.s32.totalorder %s15, 0
    %p83 = por %p81, %p82
    %p84 = scmp.ne.s32.totalorder %s72, %s73
    %p85 = scmp.eq.s32.totalorder %s16, 1
    %p86 = por %p84, %p85
    %p88 = scmp.ne.s32.totalorder %s73, %s87
    %p89 = scmp.eq.s32.totalorder %s16, 0
    %p90 = por %p88, %p89
    %s92 = sadd.s32 %s91, 1
    %p95 = scmp.eq.s32.totalorder %s10, 1
    %p96 = scmp.ne.s32.totalorder %s91, %s93
    %p97 = scmp.eq.s32.totalorder %s10, 0
    %p98 = por %p96, %p97
    %p99 = scmp.ne.s32.totalorder %s91, %s93
    %p100 = scmp.eq.s32.totalorder %s15, 1
    %p101 = por %p99, %p100
    %p102 = scmp.ne.s32.totalorder %s93, %s94
    %p103 = scmp.eq.s32.totalorder %s15, 0
    %p104 = por %p102, %p103
    %p105 = scmp.ne.s32.totalorder %s93, %s94
    %p106 = scmp.eq.s32.totalorder %s16, 1
    %p107 = por %p105, %p106
    %p109 = scmp.ne.s32.totalorder %s94, %s108
    %p110 = scmp.eq.s32.totalorder %s16, 0
    %p111 = por %p109, %p110
    %s112 = ssub.s32 %s10, %s17
    %p113 = scmp.eq.s32.totalorder %s112, 0
    %s115 = sadd.s32 %s114, 1
    %s116 = scalar_select %p113, %s114, %s115
    %p119 = pneg %p113
    %p120 = scmp.eq.s32.totalorder %s10, 1
    %p121 = por %p119, %p120
    %p122 = scmp.ne.s32.totalorder %s114, %s117
    %p123 = scmp.eq.s32.totalorder %s10, 0
    %p124 = por %p122, %p123
    %p125 = scmp.ne.s32.totalorder %s114, %s117
    %p126 = scmp.eq.s32.totalorder %s15, 1
    %p127 = por %p125, %p126
    %p128 = scmp.ne.s32.totalorder %s117, %s118
    %p129 = scmp.eq.s32.totalorder %s15, 0
    %p130 = por %p128, %p129
    %p131 = scmp.ne.s32.totalorder %s117, %s118
    %p132 = scmp.eq.s32.totalorder %s16, 1
    %p133 = por %p131, %p132
    %p135 = scmp.ne.s32.totalorder %s118, %s134
    %p136 = scmp.eq.s32.totalorder %s16, 0
    %p137 = por %p135, %p136
    %p138 = scmp.le.s32.totalorder 1, %s10
    %p139 = scmp.lt.s32.totalorder %s10, 3
    %p140 = pnand %p138, %p139
    %p141 = pneg %p140
    // Predicated region
    $region9: #{res_block_forward.5} parent=5 // pred_check
      _
    $region10: #{res_block_forward.5} parent=5 // pred_check_branch
      %143 = sbr.rel (%p140) target = $region12
    $region11: #{res_block_forward.5} parent=5 // pred_region
      %s144 = ssub.s32 %s10, 1
      // Predicated region
      $region13: #{res_block_forward.5} parent=11 // pred_check
        %p145 = pneg %p83
      $region14: #{res_block_forward.5} parent=11 // pred_check_branch
        %147 = sbr.rel (%p145) target = $region16
      $region15: #{res_block_forward.5} parent=11 // pred_region
        _
      $region16: #{res_block_forward.5} parent=11 // pred_fallthru
        _
      // Predicated region
      $region17: #{res_block_forward.5} parent=11 // pred_check
        %p148 = pneg %p104
      $region18: #{res_block_forward.5} parent=11 // pred_check_branch
        %150 = sbr.rel (%p148) target = $region20
      $region19: #{res_block_forward.5} parent=11 // pred_region
        _
      $region20: #{res_block_forward.5} parent=11 // pred_fallthru
        _
    $region12: #{res_block_forward.5} parent=5 // pred_fallthru
      _
    %p151 = scmp.lt.s32.totalorder %s10, 2
    // Predicated region
    $region21: #{res_block_forward.5} parent=5 // pred_check
      %p152 = pneg %p151
    $region22: #{res_block_forward.5} parent=5 // pred_check_branch
      %154 = sbr.rel (%p152) target = $region24
    $region23: #{res_block_forward.5} parent=5 // pred_region
      // Predicated region
      $region25: #{res_block_forward.5} parent=23 // pred_check
        %p155 = pneg %p30
      $region26: #{res_block_forward.5} parent=23 // pred_check_branch
        %157 = sbr.rel (%p155) target = $region28
      $region27: #{res_block_forward.5} parent=23 // pred_region
        %p158 = scmp.lt.s32.totalorder %s10, 1
        %s159 = scalar_select %p158, %s10, 1
        %s160 = smul.addr %s159, 6
        %s161 = smul.addr %s160, 4
        %s162 = scalar_lea.vmem %s0, %s161
      $region28: #{res_block_forward.5} parent=23 // pred_fallthru
        _
      // Predicated region
      $region29: #{res_block_forward.5} parent=23 // pred_check
        %p163 = pneg %p56
      $region30: #{res_block_forward.5} parent=23 // pred_check_branch
        %165 = sbr.rel (%p163) target = $region32
      $region31: #{res_block_forward.5} parent=23 // pred_region
        %p166 = scmp.lt.s32.totalorder %s10, 1
        %s167 = scalar_select %p166, %s10, 1
        %s168 = smul.addr %s167, 6
        %s169 = smul.addr %s168, 8
        %s170 = scalar_lea.vmem %s1, %s169
      $region32: #{res_block_forward.5} parent=23 // pred_fallthru
        _
    $region24: #{res_block_forward.5} parent=5 // pred_fallthru
      _
    %p171 = scmp.le.s32.totalorder 1, %s10
    %p172 = scmp.lt.s32.totalorder %s10, 3
    %p173 = pnand %p171, %p172
    %p174 = pneg %p173
    // Predicated region
    $region33: #{res_block_forward.5} parent=5 // pred_check
      _
    $region34: #{res_block_forward.5} parent=5 // pred_check_branch
      %176 = sbr.rel (%p173) target = $region36
    $region35: #{res_block_forward.5} parent=5 // pred_region
      %s177 = ssub.s32 %s10, 1
      %p178 = scmp.lt.s32.totalorder %s15, 1
      %s179 = scalar_select %p178, %s15, 1
      %s180 = smul.addr %s179, 6
      %s181 = smul.addr %s180, 4
      %s182 = scalar_lea.vmem %s0, %s181
      %p183 = pneg %p36
      %p184 = pneg %p33
      %p185 = scmp.lt.s32.totalorder %s15, 1
      %s186 = scalar_select %p185, %s15, 1
      %s187 = smul.addr %s186, 6
      %s188 = smul.addr %s187, 8
      %s189 = scalar_lea.vmem %s1, %s188
      %p190 = pneg %p62
      %p191 = pneg %p59
      %p192 = pneg %p83
      %p193 = pneg %p80
      %p194 = pneg %p104
      %p195 = pneg %p101
      %p196 = pneg %p130
      %p197 = pneg %p127
      %p198 = scmp.lt.s32.totalorder %s15, 1
      %s199 = scalar_select %p198, %s15, 1
      %s200 = smul.addr %s199, 6
      %s201 = smul.addr %s200, 8
      %s202 = scalar_lea.vmem %s4, %s201
      %p203 = scmp.lt.s32.totalorder %s15, 1
      %s204 = scalar_select %p203, %s15, 1
      %s205 = smul.addr %s204, 6
      %s206 = smul.addr %s205, 4
      %s207 = scalar_lea.vmem %s0, %s206
      %p208 = scmp.lt.s32.totalorder %s15, 1
      %s209 = scalar_select %p208, %s15, 1
      %s210 = smul.addr %s209, 6
      %s211 = smul.addr %s210, 8
      %s212 = scalar_lea.vmem %s1, %s211
      %p213 = scmp.lt.s32.totalorder %s15, 1
      %s214 = scalar_select %p213, %s15, 1
      %s215 = smul.addr %s214, 6
      %s216 = smul.addr %s215, 8
      %s217 = scalar_lea.vmem %s4, %s216
      %v218 = vld [vmem:[%s207] sm:$0xff]
      %v219 = vld [vmem:[%s207 + $0x8] sm:$0xf]
      %v220 = vld [vmem:[%s207 + $0xc] sm:$0xff]
      %v221 = vld [vmem:[%s207 + $0x14] sm:$0xf]
      %v222 = vunpack.c.l.bf16 %v218
      %v223 = vunpack.c.h.bf16 %v218
      %v224 = vunpack.c.l.bf16 %v219
      %v225 = vunpack.c.l.bf16 %v220
      %v226 = vunpack.c.h.bf16 %v220
      %v227 = vunpack.c.l.bf16 %v221
      %v228 = vld [vmem:[%s2] sm:$0xff]
      %v229 = vld [vmem:[%s2 + $0x8] sm:$0xff]
      %231 = vset.pattern.permute.xlu0 0
      %232 = vperm.xlu0 %231, %v228
      %v233 = vpop.permute.xlu0 %232
      %236 = vset.pattern.permute.xlu0 0
      %237 = vperm.xlu0 %236, %v229
      %v238 = vpop.permute.xlu0 %237
      %v240 = vmul.f32 %v222, %v233
      %v241 = vmul.f32 %v223, %v233
      %v242 = vmul.f32 %v224, %v233
      %v243 = vmul.f32 %v225, %v238
      %v244 = vmul.f32 %v226, %v238
      %v245 = vmul.f32 %v227, %v238
      %v246 = vld [vmem:[%s3] sm:$0xff]
      %v247 = vld [vmem:[%s3 + $0x8] sm:$0xff]
      %249 = vset.pattern.permute.xlu0 0
      %250 = vperm.xlu0 %249, %v246
      %v251 = vpop.permute.xlu0 %250
      %254 = vset.pattern.permute.xlu0 0
      %255 = vperm.xlu0 %254, %v247
      %v256 = vpop.permute.xlu0 %255
      %v258 = vadd.f32 %v240, %v251
      %v259 = vadd.f32 %v241, %v251
      %v260 = vadd.f32 %v242, %v251
      %v261 = vadd.f32 %v243, %v256
      %v262 = vadd.f32 %v244, %v256
      %v263 = vadd.f32 %v245, %v256
      %v264 = vld [vmem:[%s212] sm:$0xff]
      %v265 = vld [vmem:[%s212 + $0x8] sm:$0xff]
      %v266 = vld [vmem:[%s212 + $0x10] sm:$0xff]
      %v267 = vld [vmem:[%s212 + $0x18] sm:$0xff]
      %v268 = vld [vmem:[%s212 + $0x20] sm:$0xff]
      %v269 = vld [vmem:[%s212 + $0x28] sm:$0xff]
      %v270 = vadd.f32 %v258, %v264
      %v271 = vadd.f32 %v259, %v265
      %v272 = vadd.f32 %v260, %v266
      %v273 = vadd.f32 %v261, %v267
      %v274 = vadd.f32 %v262, %v268
      %v275 = vadd.f32 %v263, %v269
      %v276 = vmax.f32 %v270, 0.0
      %v277 = vmax.f32 %v271, 0.0
      %v278 = vmax.f32 %v272, 0.0
      %v279 = vmax.f32 %v273, 0.0
      %v280 = vmax.f32 %v274, 0.0
      %v281 = vmax.f32 %v275, 0.0
      %282 = vst [vmem:[%s217] sm:$0xff] %v276
      %283 = vst [vmem:[%s217 + $0x8] sm:$0xff] %v277
      %284 = vst [vmem:[%s217 + $0x10] sm:$0xff] %v278
      %285 = vst [vmem:[%s217 + $0x18] sm:$0xff] %v279
      %286 = vst [vmem:[%s217 + $0x20] sm:$0xff] %v280
      %287 = vst [vmem:[%s217 + $0x28] sm:$0xff] %v281
      %p288 = scmp.lt.s32.totalorder %s15, 1
      %s289 = scalar_select %p288, %s15, 1
      %s290 = smul.addr %s289, 6
      %s291 = smul.addr %s290, 8
      %s292 = scalar_lea.vmem %s4, %s291
      // Predicated region
      $region37: #{res_block_forward.5} parent=35 // pred_check
        %p293 = pneg %p127
      $region38: #{res_block_forward.5} parent=35 // pred_check_branch
        %295 = sbr.rel (%p293) target = $region40
      $region39: #{res_block_forward.5} parent=35 // pred_region
        _
      $region40: #{res_block_forward.5} parent=35 // pred_fallthru
        _
    $region36: #{res_block_forward.5} parent=5 // pred_fallthru
      _
    %p296 = scmp.le.s32.totalorder 2, %s10
    // Predicated region
    $region41: #{res_block_forward.5} parent=5 // pred_check
      %p297 = pneg %p296
    $region42: #{res_block_forward.5} parent=5 // pred_check_branch
      %299 = sbr.rel (%p297) target = $region44
    $region43: #{res_block_forward.5} parent=5 // pred_region
      %s300 = ssub.s32 %s10, 2
      // Predicated region
      $region45: #{res_block_forward.5} parent=43 // pred_check
        %p301 = pneg %p133
      $region46: #{res_block_forward.5} parent=43 // pred_check_branch
        %303 = sbr.rel (%p301) target = $region48
      $region47: #{res_block_forward.5} parent=43 // pred_region
        %p304 = scmp.lt.s32.totalorder %s16, 1
        %s305 = scalar_select %p304, %s16, 1
        %s306 = smul.addr %s305, 6
        %s307 = smul.addr %s306, 8
        %s308 = scalar_lea.vmem %s4, %s307
      $region48: #{res_block_forward.5} parent=43 // pred_fallthru
        _
    $region44: #{res_block_forward.5} parent=5 // pred_fallthru
      _
  $region6: #{res_block_forward.5} parent=0 // loop_footer
    %s14 = sadd.s32 1, %s10
  $region7: #{res_block_forward.5} parent=0 // loop_footer_branch
    %9 = sbr.rel target = $region3
  $region8: #{res_block_forward.5} parent=0 // loop_exit
    _

// kernel: res_block_forward.3
$region0: #{res_block_forward.3}
  #allocation0 [shape = 'u32[]', space=smem, size = 0x4, offset = 0x4, fixed_abs, tag = 'smem constant byte address 0x4 - core index']
  #allocation1 [shape = 'u32[144,128]{1,0:T(1,128)}', space=vmem, size = 0x12000, scoped, tag = 'internal scratch']
  %s0 = inlined_call_operand.vmem [shape: f32[2,16,384], index: 0, kind: input, shape index: {}]
  %s1 = inlined_call_operand.vmem [shape: bf16[9,16,16], index: 1, kind: input, shape index: {}]
  %s2 = inlined_call_operand.vmem [shape: f32[1,384], index: 2, kind: input, shape index: {}]
  %s3 = inlined_call_operand.vmem [shape: bf16[2,16,384], index: 3, kind: output, shape index: {0}]
  %s4 = inlined_call_operand.vmem [shape: f32[2,16,1], index: 4, kind: output, shape index: {1}]
  %s5 = inlined_call_operand.vmem [shape: f32[2,16,1], index: 5, kind: output, shape index: {2}]
  %6 = xla_tuple %s3, %s4, %s5
  %s7 = sld [smem:[#allocation0]]
  $region61: #{res_block_forward.3} parent=0
    _
  %s9 = ssub.s32 1, %s7
  %s10 = scalar_select 0, %s9, %s7
  loop: start=0, step=1, limit=4
  $region2: #{res_block_forward.3} parent=0 // loop_pre_header
    _
  $region3: #{res_block_forward.3} parent=0 // loop_header
    %s12 = sphi 0, %s16
    %p13 = scmp.ge.s32.totalorder %s12, 4
    %s22 = sphi 0, %s24
    %s25 = sphi 0, %s22
    %s26 = sphi 0, %s25
    %s42 = sphi 0, %s26
    %s46 = sphi 0, %s46
    %s48 = sphi 0, %s46
    %s49 = sphi 0, %s48
    %s63 = sphi 0, %s49
    %s67 = sphi 0, %s67
    %s69 = sphi 0, %s67
    %s70 = sphi 0, %s69
    %s84 = sphi 0, %s70
    %s90 = sphi 0, %s92
    %s93 = sphi 0, %s90
    %s94 = sphi 0, %s93
    %s110 = sphi 0, %s94
    %s116 = sphi 0, %s118
    %s119 = sphi 0, %s116
    %s120 = sphi 0, %s119
    %s136 = sphi 0, %s120
    %s142 = sphi 0, %s144
    %s145 = sphi 0, %s142
    %s146 = sphi 0, %s145
    %s162 = sphi 0, %s146
  $region4: #{res_block_forward.3} parent=0 // loop_header_branch
    %15 = sbr.rel (%p13) target = $region8
  $region5: #{res_block_forward.3} parent=0 // loop_body
    %s17 = ssub.s32 %s12, 1
    %s18 = ssub.s32 %s12, 2
    %s19 = sadd.s32 %s12, 1
    %s20 = ssub.s32 %s12, %s19
    %p21 = scmp.eq.s32.totalorder %s20, 0
    %s23 = sadd.s32 %s22, 1
    %s24 = scalar_select %p21, %s22, %s23
    %p27 = pneg %p21
    %p28 = scmp.eq.s32.totalorder %s12, 1
    %p29 = por %p27, %p28
    %p30 = scmp.ne.s32.totalorder %s22, %s25
    %p31 = scmp.eq.s32.totalorder %s12, 0
    %p32 = por %p30, %p31
    %p33 = scmp.ne.s32.totalorder %s22, %s25
    %p34 = scmp.eq.s32.totalorder %s17, 1
    %p35 = por %p33, %p34
    %p36 = scmp.ne.s32.totalorder %s25, %s26
    %p37 = scmp.eq.s32.totalorder %s17, 0
    %p38 = por %p36, %p37
    %p39 = scmp.ne.s32.totalorder %s25, %s26
    %p40 = scmp.eq.s32.totalorder %s18, 1
    %p41 = por %p39, %p40
    %p43 = scmp.ne.s32.totalorder %s26, %s42
    %p44 = scmp.eq.s32.totalorder %s18, 0
    %p45 = por %p43, %p44
    %s47 = sadd.s32 %s46, 1
    %p50 = scmp.eq.s32.totalorder %s12, 1
    %p51 = scmp.ne.s32.totalorder %s46, %s48
    %p52 = scmp.eq.s32.totalorder %s12, 0
    %p53 = por %p51, %p52
    %p54 = scmp.ne.s32.totalorder %s46, %s48
    %p55 = scmp.eq.s32.totalorder %s17, 1
    %p56 = por %p54, %p55
    %p57 = scmp.ne.s32.totalorder %s48, %s49
    %p58 = scmp.eq.s32.totalorder %s17, 0
    %p59 = por %p57, %p58
    %p60 = scmp.ne.s32.totalorder %s48, %s49
    %p61 = scmp.eq.s32.totalorder %s18, 1
    %p62 = por %p60, %p61
    %p64 = scmp.ne.s32.totalorder %s49, %s63
    %p65 = scmp.eq.s32.totalorder %s18, 0
    %p66 = por %p64, %p65
    %s68 = sadd.s32 %s67, 1
    %p71 = scmp.eq.s32.totalorder %s12, 1
    %p72 = scmp.ne.s32.totalorder %s67, %s69
    %p73 = scmp.eq.s32.totalorder %s12, 0
    %p74 = por %p72, %p73
    %p75 = scmp.ne.s32.totalorder %s67, %s69
    %p76 = scmp.eq.s32.totalorder %s17, 1
    %p77 = por %p75, %p76
    %p78 = scmp.ne.s32.totalorder %s69, %s70
    %p79 = scmp.eq.s32.totalorder %s17, 0
    %p80 = por %p78, %p79
    %p81 = scmp.ne.s32.totalorder %s69, %s70
    %p82 = scmp.eq.s32.totalorder %s18, 1
    %p83 = por %p81, %p82
    %p85 = scmp.ne.s32.totalorder %s70, %s84
    %p86 = scmp.eq.s32.totalorder %s18, 0
    %p87 = por %p85, %p86
    %s88 = ssub.s32 %s12, %s19
    %p89 = scmp.eq.s32.totalorder %s88, 0
    %s91 = sadd.s32 %s90, 1
    %s92 = scalar_select %p89, %s90, %s91
    %p95 = pneg %p89
    %p96 = scmp.eq.s32.totalorder %s12, 1
    %p97 = por %p95, %p96
    %p98 = scmp.ne.s32.totalorder %s90, %s93
    %p99 = scmp.eq.s32.totalorder %s12, 0
    %p100 = por %p98, %p99
    %p101 = scmp.ne.s32.totalorder %s90, %s93
    %p102 = scmp.eq.s32.totalorder %s17, 1
    %p103 = por %p101, %p102
    %p104 = scmp.ne.s32.totalorder %s93, %s94
    %p105 = scmp.eq.s32.totalorder %s17, 0
    %p106 = por %p104, %p105
    %p107 = scmp.ne.s32.totalorder %s93, %s94
    %p108 = scmp.eq.s32.totalorder %s18, 1
    %p109 = por %p107, %p108
    %p111 = scmp.ne.s32.totalorder %s94, %s110
    %p112 = scmp.eq.s32.totalorder %s18, 0
    %p113 = por %p111, %p112
    %s114 = ssub.s32 %s12, %s19
    %p115 = scmp.eq.s32.totalorder %s114, 0
    %s117 = sadd.s32 %s116, 1
    %s118 = scalar_select %p115, %s116, %s117
    %p121 = pneg %p115
    %p122 = scmp.eq.s32.totalorder %s12, 1
    %p123 = por %p121, %p122
    %p124 = scmp.ne.s32.totalorder %s116, %s119
    %p125 = scmp.eq.s32.totalorder %s12, 0
    %p126 = por %p124, %p125
    %p127 = scmp.ne.s32.totalorder %s116, %s119
    %p128 = scmp.eq.s32.totalorder %s17, 1
    %p129 = por %p127, %p128
    %p130 = scmp.ne.s32.totalorder %s119, %s120
    %p131 = scmp.eq.s32.totalorder %s17, 0
    %p132 = por %p130, %p131
    %p133 = scmp.ne.s32.totalorder %s119, %s120
    %p134 = scmp.eq.s32.totalorder %s18, 1
    %p135 = por %p133, %p134
    %p137 = scmp.ne.s32.totalorder %s120, %s136
    %p138 = scmp.eq.s32.totalorder %s18, 0
    %p139 = por %p137, %p138
    %s140 = ssub.s32 %s12, %s19
    %p141 = scmp.eq.s32.totalorder %s140, 0
    %s143 = sadd.s32 %s142, 1
    %s144 = scalar_select %p141, %s142, %s143
    %p147 = pneg %p141
    %p148 = scmp.eq.s32.totalorder %s12, 1
    %p149 = por %p147, %p148
    %p150 = scmp.ne.s32.totalorder %s142, %s145
    %p151 = scmp.eq.s32.totalorder %s12, 0
    %p152 = por %p150, %p151
    %p153 = scmp.ne.s32.totalorder %s142, %s145
    %p154 = scmp.eq.s32.totalorder %s17, 1
    %p155 = por %p153, %p154
    %p156 = scmp.ne.s32.totalorder %s145, %s146
    %p157 = scmp.eq.s32.totalorder %s17, 0
    %p158 = por %p156, %p157
    %p159 = scmp.ne.s32.totalorder %s145, %s146
    %p160 = scmp.eq.s32.totalorder %s18, 1
    %p161 = por %p159, %p160
    %p163 = scmp.ne.s32.totalorder %s146, %s162
    %p164 = scmp.eq.s32.totalorder %s18, 0
    %p165 = por %p163, %p164
    %p166 = scmp.le.s32.totalorder 1, %s12
    %p167 = scmp.lt.s32.totalorder %s12, 3
    %p168 = pnand %p166, %p167
    %p169 = pneg %p168
    // Predicated region
    $region9: #{res_block_forward.3} parent=5 // pred_check
      _
    $region10: #{res_block_forward.3} parent=5 // pred_check_branch
      %171 = sbr.rel (%p168) target = $region12
    $region11: #{res_block_forward.3} parent=5 // pred_region
      %s172 = ssub.s32 %s12, 1
      // Predicated region
      $region13: #{res_block_forward.3} parent=11 // pred_check
        %p173 = pneg %p59
      $region14: #{res_block_forward.3} parent=11 // pred_check_branch
        %175 = sbr.rel (%p173) target = $region16
      $region15: #{res_block_forward.3} parent=11 // pred_region
        _
      $region16: #{res_block_forward.3} parent=11 // pred_fallthru
        _
      // Predicated region
      $region17: #{res_block_forward.3} parent=11 // pred_check
        %p176 = pneg %p80
      $region18: #{res_block_forward.3} parent=11 // pred_check_branch
        %178 = sbr.rel (%p176) target = $region20
      $region19: #{res_block_forward.3} parent=11 // pred_region
        _
      $region20: #{res_block_forward.3} parent=11 // pred_fallthru
        _
    $region12: #{res_block_forward.3} parent=5 // pred_fallthru
      _
    %p179 = scmp.lt.s32.totalorder %s12, 2
    // Predicated region
    $region21: #{res_block_forward.3} parent=5 // pred_check
      %p180 = pneg %p179
    $region22: #{res_block_forward.3} parent=5 // pred_check_branch
      %182 = sbr.rel (%p180) target = $region24
    $region23: #{res_block_forward.3} parent=5 // pred_region
      // Predicated region
      $region25: #{res_block_forward.3} parent=23 // pred_check
        %p183 = pneg %p32
      $region26: #{res_block_forward.3} parent=23 // pred_check_branch
        %185 = sbr.rel (%p183) target = $region28
      $region27: #{res_block_forward.3} parent=23 // pred_region
        %p186 = scmp.lt.s32.totalorder %s12, 1
        %s187 = scalar_select %p186, %s12, 1
        %s188 = smul.addr %s187, 6
        %s189 = smul.addr %s188, 8
        %s190 = scalar_lea.vmem %s0, %s189
      $region28: #{res_block_forward.3} parent=23 // pred_fallthru
        _
    $region24: #{res_block_forward.3} parent=5 // pred_fallthru
      _
    %p191 = scmp.le.s32.totalorder 1, %s12
    %p192 = scmp.lt.s32.totalorder %s12, 3
    %p193 = pnand %p191, %p192
    %p194 = pneg %p193
    // Predicated region
    $region29: #{res_block_forward.3} parent=5 // pred_check
      _
    $region30: #{res_block_forward.3} parent=5 // pred_check_branch
      %196 = sbr.rel (%p193) target = $region32
    $region31: #{res_block_forward.3} parent=5 // pred_region
      %s197 = ssub.s32 %s12, 1
      %p198 = scmp.lt.s32.totalorder %s17, 1
      %s199 = scalar_select %p198, %s17, 1
      %s200 = smul.addr %s199, 6
      %s201 = smul.addr %s200, 8
      %s202 = scalar_lea.vmem %s0, %s201
      %p203 = pneg %p38
      %p204 = pneg %p35
      %p205 = pneg %p59
      %p206 = pneg %p56
      %p207 = pneg %p80
      %p208 = pneg %p77
      %p209 = pneg %p106
      %p210 = pneg %p103
      %p211 = scmp.lt.s32.totalorder %s17, 1
      %s212 = scalar_select %p211, %s17, 1
      %s213 = smul.addr %s212, 6
      %s214 = smul.addr %s213, 4
      %s215 = scalar_lea.vmem %s3, %s214
      %p216 = pneg %p132
      %p217 = pneg %p129
      %p218 = scmp.lt.s32.totalorder %s17, 1
      %s219 = scalar_select %p218, %s17, 1
      %s220 = smul.addr %s219, 2
      %s221 = smul.addr %s220, 8
      %s222 = scalar_lea.vmem %s4, %s221
      %p223 = pneg %p158
      %p224 = pneg %p155
      %p225 = scmp.lt.s32.totalorder %s17, 1
      %s226 = scalar_select %p225, %s17, 1
      %s227 = smul.addr %s226, 2
      %s228 = smul.addr %s227, 8
      %s229 = scalar_lea.vmem %s5, %s228
      %p230 = scmp.lt.s32.totalorder %s17, 1
      %s231 = scalar_select %p230, %s17, 1
      %s232 = smul.addr %s231, 6
      %s233 = smul.addr %s232, 8
      %s234 = scalar_lea.vmem %s0, %s233
      %p235 = scmp.lt.s32.totalorder %s17, 1
      %s236 = scalar_select %p235, %s17, 1
      %s237 = smul.addr %s236, 6
      %s238 = smul.addr %s237, 4
      %s239 = scalar_lea.vmem %s3, %s238
      %p240 = scmp.lt.s32.totalorder %s17, 1
      %s241 = scalar_select %p240, %s17, 1
      %s242 = smul.addr %s241, 2
      %s243 = smul.addr %s242, 8
      %s244 = scalar_lea.vmem %s4, %s243
      %p245 = scmp.lt.s32.totalorder %s17, 1
      %s246 = scalar_select %p245, %s17, 1
      %s247 = smul.addr %s246, 2
      %s248 = smul.addr %s247, 8
      %s249 = scalar_lea.vmem %s5, %s248
      %v251 = vld [vmem:[%s234] sm:$0xff]
      %v252 = vld [vmem:[%s234 + $0x8] sm:$0xff]
      %v253 = vld [vmem:[%s234 + $0x10] sm:$0xff]
      %v254 = vld [vmem:[%s234 + $0x18] sm:$0xff]
      %v255 = vld [vmem:[%s234 + $0x20] sm:$0xff]
      %v256 = vld [vmem:[%s234 + $0x28] sm:$0xff]
      %v257 = vld [vmem:[%s2] sm:$0x7]
      %258 = vrot.lane.b32.xlu0 %v251, 19
      %v259 = vpop.permute.xlu0 %258
      %260 = vrot.lane.b32.xlu0 %v254, 19
      %v261 = vpop.permute.xlu0 %260
      %262 = vrot.lane.b32.xlu0 %v252, 19
      %v263 = vpop.permute.xlu0 %262
      %264 = vrot.lane.b32.xlu0 %v255, 19
      %v265 = vpop.permute.xlu0 %264
      %266 = vrot.lane.b32.xlu0 %v253, 19
      %v267 = vpop.permute.xlu0 %266
      %268 = vrot.lane.b32.xlu0 %v256, 19
      %v269 = vpop.permute.xlu0 %268
      %v270 = vlaneseq
      %v271 = vand.u32 %v270, 127
      %vm272 = vcmp.lt.s32.totalorder %v271, 19
      %v273 = vsel %vm272, %v263, %v267
      %v274 = vsel %vm272, %v265, %v269
      %v275 = vsel %vm272, %v259, %v263
      %v276 = vsel %vm272, %v261, %v265
      %v277 = vsel %vm272, %v267, %v259
      %v278 = vsel %vm272, %v269, %v261
      %v279 = vld [vmem:[%s1] sm:$0xf]
      %v280 = vld [vmem:[%s1 + $0x4] sm:$0xf]
      %v281 = vpack.c.bf16 %v278, %v277
      %v282 = vpack.c.bf16 %v276, %v275
      %v283 = vpack.c.bf16 %v274, %v273
      %284 = vrot.lane.b32.xlu0 %v251, 18
      %v285 = vpop.permute.xlu0 %284
      %286 = vrot.lane.b32.xlu0 %v254, 18
      %v287 = vpop.permute.xlu0 %286
      %288 = vrot.lane.b32.xlu0 %v252, 18
      %v289 = vpop.permute.xlu0 %288
      %290 = vrot.lane.b32.xlu0 %v255, 18
      %v291 = vpop.permute.xlu0 %290
      %292 = vrot.lane.b32.xlu0 %v253, 18
      %v293 = vpop.permute.xlu0 %292
      %294 = vrot.lane.b32.xlu0 %v256, 18
      %v295 = vpop.permute.xlu0 %294
      %vm296 = vcmp.lt.s32.totalorder %v271, 18
      %v297 = vsel %vm296, %v289, %v293
      %v298 = vsel %vm296, %v291, %v295
      %v299 = vsel %vm296, %v285, %v289
      %v300 = vsel %vm296, %v287, %v291
      %v301 = vsel %vm296, %v293, %v285
      %v302 = vsel %vm296, %v295, %v287
      %s303 = scalar_lea.vmem %s1, 8
      %v304 = vld [vmem:[%s303] sm:$0xf]
      %v305 = vld [vmem:[%s303 + $0x4] sm:$0xf]
      %v306 = vpack.c.bf16 %v302, %v301
      %v307 = vpack.c.bf16 %v300, %v299
      %v308 = vpack.c.bf16 %v298, %v297
      %v311 = vunpack.c.l.b16 %v304
      %v312 = vunpack.c.l.b16 %v305
      %v313 = vpack.c.b16 %v312, %v311
      %vm314 = vcmask 130048
      %v316 = vsel %vm314, %v313, 0
      %318 = vmatprep.subr.bf16.mxu0 %v307
      %319 = vmatpush1.bf16.msra.mxu0 %v306
      %320 = vmatprep.subr.bf16.mxu0 0
      %321 = vmatpush1.bf16.msra.mxu0 0
      %322 = vmatprep.subr.bf16.mxu0 0
      %323 = vmatpush1.bf16.msra.mxu0 0
      %324 = vmatprep.subr.bf16.mxu0 0
      %325 = vmatpush1.bf16.msra.mxu0 0
      %326 = vmatprep.subr.bf16.mxu0 0
      %327 = vmatpush1.bf16.msra.mxu0 0
      %328 = vmatprep.subr.bf16.mxu0 0
      %329 = vmatpush1.bf16.msra.mxu0 0
      %330 = vmatprep.subr.bf16.mxu0 0
      %331 = vmatpush1.bf16.msra.mxu0 0
      %332 = vmatprep.subr.bf16.mxu0 0
      %333 = vmatpush1.bf16.msra.mxu0 0
      %334 = vmatprep.subr.bf16.mxu0 0
      %335 = vmatpush1.bf16.msra.mxu0 0
      %336 = vmatprep.subr.bf16.mxu0 0
      %337 = vmatpush1.bf16.msra.mxu0 0
      %338 = vmatprep.subr.bf16.mxu0 0
      %339 = vmatpush1.bf16.msra.mxu0 0
      %340 = vmatprep.subr.bf16.mxu0 0
      %341 = vmatpush1.bf16.msra.mxu0 0
      %342 = vmatprep.subr.bf16.mxu0 0
      %343 = vmatpush1.bf16.msra.mxu0 0
      %344 = vmatprep.subr.bf16.mxu0 0
      %345 = vmatpush1.bf16.msra.mxu0 0
      %346 = vmatprep.subr.bf16.mxu0 0
      %347 = vmatpush1.bf16.msra.mxu0 0
      %348 = vmatprep.subr.bf16.mxu0 0
      %349 = vmatpush1.bf16.msra.mxu0 0
      %350 = vmatprep.mubr.bf16.mxu0 0
      %351 = vmatmul.mubr.bf16.gmra.mrb[0].mxu0 %v316
      %v352 = vpop.f32.mrb[0].mxu0
      %v353 = vadd.f32 0.0, %v352
      %v354 = vpop.f32.mrb[0].mxu0
      %v355 = vadd.f32 0.0, %v354
      %v356 = vpop.f32.mrb[0].mxu0
      %v357 = vadd.f32 0.0, %v356
      %v358 = vpop.f32.mrb[0].mxu0
      %v359 = vadd.f32 0.0, %v358
      %360 = vdwg.mxu0
      %361 = vmatprep.subr.bf16.mxu0 0
      %362 = vmatpush1.bf16.msra.mxu0 %v308
      %363 = vmatprep.subr.bf16.mxu0 0
      %364 = vmatpush1.bf16.msra.mxu0 0
      %365 = vmatprep.subr.bf16.mxu0 0
      %366 = vmatpush1.bf16.msra.mxu0 0
      %367 = vmatprep.subr.bf16.mxu0 0
      %368 = vmatpush1.bf16.msra.mxu0 0
      %369 = vmatprep.subr.bf16.mxu0 0
      %370 = vmatpush1.bf16.msra.mxu0 0
      %371 = vmatprep.subr.bf16.mxu0 0
      %372 = vmatpush1.bf16.msra.mxu0 0
      %373 = vmatprep.subr.bf16.mxu0 0
      %374 = vmatpush1.bf16.msra.mxu0 0
      %375 = vmatprep.subr.bf16.mxu0 0
      %376 = vmatpush1.bf16.msra.mxu0 0
      %377 = vmatprep.subr.bf16.mxu0 0
      %378 = vmatpush1.bf16.msra.mxu0 0
      %379 = vmatprep.subr.bf16.mxu0 0
      %380 = vmatpush1.bf16.msra.mxu0 0
      %381 = vmatprep.subr.bf16.mxu0 0
      %382 = vmatpush1.bf16.msra.mxu0 0
      %383 = vmatprep.subr.bf16.mxu0 0
      %384 = vmatpush1.bf16.msra.mxu0 0
      %385 = vmatprep.subr.bf16.mxu0 0
      %386 = vmatpush1.bf16.msra.mxu0 0
      %387 = vmatprep.subr.bf16.mxu0 0
      %388 = vmatpush1.bf16.msra.mxu0 0
      %389 = vmatprep.subr.bf16.mxu0 0
      %390 = vmatpush1.bf16.msra.mxu0 0
      %391 = vmatprep.subr.bf16.mxu0 0
      %392 = vmatpush1.bf16.msra.mxu0 0
      %393 = vmatprep.mubr.bf16.mxu0 0
      %394 = vmatmul.mubr.bf16.gmra.mrb[0].mxu0 %v316
      %v395 = vpop.f32.mrb[0].mxu0
      %v396 = vadd.f32 0.0, %v395
      %v397 = vpop.f32.mrb[0].mxu0
      %v398 = vpop.f32.mrb[0].mxu0
      %v399 = vadd.f32 0.0, %v398
      %v400 = vpop.f32.mrb[0].mxu0
      %401 = vdwg.mxu0
      %v404 = vunpack.c.l.b16 %v279
      %v405 = vunpack.c.l.b16 %v280
      %v406 = vpack.c.b16 %v405, %v404
      %v408 = vsel %vm314, %v406, 0
      %410 = vmatprep.subr.bf16.mxu0 %v282
      %411 = vmatpush1.bf16.msra.mxu0 %v281
      %412 = vmatprep.subr.bf16.mxu0 0
      %413 = vmatpush1.bf16.msra.mxu0 0
      %414 = vmatprep.subr.bf16.mxu0 0
      %415 = vmatpush1.bf16.msra.mxu0 0
      %416 = vmatprep.subr.bf16.mxu0 0
      %417 = vmatpush1.bf16.msra.mxu0 0
      %418 = vmatprep.subr.bf16.mxu0 0
      %419 = vmatpush1.bf16.msra.mxu0 0
      %420 = vmatprep.subr.bf16.mxu0 0
      %421 = vmatpush1.bf16.msra.mxu0 0
      %422 = vmatprep.subr.bf16.mxu0 0
      %423 = vmatpush1.bf16.msra.mxu0 0
      %424 = vmatprep.subr.bf16.mxu0 0
      %425 = vmatpush1.bf16.msra.mxu0 0
      %426 = vmatprep.subr.bf16.mxu0 0
      %427 = vmatpush1.bf16.msra.mxu0 0
      %428 = vmatprep.subr.bf16.mxu0 0
      %429 = vmatpush1.bf16.msra.mxu0 0
      %430 = vmatprep.subr.bf16.mxu0 0
      %431 = vmatpush1.bf16.msra.mxu0 0
      %432 = vmatprep.subr.bf16.mxu0 0
      %433 = vmatpush1.bf16.msra.mxu0 0
      %434 = vmatprep.subr.bf16.mxu0 0
      %435 = vmatpush1.bf16.msra.mxu0 0
      %436 = vmatprep.subr.bf16.mxu0 0
      %437 = vmatpush1.bf16.msra.mxu0 0
      %438 = vmatprep.subr.bf16.mxu0 0
      %439 = vmatpush1.bf16.msra.mxu0 0
      %440 = vmatprep.subr.bf16.mxu0 0
      %441 = vmatpush1.bf16.msra.mxu0 0
      %442 = vmatprep.mubr.bf16.mxu0 0
      %443 = vmatmul.mubr.bf16.gmra.mrb[0].mxu0 %v408
      %v444 = vpop.f32.mrb[0].mxu0
      %v445 = vadd.f32 %v353, %v444
      %v446 = vpop.f32.mrb[0].mxu0
      %v447 = vadd.f32 %v355, %v446
      %v448 = vpop.f32.mrb[0].mxu0
      %v449 = vadd.f32 %v357, %v448
      %v450 = vpop.f32.mrb[0].mxu0
      %v451 = vadd.f32 %v359, %v450
      %452 = vdwg.mxu0
      %453 = vmatprep.subr.bf16.mxu0 0
      %454 = vmatpush1.bf16.msra.mxu0 %v283
      %455 = vmatprep.subr.bf16.mxu0 0
      %456 = vmatpush1.bf16.msra.mxu0 0
      %457 = vmatprep.subr.bf16.mxu0 0
      %458 = vmatpush1.bf16.msra.mxu0 0
      %459 = vmatprep.subr.bf16.mxu0 0
      %460 = vmatpush1.bf16.msra.mxu0 0
      %461 = vmatprep.subr.bf16.mxu0 0
      %462 = vmatpush1.bf16.msra.mxu0 0
      %463 = vmatprep.subr.bf16.mxu0 0
      %464 = vmatpush1.bf16.msra.mxu0 0
      %465 = vmatprep.subr.bf16.mxu0 0
      %466 = vmatpush1.bf16.msra.mxu0 0
      %467 = vmatprep.subr.bf16.mxu0 0
      %468 = vmatpush1.bf16.msra.mxu0 0
      %469 = vmatprep.subr.bf16.mxu0 0
      %470 = vmatpush1.bf16.msra.mxu0 0
      %471 = vmatprep.subr.bf16.mxu0 0
      %472 = vmatpush1.bf16.msra.mxu0 0
      %473 = vmatprep.subr.bf16.mxu0 0
      %474 = vmatpush1.bf16.msra.mxu0 0
      %475 = vmatprep.subr.bf16.mxu0 0
      %476 = vmatpush1.bf16.msra.mxu0 0
      %477 = vmatprep.subr.bf16.mxu0 0
      %478 = vmatpush1.bf16.msra.mxu0 0
      %479 = vmatprep.subr.bf16.mxu0 0
      %480 = vmatpush1.bf16.msra.mxu0 0
      %481 = vmatprep.subr.bf16.mxu0 0
      %482 = vmatpush1.bf16.msra.mxu0 0
      %483 = vmatprep.subr.bf16.mxu0 0
      %484 = vmatpush1.bf16.msra.mxu0 0
      %485 = vmatprep.mubr.bf16.mxu0 0
      %486 = vmatmul.mubr.bf16.gmra.mrb[0].mxu0 %v408
      %v487 = vpop.f32.mrb[0].mxu0
      %v488 = vadd.f32 %v396, %v487
      %v489 = vpop.f32.mrb[0].mxu0
      %v490 = vpop.f32.mrb[0].mxu0
      %v491 = vadd.f32 %v399, %v490
      %v492 = vpop.f32.mrb[0].mxu0
      %493 = vdwg.mxu0
      %494 = vrot.lane.b32.xlu0 %v251, 17
      %v495 = vpop.permute.xlu0 %494
      %496 = vrot.lane.b32.xlu0 %v254, 17
      %v497 = vpop.permute.xlu0 %496
      %498 = vrot.lane.b32.xlu0 %v252, 17
      %v499 = vpop.permute.xlu0 %498
      %500 = vrot.lane.b32.xlu0 %v255, 17
      %v501 = vpop.permute.xlu0 %500
      %502 = vrot.lane.b32.xlu0 %v253, 17
      %v503 = vpop.permute.xlu0 %502
      %504 = vrot.lane.b32.xlu0 %v256, 17
      %v505 = vpop.permute.xlu0 %504
      %vm506 = vcmp.lt.s32.totalorder %v271, 17
      %v507 = vsel %vm506, %v499, %v503
      %v508 = vsel %vm506, %v501, %v505
      %v509 = vsel %vm506, %v495, %v499
      %v510 = vsel %vm506, %v497, %v501
      %v511 = vsel %vm506, %v503, %v495
      %v512 = vsel %vm506, %v505, %v497
      %s513 = scalar_lea.vmem %s1, 16
      %v514 = vld [vmem:[%s513] sm:$0xf]
      %v515 = vld [vmem:[%s513 + $0x4] sm:$0xf]
      %v516 = vpack.c.bf16 %v512, %v511
      %v517 = vpack.c.bf16 %v510, %v509
      %v518 = vpack.c.bf16 %v508, %v507
      %v521 = vunpack.c.l.b16 %v514
      %v522 = vunpack.c.l.b16 %v515
      %v523 = vpack.c.b16 %v522, %v521
      %v525 = vsel %vm314, %v523, 0
      %527 = vmatprep.subr.bf16.mxu0 %v517
      %528 = vmatpush1.bf16.msra.mxu0 %v516
      %529 = vmatprep.subr.bf16.mxu0 0
      %530 = vmatpush1.bf16.msra.mxu0 0
      %531 = vmatprep.subr.bf16.mxu0 0
      %532 = vmatpush1.bf16.msra.mxu0 0
      %533 = vmatprep.subr.bf16.mxu0 0
      %534 = vmatpush1.bf16.msra.mxu0 0
      %535 = vmatprep.subr.bf16.mxu0 0
      %536 = vmatpush1.bf16.msra.mxu0 0
      %537 = vmatprep.subr.bf16.mxu0 0
      %538 = vmatpush1.bf16.msra.mxu0 0
      %539 = vmatprep.subr.bf16.mxu0 0
      %540 = vmatpush1.bf16.msra.mxu0 0
      %541 = vmatprep.subr.bf16.mxu0 0
      %542 = vmatpush1.bf16.msra.mxu0 0
      %543 = vmatprep.subr.bf16.mxu0 0
      %544 = vmatpush1.bf16.msra.mxu0 0
      %545 = vmatprep.subr.bf16.mxu0 0
      %546 = vmatpush1.bf16.msra.mxu0 0
      %547 = vmatprep.subr.bf16.mxu0 0
      %548 = vmatpush1.bf16.msra.mxu0 0
      %549 = vmatprep.subr.bf16.mxu0 0
      %550 = vmatpush1.bf16.msra.mxu0 0
      %551 = vmatprep.subr.bf16.mxu0 0
      %552 = vmatpush1.bf16.msra.mxu0 0
      %553 = vmatprep.subr.bf16.mxu0 0
      %554 = vmatpush1.bf16.msra.mxu0 0
      %555 = vmatprep.subr.bf16.mxu0 0
      %556 = vmatpush1.bf16.msra.mxu0 0
      %557 = vmatprep.subr.bf16.mxu0 0
      %558 = vmatpush1.bf16.msra.mxu0 0
      %559 = vmatprep.mubr.bf16.mxu0 0
      %560 = vmatmul.mubr.bf16.gmra.mrb[0].mxu0 %v525
      %v561 = vpop.f32.mrb[0].mxu0
      %v562 = vadd.f32 0.0, %v561
      %v563 = vpop.f32.mrb[0].mxu0
      %v564 = vadd.f32 0.0, %v563
      %v565 = vpop.f32.mrb[0].mxu0
      %v566 = vadd.f32 0.0, %v565
      %v567 = vpop.f32.mrb[0].mxu0
      %v568 = vadd.f32 0.0, %v567
      %569 = vdwg.mxu0
      %570 = vmatprep.subr.bf16.mxu0 0
      %571 = vmatpush1.bf16.msra.mxu0 %v518
      %572 = vmatprep.subr.bf16.mxu0 0
      %573 = vmatpush1.bf16.msra.mxu0 0
      %574 = vmatprep.subr.bf16.mxu0 0
      %575 = vmatpush1.bf16.msra.mxu0 0
      %576 = vmatprep.subr.bf16.mxu0 0
      %577 = vmatpush1.bf16.msra.mxu0 0
      %578 = vmatprep.subr.bf16.mxu0 0
      %579 = vmatpush1.bf16.msra.mxu0 0
      %580 = vmatprep.subr.bf16.mxu0 0
      %581 = vmatpush1.bf16.msra.mxu0 0
      %582 = vmatprep.subr.bf16.mxu0 0
      %583 = vmatpush1.bf16.msra.mxu0 0
      %584 = vmatprep.subr.bf16.mxu0 0
      %585 = vmatpush1.bf16.msra.mxu0 0
      %586 = vmatprep.subr.bf16.mxu0 0
      %587 = vmatpush1.bf16.msra.mxu0 0
      %588 = vmatprep.subr.bf16.mxu0 0
      %589 = vmatpush1.bf16.msra.mxu0 0
      %590 = vmatprep.subr.bf16.mxu0 0
      %591 = vmatpush1.bf16.msra.mxu0 0
      %592 = vmatprep.subr.bf16.mxu0 0
      %593 = vmatpush1.bf16.msra.mxu0 0
      %594 = vmatprep.subr.bf16.mxu0 0
      %595 = vmatpush1.bf16.msra.mxu0 0
      %596 = vmatprep.subr.bf16.mxu0 0
      %597 = vmatpush1.bf16.msra.mxu0 0
      %598 = vmatprep.subr.bf16.mxu0 0
      %599 = vmatpush1.bf16.msra.mxu0 0
      %600 = vmatprep.subr.bf16.mxu0 0
      %601 = vmatpush1.bf16.msra.mxu0 0
      %602 = vmatprep.mubr.bf16.mxu0 0
      %603 = vmatmul.mubr.bf16.gmra.mrb[0].mxu0 %v525
      %v604 = vpop.f32.mrb[0].mxu0
      %v605 = vadd.f32 0.0, %v604
      %v606 = vpop.f32.mrb[0].mxu0
      %v607 = vpop.f32.mrb[0].mxu0
      %v608 = vadd.f32 0.0, %v607
      %v609 = vpop.f32.mrb[0].mxu0
      %610 = vdwg.mxu0
      %v611 = vadd.f32 %v445, %v562
      %v612 = vadd.f32 %v447, %v564
      %v613 = vadd.f32 %v488, %v605
      %v614 = vadd.f32 %v449, %v566
      %v615 = vadd.f32 %v451, %v568
      %v616 = vadd.f32 %v491, %v608
      %617 = vrot.lane.b32.xlu0 %v251, 1
      %v618 = vpop.permute.xlu0 %617
      %619 = vrot.lane.b32.xlu0 %v254, 1
      %v620 = vpop.permute.xlu0 %619
      %621 = vrot.lane.b32.xlu0 %v252, 1
      %v622 = vpop.permute.xlu0 %621
      %623 = vrot.lane.b32.xlu0 %v255, 1
      %v624 = vpop.permute.xlu0 %623
      %625 = vrot.lane.b32.xlu0 %v253, 1
      %v626 = vpop.permute.xlu0 %625
      %627 = vrot.lane.b32.xlu0 %v256, 1
      %v628 = vpop.permute.xlu0 %627
      %vm629 = vcmp.lt.s32.totalorder %v271, 1
      %v630 = vsel %vm629, %v622, %v626
      %v631 = vsel %vm629, %v624, %v628
      %v632 = vsel %vm629, %v618, %v622
      %v633 = vsel %vm629, %v620, %v624
      %v634 = vsel %vm629, %v626, %v618
      %v635 = vsel %vm629, %v628, %v620
      %s636 = scalar_lea.vmem %s1, 24
      %v637 = vld [vmem:[%s636] sm:$0xf]
      %v638 = vld [vmem:[%s636 + $0x4] sm:$0xf]
      %v639 = vpack.c.bf16 %v635, %v634
      %v640 = vpack.c.bf16 %v633, %v632
      %v641 = vpack.c.bf16 %v631, %v630
      %v644 = vunpack.c.l.b16 %v637
      %v645 = vunpack.c.l.b16 %v638
      %v646 = vpack.c.b16 %v645, %v644
      %v648 = vsel %vm314, %v646, 0
      %650 = vmatprep.subr.bf16.mxu0 %v640
      %651 = vmatpush1.bf16.msra.mxu0 %v639
      %652 = vmatprep.subr.bf16.mxu0 0
      %653 = vmatpush1.bf16.msra.mxu0 0
      %654 = vmatprep.subr.bf16.mxu0 0
      %655 = vmatpush1.bf16.msra.mxu0 0
      %656 = vmatprep.subr.bf16.mxu0 0
      %657 = vmatpush1.bf16.msra.mxu0 0
      %658 = vmatprep.subr.bf16.mxu0 0
      %659 = vmatpush1.bf16.msra.mxu0 0
      %660 = vmatprep.subr.bf16.mxu0 0
      %661 = vmatpush1.bf16.msra.mxu0 0
      %662 = vmatprep.subr.bf16.mxu0 0
      %663 = vmatpush1.bf16.msra.mxu0 0
      %664 = vmatprep.subr.bf16.mxu0 0
      %665 = vmatpush1.bf16.msra.mxu0 0
      %666 = vmatprep.subr.bf16.mxu0 0
      %667 = vmatpush1.bf16.msra.mxu0 0
      %668 = vmatprep.subr.bf16.mxu0 0
      %669 = vmatpush1.bf16.msra.mxu0 0
      %670 = vmatprep.subr.bf16.mxu0 0
      %671 = vmatpush1.bf16.msra.mxu0 0
      %672 = vmatprep.subr.bf16.mxu0 0
      %673 = vmatpush1.bf16.msra.mxu0 0
      %674 = vmatprep.subr.bf16.mxu0 0
      %675 = vmatpush1.bf16.msra.mxu0 0
      %676 = vmatprep.subr.bf16.mxu0 0
      %677 = vmatpush1.bf16.msra.mxu0 0
      %678 = vmatprep.subr.bf16.mxu0 0
      %679 = vmatpush1.bf16.msra.mxu0 0
      %680 = vmatprep.subr.bf16.mxu0 0
      %681 = vmatpush1.bf16.msra.mxu0 0
      %682 = vmatprep.mubr.bf16.mxu0 0
      %683 = vmatmul.mubr.bf16.gmra.mrb[0].mxu0 %v648
      %v684 = vpop.f32.mrb[0].mxu0
      %v685 = vadd.f32 0.0, %v684
      %v686 = vpop.f32.mrb[0].mxu0
      %v687 = vadd.f32 0.0, %v686
      %v688 = vpop.f32.mrb[0].mxu0
      %v689 = vadd.f32 0.0, %v688
      %v690 = vpop.f32.mrb[0].mxu0
      %v691 = vadd.f32 0.0, %v690
      %692 = vdwg.mxu0
      %693 = vmatprep.subr.bf16.mxu0 0
      %694 = vmatpush1.bf16.msra.mxu0 %v641
      %695 = vmatprep.subr.bf16.mxu0 0
      %696 = vmatpush1.bf16.msra.mxu0 0
      %697 = vmatprep.subr.bf16.mxu0 0
      %698 = vmatpush1.bf16.msra.mxu0 0
      %699 = vmatprep.subr.bf16.mxu0 0
      %700 = vmatpush1.bf16.msra.mxu0 0
      %701 = vmatprep.subr.bf16.mxu0 0
      %702 = vmatpush1.bf16.msra.mxu0 0
      %703 = vmatprep.subr.bf16.mxu0 0
      %704 = vmatpush1.bf16.msra.mxu0 0
      %705 = vmatprep.subr.bf16.mxu0 0
      %706 = vmatpush1.bf16.msra.mxu0 0
      %707 = vmatprep.subr.bf16.mxu0 0
      %708 = vmatpush1.bf16.msra.mxu0 0
      %709 = vmatprep.subr.bf16.mxu0 0
      %710 = vmatpush1.bf16.msra.mxu0 0
      %711 = vmatprep.subr.bf16.mxu0 0
      %712 = vmatpush1.bf16.msra.mxu0 0
      %713 = vmatprep.subr.bf16.mxu0 0
      %714 = vmatpush1.bf16.msra.mxu0 0
      %715 = vmatprep.subr.bf16.mxu0 0
      %716 = vmatpush1.bf16.msra.mxu0 0
      %717 = vmatprep.subr.bf16.mxu0 0
      %718 = vmatpush1.bf16.msra.mxu0 0
      %719 = vmatprep.subr.bf16.mxu0 0
      %720 = vmatpush1.bf16.msra.mxu0 0
      %721 = vmatprep.subr.bf16.mxu0 0
      %722 = vmatpush1.bf16.msra.mxu0 0
      %723 = vmatprep.subr.bf16.mxu0 0
      %724 = vmatpush1.bf16.msra.mxu0 0
      %725 = vmatprep.mubr.bf16.mxu0 0
      %726 = vmatmul.mubr.bf16.gmra.mrb[0].mxu0 %v648
      %v727 = vpop.f32.mrb[0].mxu0
      %v728 = vadd.f32 0.0, %v727
      %v729 = vpop.f32.mrb[0].mxu0
      %v730 = vpop.f32.mrb[0].mxu0
      %v731 = vadd.f32 0.0, %v730
      %v732 = vpop.f32.mrb[0].mxu0
      %733 = vdwg.mxu0
      %v734 = vadd.f32 %v611, %v685
      %v735 = vadd.f32 %v612, %v687
      %v736 = vadd.f32 %v613, %v728
      %v737 = vadd.f32 %v614, %v689
      %v738 = vadd.f32 %v615, %v691
      %v739 = vadd.f32 %v616, %v731
      %s740 = scalar_lea.vmem %s1, 32
      %v741 = vld [vmem:[%s740] sm:$0xf]
      %v742 = vld [vmem:[%s740 + $0x4] sm:$0xf]
      %v743 = vpack.c.bf16 %v254, %v251
      %v744 = vpack.c.bf16 %v255, %v252
      %v745 = vpack.c.bf16 %v256, %v253
      %v748 = vunpack.c.l.b16 %v741
      %v749 = vunpack.c.l.b16 %v742
      %v750 = vpack.c.b16 %v749, %v748
      %v752 = vsel %vm314, %v750, 0
      %754 = vmatprep.subr.bf16.mxu0 %v744
      %755 = vmatpush1.bf16.msra.mxu0 %v743
      %756 = vmatprep.subr.bf16.mxu0 0
      %757 = vmatpush1.bf16.msra.mxu0 0
      %758 = vmatprep.subr.bf16.mxu0 0
      %759 = vmatpush1.bf16.msra.mxu0 0
      %760 = vmatprep.subr.bf16.mxu0 0
      %761 = vmatpush1.bf16.msra.mxu0 0
      %762 = vmatprep.subr.bf16.mxu0 0
      %763 = vmatpush1.bf16.msra.mxu0 0
      %764 = vmatprep.subr.bf16.mxu0 0
      %765 = vmatpush1.bf16.msra.mxu0 0
      %766 = vmatprep.subr.bf16.mxu0 0
      %767 = vmatpush1.bf16.msra.mxu0 0
      %768 = vmatprep.subr.bf16.mxu0 0
      %769 = vmatpush1.bf16.msra.mxu0 0
      %770 = vmatprep.subr.bf16.mxu0 0
      %771 = vmatpush1.bf16.msra.mxu0 0
      %772 = vmatprep.subr.bf16.mxu0 0
      %773 = vmatpush1.bf16.msra.mxu0 0
      %774 = vmatprep.subr.bf16.mxu0 0
      %775 = vmatpush1.bf16.msra.mxu0 0
      %776 = vmatprep.subr.bf16.mxu0 0
      %777 = vmatpush1.bf16.msra.mxu0 0
      %778 = vmatprep.subr.bf16.mxu0 0
      %779 = vmatpush1.bf16.msra.mxu0 0
      %780 = vmatprep.subr.bf16.mxu0 0
      %781 = vmatpush1.bf16.msra.mxu0 0
      %782 = vmatprep.subr.bf16.mxu0 0
      %783 = vmatpush1.bf16.msra.mxu0 0
      %784 = vmatprep.subr.bf16.mxu0 0
      %785 = vmatpush1.bf16.msra.mxu0 0
      %786 = vmatprep.mubr.bf16.mxu0 0
      %787 = vmatmul.mubr.bf16.gmra.mrb[0].mxu0 %v752
      %v788 = vpop.f32.mrb[0].mxu0
      %v789 = vadd.f32 0.0, %v788
      %v790 = vpop.f32.mrb[0].mxu0
      %v791 = vadd.f32 0.0, %v790
      %v792 = vpop.f32.mrb[0].mxu0
      %v793 = vadd.f32 0.0, %v792
      %v794 = vpop.f32.mrb[0].mxu0
      %v795 = vadd.f32 0.0, %v794
      %796 = vdwg.mxu0
      %797 = vmatprep.subr.bf16.mxu0 0
      %798 = vmatpush1.bf16.msra.mxu0 %v745
      %799 = vmatprep.subr.bf16.mxu0 0
      %800 = vmatpush1.bf16.msra.mxu0 0
      %801 = vmatprep.subr.bf16.mxu0 0
      %802 = vmatpush1.bf16.msra.mxu0 0
      %803 = vmatprep.subr.bf16.mxu0 0
      %804 = vmatpush1.bf16.msra.mxu0 0
      %805 = vmatprep.subr.bf16.mxu0 0
      %806 = vmatpush1.bf16.msra.mxu0 0
      %807 = vmatprep.subr.bf16.mxu0 0
      %808 = vmatpush1.bf16.msra.mxu0 0
      %809 = vmatprep.subr.bf16.mxu0 0
      %810 = vmatpush1.bf16.msra.mxu0 0
      %811 = vmatprep.subr.bf16.mxu0 0
      %812 = vmatpush1.bf16.msra.mxu0 0
      %813 = vmatprep.subr.bf16.mxu0 0
      %814 = vmatpush1.bf16.msra.mxu0 0
      %815 = vmatprep.subr.bf16.mxu0 0
      %816 = vmatpush1.bf16.msra.mxu0 0
      %817 = vmatprep.subr.bf16.mxu0 0
      %818 = vmatpush1.bf16.msra.mxu0 0
      %819 = vmatprep.subr.bf16.mxu0 0
      %820 = vmatpush1.bf16.msra.mxu0 0
      %821 = vmatprep.subr.bf16.mxu0 0
      %822 = vmatpush1.bf16.msra.mxu0 0
      %823 = vmatprep.subr.bf16.mxu0 0
      %824 = vmatpush1.bf16.msra.mxu0 0
      %825 = vmatprep.subr.bf16.mxu0 0
      %826 = vmatpush1.bf16.msra.mxu0 0
      %827 = vmatprep.subr.bf16.mxu0 0
      %828 = vmatpush1.bf16.msra.mxu0 0
      %829 = vmatprep.mubr.bf16.mxu0 0
      %830 = vmatmul.mubr.bf16.gmra.mrb[0].mxu0 %v752
      %v831 = vpop.f32.mrb[0].mxu0
      %v832 = vadd.f32 0.0, %v831
      %v833 = vpop.f32.mrb[0].mxu0
      %v834 = vpop.f32.mrb[0].mxu0
      %v835 = vadd.f32 0.0, %v834
      %v836 = vpop.f32.mrb[0].mxu0
      %837 = vdwg.mxu0
      %v838 = vadd.f32 %v734, %v789
      %v839 = vadd.f32 %v735, %v791
      %v840 = vadd.f32 %v736, %v832
      %v841 = vadd.f32 %v737, %v793
      %v842 = vadd.f32 %v738, %v795
      %v843 = vadd.f32 %v739, %v835
      %844 = vrot.lane.b32.xlu0 %v251, 127
      %v845 = vpop.permute.xlu0 %844
      %846 = vrot.lane.b32.xlu0 %v254, 127
      %v847 = vpop.permute.xlu0 %846
      %848 = vrot.lane.b32.xlu0 %v252, 127
      %v849 = vpop.permute.xlu0 %848
      %850 = vrot.lane.b32.xlu0 %v255, 127
      %v851 = vpop.permute.xlu0 %850
      %852 = vrot.lane.b32.xlu0 %v253, 127
      %v853 = vpop.permute.xlu0 %852
      %854 = vrot.lane.b32.xlu0 %v256, 127
      %v855 = vpop.permute.xlu0 %854
      %vm856 = vcmp.lt.s32.totalorder %v271, 127
      %v857 = vsel %vm856, %v849, %v853
      %v858 = vsel %vm856, %v851, %v855
      %v859 = vsel %vm856, %v845, %v849
      %v860 = vsel %vm856, %v847, %v851
      %v861 = vsel %vm856, %v853, %v845
      %v862 = vsel %vm856, %v855, %v847
      %s863 = scalar_lea.vmem %s1, 40
      %v864 = vld [vmem:[%s863] sm:$0xf]
      %v865 = vld [vmem:[%s863 + $0x4] sm:$0xf]
      %v866 = vpack.c.bf16 %v860, %v859
      %v867 = vpack.c.bf16 %v858, %v857
      %v868 = vpack.c.bf16 %v862, %v861
      %v871 = vunpack.c.l.b16 %v864
      %v872 = vunpack.c.l.b16 %v865
      %v873 = vpack.c.b16 %v872, %v871
      %v875 = vsel %vm314, %v873, 0
      %877 = vmatprep.subr.bf16.mxu0 %v867
      %878 = vmatpush1.bf16.msra.mxu0 %v866
      %879 = vmatprep.subr.bf16.mxu0 0
      %880 = vmatpush1.bf16.msra.mxu0 0
      %881 = vmatprep.subr.bf16.mxu0 0
      %882 = vmatpush1.bf16.msra.mxu0 0
      %883 = vmatprep.subr.bf16.mxu0 0
      %884 = vmatpush1.bf16.msra.mxu0 0
      %885 = vmatprep.subr.bf16.mxu0 0
      %886 = vmatpush1.bf16.msra.mxu0 0
      %887 = vmatprep.subr.bf16.mxu0 0
      %888 = vmatpush1.bf16.msra.mxu0 0
      %889 = vmatprep.subr.bf16.mxu0 0
      %890 = vmatpush1.bf16.msra.mxu0 0
      %891 = vmatprep.subr.bf16.mxu0 0
      %892 = vmatpush1.bf16.msra.mxu0 0
      %893 = vmatprep.subr.bf16.mxu0 0
      %894 = vmatpush1.bf16.msra.mxu0 0
      %895 = vmatprep.subr.bf16.mxu0 0
      %896 = vmatpush1.bf16.msra.mxu0 0
      %897 = vmatprep.subr.bf16.mxu0 0
      %898 = vmatpush1.bf16.msra.mxu0 0
      %899 = vmatprep.subr.bf16.mxu0 0
      %900 = vmatpush1.bf16.msra.mxu0 0
      %901 = vmatprep.subr.bf16.mxu0 0
      %902 = vmatpush1.bf16.msra.mxu0 0
      %903 = vmatprep.subr.bf16.mxu0 0
      %904 = vmatpush1.bf16.msra.mxu0 0
      %905 = vmatprep.subr.bf16.mxu0 0
      %906 = vmatpush1.bf16.msra.mxu0 0
      %907 = vmatprep.subr.bf16.mxu0 0
      %908 = vmatpush1.bf16.msra.mxu0 0
      %909 = vmatprep.mubr.bf16.mxu0 0
      %910 = vmatmul.mubr.bf16.gmra.mrb[0].mxu0 %v875
      %v911 = vpop.f32.mrb[0].mxu0
      %v912 = vadd.f32 0.0, %v911
      %v913 = vpop.f32.mrb[0].mxu0
      %v914 = vadd.f32 0.0, %v913
      %v915 = vpop.f32.mrb[0].mxu0
      %v916 = vadd.f32 0.0, %v915
      %v917 = vpop.f32.mrb[0].mxu0
      %v918 = vadd.f32 0.0, %v917
      %919 = vdwg.mxu0
      %920 = vmatprep.subr.bf16.mxu0 0
      %921 = vmatpush1.bf16.msra.mxu0 %v868
      %922 = vmatprep.subr.bf16.mxu0 0
      %923 = vmatpush1.bf16.msra.mxu0 0
      %924 = vmatprep.subr.bf16.mxu0 0
      %925 = vmatpush1.bf16.msra.mxu0 0
      %926 = vmatprep.subr.bf16.mxu0 0
      %927 = vmatpush1.bf16.msra.mxu0 0
      %928 = vmatprep.subr.bf16.mxu0 0
      %929 = vmatpush1.bf16.msra.mxu0 0
      %930 = vmatprep.subr.bf16.mxu0 0
      %931 = vmatpush1.bf16.msra.mxu0 0
      %932 = vmatprep.subr.bf16.mxu0 0
      %933 = vmatpush1.bf16.msra.mxu0 0
      %934 = vmatprep.subr.bf16.mxu0 0
      %935 = vmatpush1.bf16.msra.mxu0 0
      %936 = vmatprep.subr.bf16.mxu0 0
      %937 = vmatpush1.bf16.msra.mxu0 0
      %938 = vmatprep.subr.bf16.mxu0 0
      %939 = vmatpush1.bf16.msra.mxu0 0
      %940 = vmatprep.subr.bf16.mxu0 0
      %941 = vmatpush1.bf16.msra.mxu0 0
      %942 = vmatprep.subr.bf16.mxu0 0
      %943 = vmatpush1.bf16.msra.mxu0 0
      %944 = vmatprep.subr.bf16.mxu0 0
      %945 = vmatpush1.bf16.msra.mxu0 0
      %946 = vmatprep.subr.bf16.mxu0 0
      %947 = vmatpush1.bf16.msra.mxu0 0
      %948 = vmatprep.subr.bf16.mxu0 0
      %949 = vmatpush1.bf16.msra.mxu0 0
      %950 = vmatprep.subr.bf16.mxu0 0
      %951 = vmatpush1.bf16.msra.mxu0 0
      %952 = vmatprep.mubr.bf16.mxu0 0
      %953 = vmatmul.mubr.bf16.gmra.mrb[0].mxu0 %v875
      %v954 = vpop.f32.mrb[0].mxu0
      %v955 = vadd.f32 0.0, %v954
      %v956 = vpop.f32.mrb[0].mxu0
      %v957 = vpop.f32.mrb[0].mxu0
      %v958 = vadd.f32 0.0, %v957
      %v959 = vpop.f32.mrb[0].mxu0
      %960 = vdwg.mxu0
      %v961 = vadd.f32 %v838, %v912
      %v962 = vadd.f32 %v839, %v914
      %v963 = vadd.f32 %v840, %v955
      %v964 = vadd.f32 %v841, %v916
      %v965 = vadd.f32 %v842, %v918
      %v966 = vadd.f32 %v843, %v958
      %967 = vrot.lane.b32.xlu0 %v251, 111
      %v968 = vpop.permute.xlu0 %967
      %969 = vrot.lane.b32.xlu0 %v254, 111
      %v970 = vpop.permute.xlu0 %969
      %971 = vrot.lane.b32.xlu0 %v252, 111
      %v972 = vpop.permute.xlu0 %971
      %973 = vrot.lane.b32.xlu0 %v255, 111
      %v974 = vpop.permute.xlu0 %973
      %975 = vrot.lane.b32.xlu0 %v253, 111
      %v976 = vpop.permute.xlu0 %975
      %977 = vrot.lane.b32.xlu0 %v256, 111
      %v978 = vpop.permute.xlu0 %977
      %vm979 = vcmp.lt.s32.totalorder %v271, 111
      %v980 = vsel %vm979, %v972, %v976
      %v981 = vsel %vm979, %v974, %v978
      %v982 = vsel %vm979, %v968, %v972
      %v983 = vsel %vm979, %v970, %v974
      %v984 = vsel %vm979, %v976, %v968
      %v985 = vsel %vm979, %v978, %v970
      %s986 = scalar_lea.vmem %s1, 48
      %v987 = vld [vmem:[%s986] sm:$0xf]
      %v988 = vld [vmem:[%s986 + $0x4] sm:$0xf]
      %v989 = vpack.c.bf16 %v983, %v982
      %v990 = vpack.c.bf16 %v981, %v980
      %v991 = vpack.c.bf16 %v985, %v984
      %v994 = vunpack.c.l.b16 %v987
      %v995 = vunpack.c.l.b16 %v988
      %v996 = vpack.c.b16 %v995, %v994
      %v998 = vsel %vm314, %v996, 0
      %1000 = vmatprep.subr.bf16.mxu0 %v990
      %1001 = vmatpush1.bf16.msra.mxu0 %v989
      %1002 = vmatprep.subr.bf16.mxu0 0
      %1003 = vmatpush1.bf16.msra.mxu0 0
      %1004 = vmatprep.subr.bf16.mxu0 0
      %1005 = vmatpush1.bf16.msra.mxu0 0
      %1006 = vmatprep.subr.bf16.mxu0 0
      %1007 = vmatpush1.bf16.msra.mxu0 0
      %1008 = vmatprep.subr.bf16.mxu0 0
      %1009 = vmatpush1.bf16.msra.mxu0 0
      %1010 = vmatprep.subr.bf16.mxu0 0
      %1011 = vmatpush1.bf16.msra.mxu0 0
      %1012 = vmatprep.subr.bf16.mxu0 0
      %1013 = vmatpush1.bf16.msra.mxu0 0
      %1014 = vmatprep.subr.bf16.mxu0 0
      %1015 = vmatpush1.bf16.msra.mxu0 0
      %1016 = vmatprep.subr.bf16.mxu0 0
      %1017 = vmatpush1.bf16.msra.mxu0 0
      %1018 = vmatprep.subr.bf16.mxu0 0
      %1019 = vmatpush1.bf16.msra.mxu0 0
      %1020 = vmatprep.subr.bf16.mxu0 0
      %1021 = vmatpush1.bf16.msra.mxu0 0
      %1022 = vmatprep.subr.bf16.mxu0 0
      %1023 = vmatpush1.bf16.msra.mxu0 0
      %1024 = vmatprep.subr.bf16.mxu0 0
      %1025 = vmatpush1.bf16.msra.mxu0 0
      %1026 = vmatprep.subr.bf16.mxu0 0
      %1027 = vmatpush1.bf16.msra.mxu0 0
      %1028 = vmatprep.subr.bf16.mxu0 0
      %1029 = vmatpush1.bf16.msra.mxu0 0
      %1030 = vmatprep.subr.bf16.mxu0 0
      %1031 = vmatpush1.bf16.msra.mxu0 0
      %1032 = vmatprep.mubr.bf16.mxu0 0
      %1033 = vmatmul.mubr.bf16.gmra.mrb[0].mxu0 %v998
      %v1034 = vpop.f32.mrb[0].mxu0
      %v1035 = vadd.f32 0.0, %v1034
      %v1036 = vpop.f32.mrb[0].mxu0
      %v1037 = vadd.f32 0.0, %v1036
      %v1038 = vpop.f32.mrb[0].mxu0
      %v1039 = vadd.f32 0.0, %v1038
      %v1040 = vpop.f32.mrb[0].mxu0
      %v1041 = vadd.f32 0.0, %v1040
      %1042 = vdwg.mxu0
      %1043 = vmatprep.subr.bf16.mxu0 0
      %1044 = vmatpush1.bf16.msra.mxu0 %v991
      %1045 = vmatprep.subr.bf16.mxu0 0
      %1046 = vmatpush1.bf16.msra.mxu0 0
      %1047 = vmatprep.subr.bf16.mxu0 0
      %1048 = vmatpush1.bf16.msra.mxu0 0
      %1049 = vmatprep.subr.bf16.mxu0 0
      %1050 = vmatpush1.bf16.msra.mxu0 0
      %1051 = vmatprep.subr.bf16.mxu0 0
      %1052 = vmatpush1.bf16.msra.mxu0 0
      %1053 = vmatprep.subr.bf16.mxu0 0
      %1054 = vmatpush1.bf16.msra.mxu0 0
      %1055 = vmatprep.subr.bf16.mxu0 0
      %1056 = vmatpush1.bf16.msra.mxu0 0
      %1057 = vmatprep.subr.bf16.mxu0 0
      %1058 = vmatpush1.bf16.msra.mxu0 0
      %1059 = vmatprep.subr.bf16.mxu0 0
      %1060 = vmatpush1.bf16.msra.mxu0 0
      %1061 = vmatprep.subr.bf16.mxu0 0
      %1062 = vmatpush1.bf16.msra.mxu0 0
      %1063 = vmatprep.subr.bf16.mxu0 0
      %1064 = vmatpush1.bf16.msra.mxu0 0
      %1065 = vmatprep.subr.bf16.mxu0 0
      %1066 = vmatpush1.bf16.msra.mxu0 0
      %1067 = vmatprep.subr.bf16.mxu0 0
      %1068 = vmatpush1.bf16.msra.mxu0 0
      %1069 = vmatprep.subr.bf16.mxu0 0
      %1070 = vmatpush1.bf16.msra.mxu0 0
      %1071 = vmatprep.subr.bf16.mxu0 0
      %1072 = vmatpush1.bf16.msra.mxu0 0
      %1073 = vmatprep.subr.bf16.mxu0 0
      %1074 = vmatpush1.bf16.msra.mxu0 0
      %1075 = vmatprep.mubr.bf16.mxu0 0
      %1076 = vmatmul.mubr.bf16.gmra.mrb[0].mxu0 %v998
      %v1077 = vpop.f32.mrb[0].mxu0
      %v1078 = vadd.f32 0.0, %v1077
      %v1079 = vpop.f32.mrb[0].mxu0
      %v1080 = vpop.f32.mrb[0].mxu0
      %v1081 = vadd.f32 0.0, %v1080
      %v1082 = vpop.f32.mrb[0].mxu0
      %1083 = vdwg.mxu0
      %v1084 = vadd.f32 %v961, %v1035
      %v1085 = vadd.f32 %v962, %v1037
      %v1086 = vadd.f32 %v963, %v1078
      %v1087 = vadd.f32 %v964, %v1039
      %v1088 = vadd.f32 %v965, %v1041
      %v1089 = vadd.f32 %v966, %v1081
      %1090 = vrot.lane.b32.xlu0 %v251, 110
      %v1091 = vpop.permute.xlu0 %1090
      %1092 = vrot.lane.b32.xlu0 %v254, 110
      %v1093 = vpop.permute.xlu0 %1092
      %1094 = vrot.lane.b32.xlu0 %v252, 110
      %v1095 = vpop.permute.xlu0 %1094
      %1096 = vrot.lane.b32.xlu0 %v255, 110
      %v1097 = vpop.permute.xlu0 %1096
      %1098 = vrot.lane.b32.xlu0 %v253, 110
      %v1099 = vpop.permute.xlu0 %1098
      %1100 = vrot.lane.b32.xlu0 %v256, 110
      %v1101 = vpop.permute.xlu0 %1100
      %vm1102 = vcmp.lt.s32.totalorder %v271, 110
      %v1103 = vsel %vm1102, %v1095, %v1099
      %v1104 = vsel %vm1102, %v1097, %v1101
      %v1105 = vsel %vm1102, %v1091, %v1095
      %v1106 = vsel %vm1102, %v1093, %v1097
      %v1107 = vsel %vm1102, %v1099, %v1091
      %v1108 = vsel %vm1102, %v1101, %v1093
      %s1109 = scalar_lea.vmem %s1, 56
      %v1110 = vld [vmem:[%s1109] sm:$0xf]
      %v1111 = vld [vmem:[%s1109 + $0x4] sm:$0xf]
      %v1112 = vpack.c.bf16 %v1106, %v1105
      %v1113 = vpack.c.bf16 %v1104, %v1103
      %v1114 = vpack.c.bf16 %v1108, %v1107
      %v1117 = vunpack.c.l.b16 %v1110
      %v1118 = vunpack.c.l.b16 %v1111
      %v1119 = vpack.c.b16 %v1118, %v1117
      %v1121 = vsel %vm314, %v1119, 0
      %1123 = vmatprep.subr.bf16.mxu0 %v1113
      %1124 = vmatpush1.bf16.msra.mxu0 %v1112
      %1125 = vmatprep.subr.bf16.mxu0 0
      %1126 = vmatpush1.bf16.msra.mxu0 0
      %1127 = vmatprep.subr.bf16.mxu0 0
      %1128 = vmatpush1.bf16.msra.mxu0 0
      %1129 = vmatprep.subr.bf16.mxu0 0
      %1130 = vmatpush1.bf16.msra.mxu0 0
      %1131 = vmatprep.subr.bf16.mxu0 0
      %1132 = vmatpush1.bf16.msra.mxu0 0
      %1133 = vmatprep.subr.bf16.mxu0 0
      %1134 = vmatpush1.bf16.msra.mxu0 0
      %1135 = vmatprep.subr.bf16.mxu0 0
      %1136 = vmatpush1.bf16.msra.mxu0 0
      %1137 = vmatprep.subr.bf16.mxu0 0
      %1138 = vmatpush1.bf16.msra.mxu0 0
      %1139 = vmatprep.subr.bf16.mxu0 0
      %1140 = vmatpush1.bf16.msra.mxu0 0
      %1141 = vmatprep.subr.bf16.mxu0 0
      %1142 = vmatpush1.bf16.msra.mxu0 0
      %1143 = vmatprep.subr.bf16.mxu0 0
      %1144 = vmatpush1.bf16.msra.mxu0 0
      %1145 = vmatprep.subr.bf16.mxu0 0
      %1146 = vmatpush1.bf16.msra.mxu0 0
      %1147 = vmatprep.subr.bf16.mxu0 0
      %1148 = vmatpush1.bf16.msra.mxu0 0
      %1149 = vmatprep.subr.bf16.mxu0 0
      %1150 = vmatpush1.bf16.msra.mxu0 0
      %1151 = vmatprep.subr.bf16.mxu0 0
      %1152 = vmatpush1.bf16.msra.mxu0 0
      %1153 = vmatprep.subr.bf16.mxu0 0
      %1154 = vmatpush1.bf16.msra.mxu0 0
      %1155 = vmatprep.mubr.bf16.mxu0 0
      %1156 = vmatmul.mubr.bf16.gmra.mrb[0].mxu0 %v1121
      %v1157 = vpop.f32.mrb[0].mxu0
      %v1158 = vadd.f32 0.0, %v1157
      %v1159 = vpop.f32.mrb[0].mxu0
      %v1160 = vadd.f32 0.0, %v1159
      %v1161 = vpop.f32.mrb[0].mxu0
      %v1162 = vadd.f32 0.0, %v1161
      %v1163 = vpop.f32.mrb[0].mxu0
      %v1164 = vadd.f32 0.0, %v1163
      %1165 = vdwg.mxu0
      %1166 = vmatprep.subr.bf16.mxu0 0
      %1167 = vmatpush1.bf16.msra.mxu0 %v1114
      %1168 = vmatprep.subr.bf16.mxu0 0
      %1169 = vmatpush1.bf16.msra.mxu0 0
      %1170 = vmatprep.subr.bf16.mxu0 0
      %1171 = vmatpush1.bf16.msra.mxu0 0
      %1172 = vmatprep.subr.bf16.mxu0 0
      %1173 = vmatpush1.bf16.msra.mxu0 0
      %1174 = vmatprep.subr.bf16.mxu0 0
      %1175 = vmatpush1.bf16.msra.mxu0 0
      %1176 = vmatprep.subr.bf16.mxu0 0
      %1177 = vmatpush1.bf16.msra.mxu0 0
      %1178 = vmatprep.subr.bf16.mxu0 0
      %1179 = vmatpush1.bf16.msra.mxu0 0
      %1180 = vmatprep.subr.bf16.mxu0 0
      %1181 = vmatpush1.bf16.msra.mxu0 0
      %1182 = vmatprep.subr.bf16.mxu0 0
      %1183 = vmatpush1.bf16.msra.mxu0 0
      %1184 = vmatprep.subr.bf16.mxu0 0
      %1185 = vmatpush1.bf16.msra.mxu0 0
      %1186 = vmatprep.subr.bf16.mxu0 0
      %1187 = vmatpush1.bf16.msra.mxu0 0
      %1188 = vmatprep.subr.bf16.mxu0 0
      %1189 = vmatpush1.bf16.msra.mxu0 0
      %1190 = vmatprep.subr.bf16.mxu0 0
      %1191 = vmatpush1.bf16.msra.mxu0 0
      %1192 = vmatprep.subr.bf16.mxu0 0
      %1193 = vmatpush1.bf16.msra.mxu0 0
      %1194 = vmatprep.subr.bf16.mxu0 0
      %1195 = vmatpush1.bf16.msra.mxu0 0
      %1196 = vmatprep.subr.bf16.mxu0 0
      %1197 = vmatpush1.bf16.msra.mxu0 0
      %1198 = vmatprep.mubr.bf16.mxu0 0
      %1199 = vmatmul.mubr.bf16.gmra.mrb[0].mxu0 %v1121
      %v1200 = vpop.f32.mrb[0].mxu0
      %v1201 = vadd.f32 0.0, %v1200
      %v1202 = vpop.f32.mrb[0].mxu0
      %v1203 = vpop.f32.mrb[0].mxu0
      %v1204 = vadd.f32 0.0, %v1203
      %v1205 = vpop.f32.mrb[0].mxu0
      %1206 = vdwg.mxu0
      %v1207 = vadd.f32 %v1084, %v1158
      %v1208 = vadd.f32 %v1085, %v1160
      %v1209 = vadd.f32 %v1086, %v1201
      %v1210 = vadd.f32 %v1087, %v1162
      %v1211 = vadd.f32 %v1088, %v1164
      %v1212 = vadd.f32 %v1089, %v1204
      %1213 = vrot.lane.b32.xlu0 %v251, 109
      %v1214 = vpop.permute.xlu0 %1213
      %1215 = vrot.lane.b32.xlu0 %v254, 109
      %v1216 = vpop.permute.xlu0 %1215
      %1217 = vrot.lane.b32.xlu0 %v252, 109
      %v1218 = vpop.permute.xlu0 %1217
      %1219 = vrot.lane.b32.xlu0 %v255, 109
      %v1220 = vpop.permute.xlu0 %1219
      %1221 = vrot.lane.b32.xlu0 %v253, 109
      %v1222 = vpop.permute.xlu0 %1221
      %1223 = vrot.lane.b32.xlu0 %v256, 109
      %v1224 = vpop.permute.xlu0 %1223
      %vm1225 = vcmp.lt.s32.totalorder %v271, 109
      %v1226 = vsel %vm1225, %v1218, %v1222
      %v1227 = vsel %vm1225, %v1220, %v1224
      %v1228 = vsel %vm1225, %v1214, %v1218
      %v1229 = vsel %vm1225, %v1216, %v1220
      %v1230 = vsel %vm1225, %v1222, %v1214
      %v1231 = vsel %vm1225, %v1224, %v1216
      %s1232 = scalar_lea.vmem %s1, 64
      %v1233 = vld [vmem:[%s1232] sm:$0xf]
      %v1234 = vld [vmem:[%s1232 + $0x4] sm:$0xf]
      %v1235 = vpack.c.bf16 %v1229, %v1228
      %v1236 = vpack.c.bf16 %v1227, %v1226
      %v1237 = vpack.c.bf16 %v1231, %v1230
      %v1240 = vunpack.c.l.b16 %v1233
      %v1241 = vunpack.c.l.b16 %v1234
      %v1242 = vpack.c.b16 %v1241, %v1240
      %v1244 = vsel %vm314, %v1242, 0
      %1246 = vmatprep.subr.bf16.mxu0 %v1236
      %1247 = vmatpush1.bf16.msra.mxu0 %v1235
      %1248 = vmatprep.subr.bf16.mxu0 0
      %1249 = vmatpush1.bf16.msra.mxu0 0
      %1250 = vmatprep.subr.bf16.mxu0 0
      %1251 = vmatpush1.bf16.msra.mxu0 0
      %1252 = vmatprep.subr.bf16.mxu0 0
      %1253 = vmatpush1.bf16.msra.mxu0 0
      %1254 = vmatprep.subr.bf16.mxu0 0
      %1255 = vmatpush1.bf16.msra.mxu0 0
      %1256 = vmatprep.subr.bf16.mxu0 0
      %1257 = vmatpush1.bf16.msra.mxu0 0
      %1258 = vmatprep.subr.bf16.mxu0 0
      %1259 = vmatpush1.bf16.msra.mxu0 0
      %1260 = vmatprep.subr.bf16.mxu0 0
      %1261 = vmatpush1.bf16.msra.mxu0 0
      %1262 = vmatprep.subr.bf16.mxu0 0
      %1263 = vmatpush1.bf16.msra.mxu0 0
      %1264 = vmatprep.subr.bf16.mxu0 0
      %1265 = vmatpush1.bf16.msra.mxu0 0
      %1266 = vmatprep.subr.bf16.mxu0 0
      %1267 = vmatpush1.bf16.msra.mxu0 0
      %1268 = vmatprep.subr.bf16.mxu0 0
      %1269 = vmatpush1.bf16.msra.mxu0 0
      %1270 = vmatprep.subr.bf16.mxu0 0
      %1271 = vmatpush1.bf16.msra.mxu0 0
      %1272 = vmatprep.subr.bf16.mxu0 0
      %1273 = vmatpush1.bf16.msra.mxu0 0
      %1274 = vmatprep.subr.bf16.mxu0 0
      %1275 = vmatpush1.bf16.msra.mxu0 0
      %1276 = vmatprep.subr.bf16.mxu0 0
      %1277 = vmatpush1.bf16.msra.mxu0 0
      %1278 = vmatprep.mubr.bf16.mxu0 0
      %1279 = vmatmul.mubr.bf16.gmra.mrb[0].mxu0 %v1244
      %v1280 = vpop.f32.mrb[0].mxu0
      %v1281 = vadd.f32 0.0, %v1280
      %v1282 = vpop.f32.mrb[0].mxu0
      %v1283 = vadd.f32 0.0, %v1282
      %v1284 = vpop.f32.mrb[0].mxu0
      %v1285 = vadd.f32 0.0, %v1284
      %v1286 = vpop.f32.mrb[0].mxu0
      %v1287 = vadd.f32 0.0, %v1286
      %1288 = vdwg.mxu0
      %1289 = vmatprep.subr.bf16.mxu0 0
      %1290 = vmatpush1.bf16.msra.mxu0 %v1237
      %1291 = vmatprep.subr.bf16.mxu0 0
      %1292 = vmatpush1.bf16.msra.mxu0 0
      %1293 = vmatprep.subr.bf16.mxu0 0
      %1294 = vmatpush1.bf16.msra.mxu0 0
      %1295 = vmatprep.subr.bf16.mxu0 0
      %1296 = vmatpush1.bf16.msra.mxu0 0
      %1297 = vmatprep.subr.bf16.mxu0 0
      %1298 = vmatpush1.bf16.msra.mxu0 0
      %1299 = vmatprep.subr.bf16.mxu0 0
      %1300 = vmatpush1.bf16.msra.mxu0 0
      %1301 = vmatprep.subr.bf16.mxu0 0
      %1302 = vmatpush1.bf16.msra.mxu0 0
      %1303 = vmatprep.subr.bf16.mxu0 0
      %1304 = vmatpush1.bf16.msra.mxu0 0
      %1305 = vmatprep.subr.bf16.mxu0 0
      %1306 = vmatpush1.bf16.msra.mxu0 0
      %1307 = vmatprep.subr.bf16.mxu0 0
      %1308 = vmatpush1.bf16.msra.mxu0 0
      %1309 = vmatprep.subr.bf16.mxu0 0
      %1310 = vmatpush1.bf16.msra.mxu0 0
      %1311 = vmatprep.subr.bf16.mxu0 0
      %1312 = vmatpush1.bf16.msra.mxu0 0
      %1313 = vmatprep.subr.bf16.mxu0 0
      %1314 = vmatpush1.bf16.msra.mxu0 0
      %1315 = vmatprep.subr.bf16.mxu0 0
      %1316 = vmatpush1.bf16.msra.mxu0 0
      %1317 = vmatprep.subr.bf16.mxu0 0
      %1318 = vmatpush1.bf16.msra.mxu0 0
      %1319 = vmatprep.subr.bf16.mxu0 0
      %1320 = vmatpush1.bf16.msra.mxu0 0
      %1321 = vmatprep.mubr.bf16.mxu0 0
      %1322 = vmatmul.mubr.bf16.gmra.mrb[0].mxu0 %v1244
      %v1323 = vpop.f32.mrb[0].mxu0
      %v1324 = vadd.f32 0.0, %v1323
      %v1325 = vpop.f32.mrb[0].mxu0
      %v1326 = vpop.f32.mrb[0].mxu0
      %v1327 = vadd.f32 0.0, %v1326
      %v1328 = vpop.f32.mrb[0].mxu0
      %1329 = vdwg.mxu0
      %v1330 = vadd.f32 %v1207, %v1281
      %v1331 = vadd.f32 %v1208, %v1283
      %v1332 = vadd.f32 %v1209, %v1324
      %v1333 = vadd.f32 %v1210, %v1285
      %v1334 = vadd.f32 %v1211, %v1287
      %v1335 = vadd.f32 %v1212, %v1327
      %v1337 = vlaneseq
      %v1338 = vshrl.u32 %v1337, 7
      %v1339 = vsub.s32 0, %v1338
      %v1340 = vrot.slane %v257, %v1339
      %v1341 = vlaneseq
      %v1342 = vshrl.u32 %v1341, 7
      %v1343 = vsub.s32 1, %v1342
      %v1344 = vrot.slane %v257, %v1343
      %v1345 = vlaneseq
      %v1346 = vshrl.u32 %v1345, 7
      %v1347 = vsub.s32 2, %v1346
      %v1348 = vrot.slane %v257, %v1347
      %v1352 = vmul.f32 %v1330, %v1340
      %v1353 = vmul.f32 %v1331, %v1344
      %v1354 = vmul.f32 %v1332, %v1348
      %v1355 = vmul.f32 %v1333, %v1340
      %v1356 = vmul.f32 %v1334, %v1344
      %v1357 = vmul.f32 %v1335, %v1348
      %v1358 = vpack.c.bf16 %v1333, %v1330
      %v1359 = vpack.c.bf16 %v1334, %v1331
      %v1360 = vpack.c.bf16 %v1335, %v1332
      %v1364 = vunpack.c.l.b16 %v1358
      %v1365 = vunpack.c.l.b16 %v1359
      %v1366 = vunpack.c.l.b16 %v1360
      %v1367 = vunpack.c.h.b16 %v1358
      %v1368 = vunpack.c.h.b16 %v1359
      %v1369 = vunpack.c.h.b16 %v1360
      %v1370 = vpack.c.b16 %v1365, %v1364
      %v1371 = vpack.c.b16 %v1366, %v1366
      %v1372 = vpack.c.b16 %v1368, %v1367
      %v1373 = vpack.c.b16 %v1369, %v1369
      %1378 = vst [vmem:[%s239] sm:$0xff] %v1370
      %1379 = vst [vmem:[%s239 + $0x8] sm:$0xf] %v1371
      %1380 = vst [vmem:[%s239 + $0xc] sm:$0xff] %v1372
      %1381 = vst [vmem:[%s239 + $0x14] sm:$0xf] %v1373
      %v1382 = vadd.f32 %v1352, %v1353
      %v1383 = vadd.f32 %v1382, %v1354
      %1384 = vadd.xlane.f32.xlu0 %v1383
      %v1385 = vpop.xlane.xlu0 %1384
      %v1386 = vadd.f32 %v1355, %v1356
      %v1387 = vadd.f32 %v1386, %v1357
      %1388 = vadd.xlane.f32.xlu0 %v1387
      %v1389 = vpop.xlane.xlu0 %1388
      %vm1390 = vcmask 7168
      %1391 = vst.msk [vmem:[%s244] sm:$0xff] %vm1390, %v1385
      %1392 = vst.msk [vmem:[%s244 + $0x8] sm:$0xff] %vm1390, %v1389
      %v1393 = vmul.f32 %v1352, %v1352
      %v1394 = vmul.f32 %v1353, %v1353
      %v1395 = vmul.f32 %v1354, %v1354
      %v1396 = vmul.f32 %v1355, %v1355
      %v1397 = vmul.f32 %v1356, %v1356
      %v1398 = vmul.f32 %v1357, %v1357
      %v1399 = vadd.f32 %v1393, %v1394
      %v1400 = vadd.f32 %v1399, %v1395
      %1401 = vadd.xlane.f32.xlu0 %v1400
      %v1402 = vpop.xlane.xlu0 %1401
      %v1403 = vadd.f32 %v1396, %v1397
      %v1404 = vadd.f32 %v1403, %v1398
      %1405 = vadd.xlane.f32.xlu0 %v1404
      %v1406 = vpop.xlane.xlu0 %1405
      %1407 = vst.msk [vmem:[%s249] sm:$0xff] %vm1390, %v1402
      %1408 = vst.msk [vmem:[%s249 + $0x8] sm:$0xff] %vm1390, %v1406
      %p1409 = scmp.lt.s32.totalorder %s17, 1
      %s1410 = scalar_select %p1409, %s17, 1
      %s1411 = smul.addr %s1410, 6
      %s1412 = smul.addr %s1411, 4
      %s1413 = scalar_lea.vmem %s3, %s1412
      %p1414 = scmp.lt.s32.totalorder %s17, 1
      %s1415 = scalar_select %p1414, %s17, 1
      %s1416 = smul.addr %s1415, 2
      %s1417 = smul.addr %s1416, 8
      %s1418 = scalar_lea.vmem %s4, %s1417
      %p1419 = scmp.lt.s32.totalorder %s17, 1
      %s1420 = scalar_select %p1419, %s17, 1
      %s1421 = smul.addr %s1420, 2
      %s1422 = smul.addr %s1421, 8
      %s1423 = scalar_lea.vmem %s5, %s1422
      // Predicated region
      $region33: #{res_block_forward.3} parent=31 // pred_check
        %p1424 = pneg %p103
      $region34: #{res_block_forward.3} parent=31 // pred_check_branch
        %1426 = sbr.rel (%p1424) target = $region36
      $region35: #{res_block_forward.3} parent=31 // pred_region
        _
      $region36: #{res_block_forward.3} parent=31 // pred_fallthru
        _
      // Predicated region
      $region37: #{res_block_forward.3} parent=31 // pred_check
        %p1427 = pneg %p129
      $region38: #{res_block_forward.3} parent=31 // pred_check_branch
        %1429 = sbr.rel (%p1427) target = $region40
      $region39: #{res_block_forward.3} parent=31 // pred_region
        _
      $region40: #{res_block_forward.3} parent=31 // pred_fallthru
        _
      // Predicated region
      $region41: #{res_block_forward.3} parent=31 // pred_check
        %p1430 = pneg %p155
      $region42: #{res_block_forward.3} parent=31 // pred_check_branch
        %1432 = sbr.rel (%p1430) target = $region44
      $region43: #{res_block_forward.3} parent=31 // pred_region
        _
      $region44: #{res_block_forward.3} parent=31 // pred_fallthru
        _
    $region32: #{res_block_forward.3} parent=5 // pred_fallthru
      _
    %p1433 = scmp.le.s32.totalorder 2, %s12
    // Predicated region
    $region45: #{res_block_forward.3} parent=5 // pred_check
      %p1434 = pneg %p1433
    $region46: #{res_block_forward.3} parent=5 // pred_check_branch
      %1436 = sbr.rel (%p1434) target = $region48
    $region47: #{res_block_forward.3} parent=5 // pred_region
      %s1437 = ssub.s32 %s12, 2
      // Predicated region
      $region49: #{res_block_forward.3} parent=47 // pred_check
        %p1438 = pneg %p109
      $region50: #{res_block_forward.3} parent=47 // pred_check_branch
        %1440 = sbr.rel (%p1438) target = $region52
      $region51: #{res_block_forward.3} parent=47 // pred_region
        %p1441 = scmp.lt.s32.totalorder %s18, 1
        %s1442 = scalar_select %p1441, %s18, 1
        %s1443 = smul.addr %s1442, 6
        %s1444 = smul.addr %s1443, 4
        %s1445 = scalar_lea.vmem %s3, %s1444
      $region52: #{res_block_forward.3} parent=47 // pred_fallthru
        _
      // Predicated region
      $region53: #{res_block_forward.3} parent=47 // pred_check
        %p1446 = pneg %p135
      $region54: #{res_block_forward.3} parent=47 // pred_check_branch
        %1448 = sbr.rel (%p1446) target = $region56
      $region55: #{res_block_forward.3} parent=47 // pred_region
        %p1449 = scmp.lt.s32.totalorder %s18, 1
        %s1450 = scalar_select %p1449, %s18, 1
        %s1451 = smul.addr %s1450, 2
        %s1452 = smul.addr %s1451, 8
        %s1453 = scalar_lea.vmem %s4, %s1452
      $region56: #{res_block_forward.3} parent=47 // pred_fallthru
        _
      // Predicated region
      $region57: #{res_block_forward.3} parent=47 // pred_check
        %p1454 = pneg %p161
      $region58: #{res_block_forward.3} parent=47 // pred_check_branch
        %1456 = sbr.rel (%p1454) target = $region60
      $region59: #{res_block_forward.3} parent=47 // pred_region
        %p1457 = scmp.lt.s32.totalorder %s18, 1
        %s1458 = scalar_select %p1457, %s18, 1
        %s1459 = smul.addr %s1458, 2
        %s1460 = smul.addr %s1459, 8
        %s1461 = scalar_lea.vmem %s5, %s1460
      $region60: #{res_block_forward.3} parent=47 // pred_fallthru
        _
    $region48: #{res_block_forward.3} parent=5 // pred_fallthru
      _
  $region6: #{res_block_forward.3} parent=0 // loop_footer
    %s16 = sadd.s32 1, %s12
  $region7: #{res_block_forward.3} parent=0 // loop_footer_branch
    %11 = sbr.rel target = $region3
  $region8: #{res_block_forward.3} parent=0 // loop_exit
    _

// kernel: res_block_forward.4
$region0: #{res_block_forward.4}
  #allocation0 [shape = 'u32[]', space=smem, size = 0x4, offset = 0x4, fixed_abs, tag = 'smem constant byte address 0x4 - core index']
  #allocation1 [shape = 'u32[144,128]{1,0:T(1,128)}', space=vmem, size = 0x12000, scoped, tag = 'internal scratch']
  %s0 = inlined_call_operand.vmem [shape: bf16[2,16,384], index: 0, kind: input, shape index: {}]
  %s1 = inlined_call_operand.vmem [shape: bf16[9,16,16], index: 1, kind: input, shape index: {}]
  %s2 = inlined_call_operand.vmem [shape: f32[16,1], index: 2, kind: input, shape index: {}]
  %s3 = inlined_call_operand.vmem [shape: f32[16,1], index: 3, kind: input, shape index: {}]
  %s4 = inlined_call_operand.vmem [shape: f32[1,384], index: 4, kind: input, shape index: {}]
  %s5 = inlined_call_operand.vmem [shape: bf16[2,16,384], index: 5, kind: output, shape index: {0}]
  %s6 = inlined_call_operand.vmem [shape: f32[2,16,1], index: 6, kind: output, shape index: {1}]
  %s7 = inlined_call_operand.vmem [shape: f32[2,16,1], index: 7, kind: output, shape index: {2}]
  %8 = xla_tuple %s5, %s6, %s7
  %s9 = sld [smem:[#allocation0]]
  $region69: #{res_block_forward.4} parent=0
    _
  %s11 = ssub.s32 1, %s9
  %s12 = scalar_select 0, %s11, %s9
  loop: start=0, step=1, limit=4
  $region2: #{res_block_forward.4} parent=0 // loop_pre_header
    _
  $region3: #{res_block_forward.4} parent=0 // loop_header
    %s14 = sphi 0, %s18
    %p15 = scmp.ge.s32.totalorder %s14, 4
    %s24 = sphi 0, %s26
    %s27 = sphi 0, %s24
    %s28 = sphi 0, %s27
    %s44 = sphi 0, %s28
    %s48 = sphi 0, %s48
    %s50 = sphi 0, %s48
    %s51 = sphi 0, %s50
    %s65 = sphi 0, %s51
    %s69 = sphi 0, %s69
    %s71 = sphi 0, %s69
    %s72 = sphi 0, %s71
    %s86 = sphi 0, %s72
    %s90 = sphi 0, %s90
    %s92 = sphi 0, %s90
    %s93 = sphi 0, %s92
    %s107 = sphi 0, %s93
    %s111 = sphi 0, %s111
    %s113 = sphi 0, %s111
    %s114 = sphi 0, %s113
    %s128 = sphi 0, %s114
    %s134 = sphi 0, %s136
    %s137 = sphi 0, %s134
    %s138 = sphi 0, %s137
    %s154 = sphi 0, %s138
    %s160 = sphi 0, %s162
    %s163 = sphi 0, %s160
    %s164 = sphi 0, %s163
    %s180 = sphi 0, %s164
    %s186 = sphi 0, %s188
    %s189 = sphi 0, %s186
    %s190 = sphi 0, %s189
    %s206 = sphi 0, %s190
  $region4: #{res_block_forward.4} parent=0 // loop_header_branch
    %17 = sbr.rel (%p15) target = $region8
  $region5: #{res_block_forward.4} parent=0 // loop_body
    %s19 = ssub.s32 %s14, 1
    %s20 = ssub.s32 %s14, 2
    %s21 = sadd.s32 %s14, 1
    %s22 = ssub.s32 %s14, %s21
    %p23 = scmp.eq.s32.totalorder %s22, 0
    %s25 = sadd.s32 %s24, 1
    %s26 = scalar_select %p23, %s24, %s25
    %p29 = pneg %p23
    %p30 = scmp.eq.s32.totalorder %s14, 1
    %p31 = por %p29, %p30
    %p32 = scmp.ne.s32.totalorder %s24, %s27
    %p33 = scmp.eq.s32.totalorder %s14, 0
    %p34 = por %p32, %p33
    %p35 = scmp.ne.s32.totalorder %s24, %s27
    %p36 = scmp.eq.s32.totalorder %s19, 1
    %p37 = por %p35, %p36
    %p38 = scmp.ne.s32.totalorder %s27, %s28
    %p39 = scmp.eq.s32.totalorder %s19, 0
    %p40 = por %p38, %p39
    %p41 = scmp.ne.s32.totalorder %s27, %s28
    %p42 = scmp.eq.s32.totalorder %s20, 1
    %p43 = por %p41, %p42
    %p45 = scmp.ne.s32.totalorder %s28, %s44
    %p46 = scmp.eq.s32.totalorder %s20, 0
    %p47 = por %p45, %p46
    %s49 = sadd.s32 %s48, 1
    %p52 = scmp.eq.s32.totalorder %s14, 1
    %p53 = scmp.ne.s32.totalorder %s48, %s50
    %p54 = scmp.eq.s32.totalorder %s14, 0
    %p55 = por %p53, %p54
    %p56 = scmp.ne.s32.totalorder %s48, %s50
    %p57 = scmp.eq.s32.totalorder %s19, 1
    %p58 = por %p56, %p57
    %p59 = scmp.ne.s32.totalorder %s50, %s51
    %p60 = scmp.eq.s32.totalorder %s19, 0
    %p61 = por %p59, %p60
    %p62 = scmp.ne.s32.totalorder %s50, %s51
    %p63 = scmp.eq.s32.totalorder %s20, 1
    %p64 = por %p62, %p63
    %p66 = scmp.ne.s32.totalorder %s51, %s65
    %p67 = scmp.eq.s32.totalorder %s20, 0
    %p68 = por %p66, %p67
    %s70 = sadd.s32 %s69, 1
    %p73 = scmp.eq.s32.totalorder %s14, 1
    %p74 = scmp.ne.s32.totalorder %s69, %s71
    %p75 = scmp.eq.s32.totalorder %s14, 0
    %p76 = por %p74, %p75
    %p77 = scmp.ne.s32.totalorder %s69, %s71
    %p78 = scmp.eq.s32.totalorder %s19, 1
    %p79 = por %p77, %p78
    %p80 = scmp.ne.s32.totalorder %s71, %s72
    %p81 = scmp.eq.s32.totalorder %s19, 0
    %p82 = por %p80, %p81
    %p83 = scmp.ne.s32.totalorder %s71, %s72
    %p84 = scmp.eq.s32.totalorder %s20, 1
    %p85 = por %p83, %p84
    %p87 = scmp.ne.s32.totalorder %s72, %s86
    %p88 = scmp.eq.s32.totalorder %s20, 0
    %p89 = por %p87, %p88
    %s91 = sadd.s32 %s90, 1
    %p94 = scmp.eq.s32.totalorder %s14, 1
    %p95 = scmp.ne.s32.totalorder %s90, %s92
    %p96 = scmp.eq.s32.totalorder %s14, 0
    %p97 = por %p95, %p96
    %p98 = scmp.ne.s32.totalorder %s90, %s92
    %p99 = scmp.eq.s32.totalorder %s19, 1
    %p100 = por %p98, %p99
    %p101 = scmp.ne.s32.totalorder %s92, %s93
    %p102 = scmp.eq.s32.totalorder %s19, 0
    %p103 = por %p101, %p102
    %p104 = scmp.ne.s32.totalorder %s92, %s93
    %p105 = scmp.eq.s32.totalorder %s20, 1
    %p106 = por %p104, %p105
    %p108 = scmp.ne.s32.totalorder %s93, %s107
    %p109 = scmp.eq.s32.totalorder %s20, 0
    %p110 = por %p108, %p109
    %s112 = sadd.s32 %s111, 1
    %p115 = scmp.eq.s32.totalorder %s14, 1
    %p116 = scmp.ne.s32.totalorder %s111, %s113
    %p117 = scmp.eq.s32.totalorder %s14, 0
    %p118 = por %p116, %p117
    %p119 = scmp.ne.s32.totalorder %s111, %s113
    %p120 = scmp.eq.s32.totalorder %s19, 1
    %p121 = por %p119, %p120
    %p122 = scmp.ne.s32.totalorder %s113, %s114
    %p123 = scmp.eq.s32.totalorder %s19, 0
    %p124 = por %p122, %p123
    %p125 = scmp.ne.s32.totalorder %s113, %s114
    %p126 = scmp.eq.s32.totalorder %s20, 1
    %p127 = por %p125, %p126
    %p129 = scmp.ne.s32.totalorder %s114, %s128
    %p130 = scmp.eq.s32.totalorder %s20, 0
    %p131 = por %p129, %p130
    %s132 = ssub.s32 %s14, %s21
    %p133 = scmp.eq.s32.totalorder %s132, 0
    %s135 = sadd.s32 %s134, 1
    %s136 = scalar_select %p133, %s134, %s135
    %p139 = pneg %p133
    %p140 = scmp.eq.s32.totalorder %s14, 1
    %p141 = por %p139, %p140
    %p142 = scmp.ne.s32.totalorder %s134, %s137
    %p143 = scmp.eq.s32.totalorder %s14, 0
    %p144 = por %p142, %p143
    %p145 = scmp.ne.s32.totalorder %s134, %s137
    %p146 = scmp.eq.s32.totalorder %s19, 1
    %p147 = por %p145, %p146
    %p148 = scmp.ne.s32.totalorder %s137, %s138
    %p149 = scmp.eq.s32.totalorder %s19, 0
    %p150 = por %p148, %p149
    %p151 = scmp.ne.s32.totalorder %s137, %s138
    %p152 = scmp.eq.s32.totalorder %s20, 1
    %p153 = por %p151, %p152
    %p155 = scmp.ne.s32.totalorder %s138, %s154
    %p156 = scmp.eq.s32.totalorder %s20, 0
    %p157 = por %p155, %p156
    %s158 = ssub.s32 %s14, %s21
    %p159 = scmp.eq.s32.totalorder %s158, 0
    %s161 = sadd.s32 %s160, 1
    %s162 = scalar_select %p159, %s160, %s161
    %p165 = pneg %p159
    %p166 = scmp.eq.s32.totalorder %s14, 1
    %p167 = por %p165, %p166
    %p168 = scmp.ne.s32.totalorder %s160, %s163
    %p169 = scmp.eq.s32.totalorder %s14, 0
    %p170 = por %p168, %p169
    %p171 = scmp.ne.s32.totalorder %s160, %s163
    %p172 = scmp.eq.s32.totalorder %s19, 1
    %p173 = por %p171, %p172
    %p174 = scmp.ne.s32.totalorder %s163, %s164
    %p175 = scmp.eq.s32.totalorder %s19, 0
    %p176 = por %p174, %p175
    %p177 = scmp.ne.s32.totalorder %s163, %s164
    %p178 = scmp.eq.s32.totalorder %s20, 1
    %p179 = por %p177, %p178
    %p181 = scmp.ne.s32.totalorder %s164, %s180
    %p182 = scmp.eq.s32.totalorder %s20, 0
    %p183 = por %p181, %p182
    %s184 = ssub.s32 %s14, %s21
    %p185 = scmp.eq.s32.totalorder %s184, 0
    %s187 = sadd.s32 %s186, 1
    %s188 = scalar_select %p185, %s186, %s187
    %p191 = pneg %p185
    %p192 = scmp.eq.s32.totalorder %s14, 1
    %p193 = por %p191, %p192
    %p194 = scmp.ne.s32.totalorder %s186, %s189
    %p195 = scmp.eq.s32.totalorder %s14, 0
    %p196 = por %p194, %p195
    %p197 = scmp.ne.s32.totalorder %s186, %s189
    %p198 = scmp.eq.s32.totalorder %s19, 1
    %p199 = por %p197, %p198
    %p200 = scmp.ne.s32.totalorder %s189, %s190
    %p201 = scmp.eq.s32.totalorder %s19, 0
    %p202 = por %p200, %p201
    %p203 = scmp.ne.s32.totalorder %s189, %s190
    %p204 = scmp.eq.s32.totalorder %s20, 1
    %p205 = por %p203, %p204
    %p207 = scmp.ne.s32.totalorder %s190, %s206
    %p208 = scmp.eq.s32.totalorder %s20, 0
    %p209 = por %p207, %p208
    %p210 = scmp.le.s32.totalorder 1, %s14
    %p211 = scmp.lt.s32.totalorder %s14, 3
    %p212 = pnand %p210, %p211
    %p213 = pneg %p212
    // Predicated region
    $region9: #{res_block_forward.4} parent=5 // pred_check
      _
    $region10: #{res_block_forward.4} parent=5 // pred_check_branch
      %215 = sbr.rel (%p212) target = $region12
    $region11: #{res_block_forward.4} parent=5 // pred_region
      %s216 = ssub.s32 %s14, 1
      // Predicated region
      $region13: #{res_block_forward.4} parent=11 // pred_check
        %p217 = pneg %p61
      $region14: #{res_block_forward.4} parent=11 // pred_check_branch
        %219 = sbr.rel (%p217) target = $region16
      $region15: #{res_block_forward.4} parent=11 // pred_region
        _
      $region16: #{res_block_forward.4} parent=11 // pred_fallthru
        _
      // Predicated region
      $region17: #{res_block_forward.4} parent=11 // pred_check
        %p220 = pneg %p82
      $region18: #{res_block_forward.4} parent=11 // pred_check_branch
        %222 = sbr.rel (%p220) target = $region20
      $region19: #{res_block_forward.4} parent=11 // pred_region
        _
      $region20: #{res_block_forward.4} parent=11 // pred_fallthru
        _
      // Predicated region
      $region21: #{res_block_forward.4} parent=11 // pred_check
        %p223 = pneg %p103
      $region22: #{res_block_forward.4} parent=11 // pred_check_branch
        %225 = sbr.rel (%p223) target = $region24
      $region23: #{res_block_forward.4} parent=11 // pred_region
        _
      $region24: #{res_block_forward.4} parent=11 // pred_fallthru
        _
      // Predicated region
      $region25: #{res_block_forward.4} parent=11 // pred_check
        %p226 = pneg %p124
      $region26: #{res_block_forward.4} parent=11 // pred_check_branch
        %228 = sbr.rel (%p226) target = $region28
      $region27: #{res_block_forward.4} parent=11 // pred_region
        _
      $region28: #{res_block_forward.4} parent=11 // pred_fallthru
        _
    $region12: #{res_block_forward.4} parent=5 // pred_fallthru
      _
    %p229 = scmp.lt.s32.totalorder %s14, 2
    // Predicated region
    $region29: #{res_block_forward.4} parent=5 // pred_check
      %p230 = pneg %p229
    $region30: #{res_block_forward.4} parent=5 // pred_check_branch
      %232 = sbr.rel (%p230) target = $region32
    $region31: #{res_block_forward.4} parent=5 // pred_region
      // Predicated region
      $region33: #{res_block_forward.4} parent=31 // pred_check
        %p233 = pneg %p34
      $region34: #{res_block_forward.4} parent=31 // pred_check_branch
        %235 = sbr.rel (%p233) target = $region36
      $region35: #{res_block_forward.4} parent=31 // pred_region
        %p236 = scmp.lt.s32.totalorder %s14, 1
        %s237 = scalar_select %p236, %s14, 1
        %s238 = smul.addr %s237, 6
        %s239 = smul.addr %s238, 4
        %s240 = scalar_lea.vmem %s0, %s239
      $region36: #{res_block_forward.4} parent=31 // pred_fallthru
        _
    $region32: #{res_block_forward.4} parent=5 // pred_fallthru
      _
    %p241 = scmp.le.s32.totalorder 1, %s14
    %p242 = scmp.lt.s32.totalorder %s14, 3
    %p243 = pnand %p241, %p242
    %p244 = pneg %p243
    // Predicated region
    $region37: #{res_block_forward.4} parent=5 // pred_check
      _
    $region38: #{res_block_forward.4} parent=5 // pred_check_branch
      %246 = sbr.rel (%p243) target = $region40
    $region39: #{res_block_forward.4} parent=5 // pred_region
      %s247 = ssub.s32 %s14, 1
      %p248 = scmp.lt.s32.totalorder %s19, 1
      %s249 = scalar_select %p248, %s19, 1
      %s250 = smul.addr %s249, 6
      %s251 = smul.addr %s250, 4
      %s252 = scalar_lea.vmem %s0, %s251
      %p253 = pneg %p40
      %p254 = pneg %p37
      %p255 = pneg %p61
      %p256 = pneg %p58
      %p257 = pneg %p82
      %p258 = pneg %p79
      %p259 = pneg %p103
      %p260 = pneg %p100
      %p261 = pneg %p124
      %p262 = pneg %p121
      %p263 = pneg %p150
      %p264 = pneg %p147
      %p265 = scmp.lt.s32.totalorder %s19, 1
      %s266 = scalar_select %p265, %s19, 1
      %s267 = smul.addr %s266, 6
      %s268 = smul.addr %s267, 4
      %s269 = scalar_lea.vmem %s5, %s268
      %p270 = pneg %p176
      %p271 = pneg %p173
      %p272 = scmp.lt.s32.totalorder %s19, 1
      %s273 = scalar_select %p272, %s19, 1
      %s274 = smul.addr %s273, 2
      %s275 = smul.addr %s274, 8
      %s276 = scalar_lea.vmem %s6, %s275
      %p277 = pneg %p202
      %p278 = pneg %p199
      %p279 = scmp.lt.s32.totalorder %s19, 1
      %s280 = scalar_select %p279, %s19, 1
      %s281 = smul.addr %s280, 2
      %s282 = smul.addr %s281, 8
      %s283 = scalar_lea.vmem %s7, %s282
      %p284 = scmp.lt.s32.totalorder %s19, 1
      %s285 = scalar_select %p284, %s19, 1
      %s286 = smul.addr %s285, 6
      %s287 = smul.addr %s286, 4
      %s288 = scalar_lea.vmem %s0, %s287
      %p289 = scmp.lt.s32.totalorder %s19, 1
      %s290 = scalar_select %p289, %s19, 1
      %s291 = smul.addr %s290, 6
      %s292 = smul.addr %s291, 4
      %s293 = scalar_lea.vmem %s5, %s292
      %p294 = scmp.lt.s32.totalorder %s19, 1
      %s295 = scalar_select %p294, %s19, 1
      %s296 = smul.addr %s295, 2
      %s297 = smul.addr %s296, 8
      %s298 = scalar_lea.vmem %s6, %s297
      %p299 = scmp.lt.s32.totalorder %s19, 1
      %s300 = scalar_select %p299, %s19, 1
      %s301 = smul.addr %s300, 2
      %s302 = smul.addr %s301, 8
      %s303 = scalar_lea.vmem %s7, %s302
      %v305 = vld [vmem:[%s4] sm:$0x7]
      %v306 = vld [vmem:[%s288] sm:$0xff]
      %v307 = vld [vmem:[%s288 + $0x8] sm:$0xf]
      %v308 = vld [vmem:[%s288 + $0xc] sm:$0xff]
      %v309 = vld [vmem:[%s288 + $0x14] sm:$0xf]
      %v310 = vunpack.c.l.bf16 %v306
      %v311 = vunpack.c.h.bf16 %v306
      %v312 = vunpack.c.l.bf16 %v307
      %v313 = vunpack.c.l.bf16 %v308
      %v314 = vunpack.c.h.bf16 %v308
      %v315 = vunpack.c.l.bf16 %v309
      %v316 = vld [vmem:[%s2] sm:$0xff]
      %v317 = vld [vmem:[%s2 + $0x8] sm:$0xff]
      %319 = vset.pattern.permute.xlu0 0
      %320 = vperm.xlu0 %319, %v316
      %v321 = vpop.permute.xlu0 %320
      %324 = vset.pattern.permute.xlu0 0
      %325 = vperm.xlu0 %324, %v317
      %v326 = vpop.permute.xlu0 %325
      %v328 = vmul.f32 %v310, %v321
      %v329 = vmul.f32 %v311, %v321
      %v330 = vmul.f32 %v312, %v321
      %v331 = vmul.f32 %v313, %v326
      %v332 = vmul.f32 %v314, %v326
      %v333 = vmul.f32 %v315, %v326
      %v334 = vld [vmem:[%s3] sm:$0xff]
      %v335 = vld [vmem:[%s3 + $0x8] sm:$0xff]
      %337 = vset.pattern.permute.xlu0 0
      %338 = vperm.xlu0 %337, %v334
      %v339 = vpop.permute.xlu0 %338
      %342 = vset.pattern.permute.xlu0 0
      %343 = vperm.xlu0 %342, %v335
      %v344 = vpop.permute.xlu0 %343
      %v346 = vadd.f32 %v328, %v339
      %v347 = vadd.f32 %v329, %v339
      %v348 = vadd.f32 %v330, %v339
      %v349 = vadd.f32 %v331, %v344
      %v350 = vadd.f32 %v332, %v344
      %v351 = vadd.f32 %v333, %v344
      %v352 = vmax.f32 %v346, 0.0
      %v353 = vmax.f32 %v347, 0.0
      %v354 = vmax.f32 %v348, 0.0
      %v355 = vmax.f32 %v349, 0.0
      %v356 = vmax.f32 %v350, 0.0
      %v357 = vmax.f32 %v351, 0.0
      %v359 = vlaneseq
      %v360 = vshrl.u32 %v359, 7
      %v361 = vsub.s32 0, %v360
      %v362 = vrot.slane %v305, %v361
      %v363 = vlaneseq
      %v364 = vshrl.u32 %v363, 7
      %v365 = vsub.s32 1, %v364
      %v366 = vrot.slane %v305, %v365
      %v367 = vlaneseq
      %v368 = vshrl.u32 %v367, 7
      %v369 = vsub.s32 2, %v368
      %v370 = vrot.slane %v305, %v369
      %v374 = vmul.f32 %v352, %v362
      %v375 = vmul.f32 %v353, %v366
      %v376 = vmul.f32 %v354, %v370
      %v377 = vmul.f32 %v355, %v362
      %v378 = vmul.f32 %v356, %v366
      %v379 = vmul.f32 %v357, %v370
      %380 = vrot.lane.b32.xlu0 %v374, 19
      %v381 = vpop.permute.xlu0 %380
      %382 = vrot.lane.b32.xlu0 %v377, 19
      %v383 = vpop.permute.xlu0 %382
      %384 = vrot.lane.b32.xlu0 %v375, 19
      %v385 = vpop.permute.xlu0 %384
      %386 = vrot.lane.b32.xlu0 %v378, 19
      %v387 = vpop.permute.xlu0 %386
      %388 = vrot.lane.b32.xlu0 %v376, 19
      %v389 = vpop.permute.xlu0 %388
      %390 = vrot.lane.b32.xlu0 %v379, 19
      %v391 = vpop.permute.xlu0 %390
      %v392 = vlaneseq
      %v393 = vand.u32 %v392, 127
      %vm394 = vcmp.lt.s32.totalorder %v393, 19
      %v395 = vsel %vm394, %v385, %v389
      %v396 = vsel %vm394, %v387, %v391
      %v397 = vsel %vm394, %v381, %v385
      %v398 = vsel %vm394, %v383, %v387
      %v399 = vsel %vm394, %v389, %v381
      %v400 = vsel %vm394, %v391, %v383
      %v401 = vld [vmem:[%s1] sm:$0xf]
      %v402 = vld [vmem:[%s1 + $0x4] sm:$0xf]
      %v403 = vpack.c.bf16 %v400, %v399
      %v404 = vpack.c.bf16 %v398, %v397
      %v405 = vpack.c.bf16 %v396, %v395
      %406 = vrot.lane.b32.xlu0 %v374, 18
      %v407 = vpop.permute.xlu0 %406
      %408 = vrot.lane.b32.xlu0 %v377, 18
      %v409 = vpop.permute.xlu0 %408
      %410 = vrot.lane.b32.xlu0 %v375, 18
      %v411 = vpop.permute.xlu0 %410
      %412 = vrot.lane.b32.xlu0 %v378, 18
      %v413 = vpop.permute.xlu0 %412
      %414 = vrot.lane.b32.xlu0 %v376, 18
      %v415 = vpop.permute.xlu0 %414
      %416 = vrot.lane.b32.xlu0 %v379, 18
      %v417 = vpop.permute.xlu0 %416
      %vm418 = vcmp.lt.s32.totalorder %v393, 18
      %v419 = vsel %vm418, %v411, %v415
      %v420 = vsel %vm418, %v413, %v417
      %v421 = vsel %vm418, %v407, %v411
      %v422 = vsel %vm418, %v409, %v413
      %v423 = vsel %vm418, %v415, %v407
      %v424 = vsel %vm418, %v417, %v409
      %s425 = scalar_lea.vmem %s1, 8
      %v426 = vld [vmem:[%s425] sm:$0xf]
      %v427 = vld [vmem:[%s425 + $0x4] sm:$0xf]
      %v428 = vpack.c.bf16 %v424, %v423
      %v429 = vpack.c.bf16 %v422, %v421
      %v430 = vpack.c.bf16 %v420, %v419
      %v433 = vunpack.c.l.b16 %v426
      %v434 = vunpack.c.l.b16 %v427
      %v435 = vpack.c.b16 %v434, %v433
      %vm436 = vcmask 130048
      %v438 = vsel %vm436, %v435, 0
      %440 = vmatprep.subr.bf16.mxu0 %v429
      %441 = vmatpush1.bf16.msra.mxu0 %v428
      %442 = vmatprep.subr.bf16.mxu0 0
      %443 = vmatpush1.bf16.msra.mxu0 0
      %444 = vmatprep.subr.bf16.mxu0 0
      %445 = vmatpush1.bf16.msra.mxu0 0
      %446 = vmatprep.subr.bf16.mxu0 0
      %447 = vmatpush1.bf16.msra.mxu0 0
      %448 = vmatprep.subr.bf16.mxu0 0
      %449 = vmatpush1.bf16.msra.mxu0 0
      %450 = vmatprep.subr.bf16.mxu0 0
      %451 = vmatpush1.bf16.msra.mxu0 0
      %452 = vmatprep.subr.bf16.mxu0 0
      %453 = vmatpush1.bf16.msra.mxu0 0
      %454 = vmatprep.subr.bf16.mxu0 0
      %455 = vmatpush1.bf16.msra.mxu0 0
      %456 = vmatprep.subr.bf16.mxu0 0
      %457 = vmatpush1.bf16.msra.mxu0 0
      %458 = vmatprep.subr.bf16.mxu0 0
      %459 = vmatpush1.bf16.msra.mxu0 0
      %460 = vmatprep.subr.bf16.mxu0 0
      %461 = vmatpush1.bf16.msra.mxu0 0
      %462 = vmatprep.subr.bf16.mxu0 0
      %463 = vmatpush1.bf16.msra.mxu0 0
      %464 = vmatprep.subr.bf16.mxu0 0
      %465 = vmatpush1.bf16.msra.mxu0 0
      %466 = vmatprep.subr.bf16.mxu0 0
      %467 = vmatpush1.bf16.msra.mxu0 0
      %468 = vmatprep.subr.bf16.mxu0 0
      %469 = vmatpush1.bf16.msra.mxu0 0
      %470 = vmatprep.subr.bf16.mxu0 0
      %471 = vmatpush1.bf16.msra.mxu0 0
      %472 = vmatprep.mubr.bf16.mxu0 0
      %473 = vmatmul.mubr.bf16.gmra.mrb[0].mxu0 %v438
      %v474 = vpop.f32.mrb[0].mxu0
      %v475 = vadd.f32 0.0, %v474
      %v476 = vpop.f32.mrb[0].mxu0
      %v477 = vadd.f32 0.0, %v476
      %v478 = vpop.f32.mrb[0].mxu0
      %v479 = vadd.f32 0.0, %v478
      %v480 = vpop.f32.mrb[0].mxu0
      %v481 = vadd.f32 0.0, %v480
      %482 = vdwg.mxu0
      %483 = vmatprep.subr.bf16.mxu0 0
      %484 = vmatpush1.bf16.msra.mxu0 %v430
      %485 = vmatprep.subr.bf16.mxu0 0
      %486 = vmatpush1.bf16.msra.mxu0 0
      %487 = vmatprep.subr.bf16.mxu0 0
      %488 = vmatpush1.bf16.msra.mxu0 0
      %489 = vmatprep.subr.bf16.mxu0 0
      %490 = vmatpush1.bf16.msra.mxu0 0
      %491 = vmatprep.subr.bf16.mxu0 0
      %492 = vmatpush1.bf16.msra.mxu0 0
      %493 = vmatprep.subr.bf16.mxu0 0
      %494 = vmatpush1.bf16.msra.mxu0 0
      %495 = vmatprep.subr.bf16.mxu0 0
      %496 = vmatpush1.bf16.msra.mxu0 0
      %497 = vmatprep.subr.bf16.mxu0 0
      %498 = vmatpush1.bf16.msra.mxu0 0
      %499 = vmatprep.subr.bf16.mxu0 0
      %500 = vmatpush1.bf16.msra.mxu0 0
      %501 = vmatprep.subr.bf16.mxu0 0
      %502 = vmatpush1.bf16.msra.mxu0 0
      %503 = vmatprep.subr.bf16.mxu0 0
      %504 = vmatpush1.bf16.msra.mxu0 0
      %505 = vmatprep.subr.bf16.mxu0 0
      %506 = vmatpush1.bf16.msra.mxu0 0
      %507 = vmatprep.subr.bf16.mxu0 0
      %508 = vmatpush1.bf16.msra.mxu0 0
      %509 = vmatprep.subr.bf16.mxu0 0
      %510 = vmatpush1.bf16.msra.mxu0 0
      %511 = vmatprep.subr.bf16.mxu0 0
      %512 = vmatpush1.bf16.msra.mxu0 0
      %513 = vmatprep.subr.bf16.mxu0 0
      %514 = vmatpush1.bf16.msra.mxu0 0
      %515 = vmatprep.mubr.bf16.mxu0 0
      %516 = vmatmul.mubr.bf16.gmra.mrb[0].mxu0 %v438
      %v517 = vpop.f32.mrb[0].mxu0
      %v518 = vadd.f32 0.0, %v517
      %v519 = vpop.f32.mrb[0].mxu0
      %v520 = vpop.f32.mrb[0].mxu0
      %v521 = vadd.f32 0.0, %v520
      %v522 = vpop.f32.mrb[0].mxu0
      %523 = vdwg.mxu0
      %v526 = vunpack.c.l.b16 %v401
      %v527 = vunpack.c.l.b16 %v402
      %v528 = vpack.c.b16 %v527, %v526
      %v530 = vsel %vm436, %v528, 0
      %532 = vmatprep.subr.bf16.mxu0 %v404
      %533 = vmatpush1.bf16.msra.mxu0 %v403
      %534 = vmatprep.subr.bf16.mxu0 0
      %535 = vmatpush1.bf16.msra.mxu0 0
      %536 = vmatprep.subr.bf16.mxu0 0
      %537 = vmatpush1.bf16.msra.mxu0 0
      %538 = vmatprep.subr.bf16.mxu0 0
      %539 = vmatpush1.bf16.msra.mxu0 0
      %540 = vmatprep.subr.bf16.mxu0 0
      %541 = vmatpush1.bf16.msra.mxu0 0
      %542 = vmatprep.subr.bf16.mxu0 0
      %543 = vmatpush1.bf16.msra.mxu0 0
      %544 = vmatprep.subr.bf16.mxu0 0
      %545 = vmatpush1.bf16.msra.mxu0 0
      %546 = vmatprep.subr.bf16.mxu0 0
      %547 = vmatpush1.bf16.msra.mxu0 0
      %548 = vmatprep.subr.bf16.mxu0 0
      %549 = vmatpush1.bf16.msra.mxu0 0
      %550 = vmatprep.subr.bf16.mxu0 0
      %551 = vmatpush1.bf16.msra.mxu0 0
      %552 = vmatprep.subr.bf16.mxu0 0
      %553 = vmatpush1.bf16.msra.mxu0 0
      %554 = vmatprep.subr.bf16.mxu0 0
      %555 = vmatpush1.bf16.msra.mxu0 0
      %556 = vmatprep.subr.bf16.mxu0 0
      %557 = vmatpush1.bf16.msra.mxu0 0
      %558 = vmatprep.subr.bf16.mxu0 0
      %559 = vmatpush1.bf16.msra.mxu0 0
      %560 = vmatprep.subr.bf16.mxu0 0
      %561 = vmatpush1.bf16.msra.mxu0 0
      %562 = vmatprep.subr.bf16.mxu0 0
      %563 = vmatpush1.bf16.msra.mxu0 0
      %564 = vmatprep.mubr.bf16.mxu0 0
      %565 = vmatmul.mubr.bf16.gmra.mrb[0].mxu0 %v530
      %v566 = vpop.f32.mrb[0].mxu0
      %v567 = vadd.f32 %v475, %v566
      %v568 = vpop.f32.mrb[0].mxu0
      %v569 = vadd.f32 %v477, %v568
      %v570 = vpop.f32.mrb[0].mxu0
      %v571 = vadd.f32 %v479, %v570
      %v572 = vpop.f32.mrb[0].mxu0
      %v573 = vadd.f32 %v481, %v572
      %574 = vdwg.mxu0
      %575 = vmatprep.subr.bf16.mxu0 0
      %576 = vmatpush1.bf16.msra.mxu0 %v405
      %577 = vmatprep.subr.bf16.mxu0 0
      %578 = vmatpush1.bf16.msra.mxu0 0
      %579 = vmatprep.subr.bf16.mxu0 0
      %580 = vmatpush1.bf16.msra.mxu0 0
      %581 = vmatprep.subr.bf16.mxu0 0
      %582 = vmatpush1.bf16.msra.mxu0 0
      %583 = vmatprep.subr.bf16.mxu0 0
      %584 = vmatpush1.bf16.msra.mxu0 0
      %585 = vmatprep.subr.bf16.mxu0 0
      %586 = vmatpush1.bf16.msra.mxu0 0
      %587 = vmatprep.subr.bf16.mxu0 0
      %588 = vmatpush1.bf16.msra.mxu0 0
      %589 = vmatprep.subr.bf16.mxu0 0
      %590 = vmatpush1.bf16.msra.mxu0 0
      %591 = vmatprep.subr.bf16.mxu0 0
      %592 = vmatpush1.bf16.msra.mxu0 0
      %593 = vmatprep.subr.bf16.mxu0 0
      %594 = vmatpush1.bf16.msra.mxu0 0
      %595 = vmatprep.subr.bf16.mxu0 0
      %596 = vmatpush1.bf16.msra.mxu0 0
      %597 = vmatprep.subr.bf16.mxu0 0
      %598 = vmatpush1.bf16.msra.mxu0 0
      %599 = vmatprep.subr.bf16.mxu0 0
      %600 = vmatpush1.bf16.msra.mxu0 0
      %601 = vmatprep.subr.bf16.mxu0 0
      %602 = vmatpush1.bf16.msra.mxu0 0
      %603 = vmatprep.subr.bf16.mxu0 0
      %604 = vmatpush1.bf16.msra.mxu0 0
      %605 = vmatprep.subr.bf16.mxu0 0
      %606 = vmatpush1.bf16.msra.mxu0 0
      %607 = vmatprep.mubr.bf16.mxu0 0
      %608 = vmatmul.mubr.bf16.gmra.mrb[0].mxu0 %v530
      %v609 = vpop.f32.mrb[0].mxu0
      %v610 = vadd.f32 %v518, %v609
      %v611 = vpop.f32.mrb[0].mxu0
      %v612 = vpop.f32.mrb[0].mxu0
      %v613 = vadd.f32 %v521, %v612
      %v614 = vpop.f32.mrb[0].mxu0
      %615 = vdwg.mxu0
      %616 = vrot.lane.b32.xlu0 %v374, 17
      %v617 = vpop.permute.xlu0 %616
      %618 = vrot.lane.b32.xlu0 %v377, 17
      %v619 = vpop.permute.xlu0 %618
      %620 = vrot.lane.b32.xlu0 %v375, 17
      %v621 = vpop.permute.xlu0 %620
      %622 = vrot.lane.b32.xlu0 %v378, 17
      %v623 = vpop.permute.xlu0 %622
      %624 = vrot.lane.b32.xlu0 %v376, 17
      %v625 = vpop.permute.xlu0 %624
      %626 = vrot.lane.b32.xlu0 %v379, 17
      %v627 = vpop.permute.xlu0 %626
      %vm628 = vcmp.lt.s32.totalorder %v393, 17
      %v629 = vsel %vm628, %v621, %v625
      %v630 = vsel %vm628, %v623, %v627
      %v631 = vsel %vm628, %v617, %v621
      %v632 = vsel %vm628, %v619, %v623
      %v633 = vsel %vm628, %v625, %v617
      %v634 = vsel %vm628, %v627, %v619
      %s635 = scalar_lea.vmem %s1, 16
      %v636 = vld [vmem:[%s635] sm:$0xf]
      %v637 = vld [vmem:[%s635 + $0x4] sm:$0xf]
      %v638 = vpack.c.bf16 %v634, %v633
      %v639 = vpack.c.bf16 %v632, %v631
      %v640 = vpack.c.bf16 %v630, %v629
      %v643 = vunpack.c.l.b16 %v636
      %v644 = vunpack.c.l.b16 %v637
      %v645 = vpack.c.b16 %v644, %v643
      %v647 = vsel %vm436, %v645, 0
      %649 = vmatprep.subr.bf16.mxu0 %v639
      %650 = vmatpush1.bf16.msra.mxu0 %v638
      %651 = vmatprep.subr.bf16.mxu0 0
      %652 = vmatpush1.bf16.msra.mxu0 0
      %653 = vmatprep.subr.bf16.mxu0 0
      %654 = vmatpush1.bf16.msra.mxu0 0
      %655 = vmatprep.subr.bf16.mxu0 0
      %656 = vmatpush1.bf16.msra.mxu0 0
      %657 = vmatprep.subr.bf16.mxu0 0
      %658 = vmatpush1.bf16.msra.mxu0 0
      %659 = vmatprep.subr.bf16.mxu0 0
      %660 = vmatpush1.bf16.msra.mxu0 0
      %661 = vmatprep.subr.bf16.mxu0 0
      %662 = vmatpush1.bf16.msra.mxu0 0
      %663 = vmatprep.subr.bf16.mxu0 0
      %664 = vmatpush1.bf16.msra.mxu0 0
      %665 = vmatprep.subr.bf16.mxu0 0
      %666 = vmatpush1.bf16.msra.mxu0 0
      %667 = vmatprep.subr.bf16.mxu0 0
      %668 = vmatpush1.bf16.msra.mxu0 0
      %669 = vmatprep.subr.bf16.mxu0 0
      %670 = vmatpush1.bf16.msra.mxu0 0
      %671 = vmatprep.subr.bf16.mxu0 0
      %672 = vmatpush1.bf16.msra.mxu0 0
      %673 = vmatprep.subr.bf16.mxu0 0
      %674 = vmatpush1.bf16.msra.mxu0 0
      %675 = vmatprep.subr.bf16.mxu0 0
      %676 = vmatpush1.bf16.msra.mxu0 0
      %677 = vmatprep.subr.bf16.mxu0 0
      %678 = vmatpush1.bf16.msra.mxu0 0
      %679 = vmatprep.subr.bf16.mxu0 0
      %680 = vmatpush1.bf16.msra.mxu0 0
      %681 = vmatprep.mubr.bf16.mxu0 0
      %682 = vmatmul.mubr.bf16.gmra.mrb[0].mxu0 %v647
      %v683 = vpop.f32.mrb[0].mxu0
      %v684 = vadd.f32 0.0, %v683
      %v685 = vpop.f32.mrb[0].mxu0
      %v686 = vadd.f32 0.0, %v685
      %v687 = vpop.f32.mrb[0].mxu0
      %v688 = vadd.f32 0.0, %v687
      %v689 = vpop.f32.mrb[0].mxu0
      %v690 = vadd.f32 0.0, %v689
      %691 = vdwg.mxu0
      %692 = vmatprep.subr.bf16.mxu0 0
      %693 = vmatpush1.bf16.msra.mxu0 %v640
      %694 = vmatprep.subr.bf16.mxu0 0
      %695 = vmatpush1.bf16.msra.mxu0 0
      %696 = vmatprep.subr.bf16.mxu0 0
      %697 = vmatpush1.bf16.msra.mxu0 0
      %698 = vmatprep.subr.bf16.mxu0 0
      %699 = vmatpush1.bf16.msra.mxu0 0
      %700 = vmatprep.subr.bf16.mxu0 0
      %701 = vmatpush1.bf16.msra.mxu0 0
      %702 = vmatprep.subr.bf16.mxu0 0
      %703 = vmatpush1.bf16.msra.mxu0 0
      %704 = vmatprep.subr.bf16.mxu0 0
      %705 = vmatpush1.bf16.msra.mxu0 0
      %706 = vmatprep.subr.bf16.mxu0 0
      %707 = vmatpush1.bf16.msra.mxu0 0
      %708 = vmatprep.subr.bf16.mxu0 0
      %709 = vmatpush1.bf16.msra.mxu0 0
      %710 = vmatprep.subr.bf16.mxu0 0
      %711 = vmatpush1.bf16.msra.mxu0 0
      %712 = vmatprep.subr.bf16.mxu0 0
      %713 = vmatpush1.bf16.msra.mxu0 0
      %714 = vmatprep.subr.bf16.mxu0 0
      %715 = vmatpush1.bf16.msra.mxu0 0
      %716 = vmatprep.subr.bf16.mxu0 0
      %717 = vmatpush1.bf16.msra.mxu0 0
      %718 = vmatprep.subr.bf16.mxu0 0
      %719 = vmatpush1.bf16.msra.mxu0 0
      %720 = vmatprep.subr.bf16.mxu0 0
      %721 = vmatpush1.bf16.msra.mxu0 0
      %722 = vmatprep.subr.bf16.mxu0 0
      %723 = vmatpush1.bf16.msra.mxu0 0
      %724 = vmatprep.mubr.bf16.mxu0 0
      %725 = vmatmul.mubr.bf16.gmra.mrb[0].mxu0 %v647
      %v726 = vpop.f32.mrb[0].mxu0
      %v727 = vadd.f32 0.0, %v726
      %v728 = vpop.f32.mrb[0].mxu0
      %v729 = vpop.f32.mrb[0].mxu0
      %v730 = vadd.f32 0.0, %v729
      %v731 = vpop.f32.mrb[0].mxu0
      %732 = vdwg.mxu0
      %v733 = vadd.f32 %v567, %v684
      %v734 = vadd.f32 %v569, %v686
      %v735 = vadd.f32 %v610, %v727
      %v736 = vadd.f32 %v571, %v688
      %v737 = vadd.f32 %v573, %v690
      %v738 = vadd.f32 %v613, %v730
      %739 = vrot.lane.b32.xlu0 %v374, 1
      %v740 = vpop.permute.xlu0 %739
      %741 = vrot.lane.b32.xlu0 %v377, 1
      %v742 = vpop.permute.xlu0 %741
      %743 = vrot.lane.b32.xlu0 %v375, 1
      %v744 = vpop.permute.xlu0 %743
      %745 = vrot.lane.b32.xlu0 %v378, 1
      %v746 = vpop.permute.xlu0 %745
      %747 = vrot.lane.b32.xlu0 %v376, 1
      %v748 = vpop.permute.xlu0 %747
      %749 = vrot.lane.b32.xlu0 %v379, 1
      %v750 = vpop.permute.xlu0 %749
      %vm751 = vcmp.lt.s32.totalorder %v393, 1
      %v752 = vsel %vm751, %v744, %v748
      %v753 = vsel %vm751, %v746, %v750
      %v754 = vsel %vm751, %v740, %v744
      %v755 = vsel %vm751, %v742, %v746
      %v756 = vsel %vm751, %v748, %v740
      %v757 = vsel %vm751, %v750, %v742
      %s758 = scalar_lea.vmem %s1, 24
      %v759 = vld [vmem:[%s758] sm:$0xf]
      %v760 = vld [vmem:[%s758 + $0x4] sm:$0xf]
      %v761 = vpack.c.bf16 %v757, %v756
      %v762 = vpack.c.bf16 %v755, %v754
      %v763 = vpack.c.bf16 %v753, %v752
      %v766 = vunpack.c.l.b16 %v759
      %v767 = vunpack.c.l.b16 %v760
      %v768 = vpack.c.b16 %v767, %v766
      %v770 = vsel %vm436, %v768, 0
      %772 = vmatprep.subr.bf16.mxu0 %v762
      %773 = vmatpush1.bf16.msra.mxu0 %v761
      %774 = vmatprep.subr.bf16.mxu0 0
      %775 = vmatpush1.bf16.msra.mxu0 0
      %776 = vmatprep.subr.bf16.mxu0 0
      %777 = vmatpush1.bf16.msra.mxu0 0
      %778 = vmatprep.subr.bf16.mxu0 0
      %779 = vmatpush1.bf16.msra.mxu0 0
      %780 = vmatprep.subr.bf16.mxu0 0
      %781 = vmatpush1.bf16.msra.mxu0 0
      %782 = vmatprep.subr.bf16.mxu0 0
      %783 = vmatpush1.bf16.msra.mxu0 0
      %784 = vmatprep.subr.bf16.mxu0 0
      %785 = vmatpush1.bf16.msra.mxu0 0
      %786 = vmatprep.subr.bf16.mxu0 0
      %787 = vmatpush1.bf16.msra.mxu0 0
      %788 = vmatprep.subr.bf16.mxu0 0
      %789 = vmatpush1.bf16.msra.mxu0 0
      %790 = vmatprep.subr.bf16.mxu0 0
      %791 = vmatpush1.bf16.msra.mxu0 0
      %792 = vmatprep.subr.bf16.mxu0 0
      %793 = vmatpush1.bf16.msra.mxu0 0
      %794 = vmatprep.subr.bf16.mxu0 0
      %795 = vmatpush1.bf16.msra.mxu0 0
      %796 = vmatprep.subr.bf16.mxu0 0
      %797 = vmatpush1.bf16.msra.mxu0 0
      %798 = vmatprep.subr.bf16.mxu0 0
      %799 = vmatpush1.bf16.msra.mxu0 0
      %800 = vmatprep.subr.bf16.mxu0 0
      %801 = vmatpush1.bf16.msra.mxu0 0
      %802 = vmatprep.subr.bf16.mxu0 0
      %803 = vmatpush1.bf16.msra.mxu0 0
      %804 = vmatprep.mubr.bf16.mxu0 0
      %805 = vmatmul.mubr.bf16.gmra.mrb[0].mxu0 %v770
      %v806 = vpop.f32.mrb[0].mxu0
      %v807 = vadd.f32 0.0, %v806
      %v808 = vpop.f32.mrb[0].mxu0
      %v809 = vadd.f32 0.0, %v808
      %v810 = vpop.f32.mrb[0].mxu0
      %v811 = vadd.f32 0.0, %v810
      %v812 = vpop.f32.mrb[0].mxu0
      %v813 = vadd.f32 0.0, %v812
      %814 = vdwg.mxu0
      %815 = vmatprep.subr.bf16.mxu0 0
      %816 = vmatpush1.bf16.msra.mxu0 %v763
      %817 = vmatprep.subr.bf16.mxu0 0
      %818 = vmatpush1.bf16.msra.mxu0 0
      %819 = vmatprep.subr.bf16.mxu0 0
      %820 = vmatpush1.bf16.msra.mxu0 0
      %821 = vmatprep.subr.bf16.mxu0 0
      %822 = vmatpush1.bf16.msra.mxu0 0
      %823 = vmatprep.subr.bf16.mxu0 0
      %824 = vmatpush1.bf16.msra.mxu0 0
      %825 = vmatprep.subr.bf16.mxu0 0
      %826 = vmatpush1.bf16.msra.mxu0 0
      %827 = vmatprep.subr.bf16.mxu0 0
      %828 = vmatpush1.bf16.msra.mxu0 0
      %829 = vmatprep.subr.bf16.mxu0 0
      %830 = vmatpush1.bf16.msra.mxu0 0
      %831 = vmatprep.subr.bf16.mxu0 0
      %832 = vmatpush1.bf16.msra.mxu0 0
      %833 = vmatprep.subr.bf16.mxu0 0
      %834 = vmatpush1.bf16.msra.mxu0 0
      %835 = vmatprep.subr.bf16.mxu0 0
      %836 = vmatpush1.bf16.msra.mxu0 0
      %837 = vmatprep.subr.bf16.mxu0 0
      %838 = vmatpush1.bf16.msra.mxu0 0
      %839 = vmatprep.subr.bf16.mxu0 0
      %840 = vmatpush1.bf16.msra.mxu0 0
      %841 = vmatprep.subr.bf16.mxu0 0
      %842 = vmatpush1.bf16.msra.mxu0 0
      %843 = vmatprep.subr.bf16.mxu0 0
      %844 = vmatpush1.bf16.msra.mxu0 0
      %845 = vmatprep.subr.bf16.mxu0 0
      %846 = vmatpush1.bf16.msra.mxu0 0
      %847 = vmatprep.mubr.bf16.mxu0 0
      %848 = vmatmul.mubr.bf16.gmra.mrb[0].mxu0 %v770
      %v849 = vpop.f32.mrb[0].mxu0
      %v850 = vadd.f32 0.0, %v849
      %v851 = vpop.f32.mrb[0].mxu0
      %v852 = vpop.f32.mrb[0].mxu0
      %v853 = vadd.f32 0.0, %v852
      %v854 = vpop.f32.mrb[0].mxu0
      %855 = vdwg.mxu0
      %v856 = vadd.f32 %v733, %v807
      %v857 = vadd.f32 %v734, %v809
      %v858 = vadd.f32 %v735, %v850
      %v859 = vadd.f32 %v736, %v811
      %v860 = vadd.f32 %v737, %v813
      %v861 = vadd.f32 %v738, %v853
      %s862 = scalar_lea.vmem %s1, 32
      %v863 = vld [vmem:[%s862] sm:$0xf]
      %v864 = vld [vmem:[%s862 + $0x4] sm:$0xf]
      %v865 = vpack.c.bf16 %v377, %v374
      %v866 = vpack.c.bf16 %v378, %v375
      %v867 = vpack.c.bf16 %v379, %v376
      %v870 = vunpack.c.l.b16 %v863
      %v871 = vunpack.c.l.b16 %v864
      %v872 = vpack.c.b16 %v871, %v870
      %v874 = vsel %vm436, %v872, 0
      %876 = vmatprep.subr.bf16.mxu0 %v866
      %877 = vmatpush1.bf16.msra.mxu0 %v865
      %878 = vmatprep.subr.bf16.mxu0 0
      %879 = vmatpush1.bf16.msra.mxu0 0
      %880 = vmatprep.subr.bf16.mxu0 0
      %881 = vmatpush1.bf16.msra.mxu0 0
      %882 = vmatprep.subr.bf16.mxu0 0
      %883 = vmatpush1.bf16.msra.mxu0 0
      %884 = vmatprep.subr.bf16.mxu0 0
      %885 = vmatpush1.bf16.msra.mxu0 0
      %886 = vmatprep.subr.bf16.mxu0 0
      %887 = vmatpush1.bf16.msra.mxu0 0
      %888 = vmatprep.subr.bf16.mxu0 0
      %889 = vmatpush1.bf16.msra.mxu0 0
      %890 = vmatprep.subr.bf16.mxu0 0
      %891 = vmatpush1.bf16.msra.mxu0 0
      %892 = vmatprep.subr.bf16.mxu0 0
      %893 = vmatpush1.bf16.msra.mxu0 0
      %894 = vmatprep.subr.bf16.mxu0 0
      %895 = vmatpush1.bf16.msra.mxu0 0
      %896 = vmatprep.subr.bf16.mxu0 0
      %897 = vmatpush1.bf16.msra.mxu0 0
      %898 = vmatprep.subr.bf16.mxu0 0
      %899 = vmatpush1.bf16.msra.mxu0 0
      %900 = vmatprep.subr.bf16.mxu0 0
      %901 = vmatpush1.bf16.msra.mxu0 0
      %902 = vmatprep.subr.bf16.mxu0 0
      %903 = vmatpush1.bf16.msra.mxu0 0
      %904 = vmatprep.subr.bf16.mxu0 0
      %905 = vmatpush1.bf16.msra.mxu0 0
      %906 = vmatprep.subr.bf16.mxu0 0
      %907 = vmatpush1.bf16.msra.mxu0 0
      %908 = vmatprep.mubr.bf16.mxu0 0
      %909 = vmatmul.mubr.bf16.gmra.mrb[0].mxu0 %v874
      %v910 = vpop.f32.mrb[0].mxu0
      %v911 = vadd.f32 0.0, %v910
      %v912 = vpop.f32.mrb[0].mxu0
      %v913 = vadd.f32 0.0, %v912
      %v914 = vpop.f32.mrb[0].mxu0
      %v915 = vadd.f32 0.0, %v914
      %v916 = vpop.f32.mrb[0].mxu0
      %v917 = vadd.f32 0.0, %v916
      %918 = vdwg.mxu0
      %919 = vmatprep.subr.bf16.mxu0 0
      %920 = vmatpush1.bf16.msra.mxu0 %v867
      %921 = vmatprep.subr.bf16.mxu0 0
      %922 = vmatpush1.bf16.msra.mxu0 0
      %923 = vmatprep.subr.bf16.mxu0 0
      %924 = vmatpush1.bf16.msra.mxu0 0
      %925 = vmatprep.subr.bf16.mxu0 0
      %926 = vmatpush1.bf16.msra.mxu0 0
      %927 = vmatprep.subr.bf16.mxu0 0
      %928 = vmatpush1.bf16.msra.mxu0 0
      %929 = vmatprep.subr.bf16.mxu0 0
      %930 = vmatpush1.bf16.msra.mxu0 0
      %931 = vmatprep.subr.bf16.mxu0 0
      %932 = vmatpush1.bf16.msra.mxu0 0
      %933 = vmatprep.subr.bf16.mxu0 0
      %934 = vmatpush1.bf16.msra.mxu0 0
      %935 = vmatprep.subr.bf16.mxu0 0
      %936 = vmatpush1.bf16.msra.mxu0 0
      %937 = vmatprep.subr.bf16.mxu0 0
      %938 = vmatpush1.bf16.msra.mxu0 0
      %939 = vmatprep.subr.bf16.mxu0 0
      %940 = vmatpush1.bf16.msra.mxu0 0
      %941 = vmatprep.subr.bf16.mxu0 0
      %942 = vmatpush1.bf16.msra.mxu0 0
      %943 = vmatprep.subr.bf16.mxu0 0
      %944 = vmatpush1.bf16.msra.mxu0 0
      %945 = vmatprep.subr.bf16.mxu0 0
      %946 = vmatpush1.bf16.msra.mxu0 0
      %947 = vmatprep.subr.bf16.mxu0 0
      %948 = vmatpush1.bf16.msra.mxu0 0
      %949 = vmatprep.subr.bf16.mxu0 0
      %950 = vmatpush1.bf16.msra.mxu0 0
      %951 = vmatprep.mubr.bf16.mxu0 0
      %952 = vmatmul.mubr.bf16.gmra.mrb[0].mxu0 %v874
      %v953 = vpop.f32.mrb[0].mxu0
      %v954 = vadd.f32 0.0, %v953
      %v955 = vpop.f32.mrb[0].mxu0
      %v956 = vpop.f32.mrb[0].mxu0
      %v957 = vadd.f32 0.0, %v956
      %v958 = vpop.f32.mrb[0].mxu0
      %959 = vdwg.mxu0
      %v960 = vadd.f32 %v856, %v911
      %v961 = vadd.f32 %v857, %v913
      %v962 = vadd.f32 %v858, %v954
      %v963 = vadd.f32 %v859, %v915
      %v964 = vadd.f32 %v860, %v917
      %v965 = vadd.f32 %v861, %v957
      %966 = vrot.lane.b32.xlu0 %v374, 127
      %v967 = vpop.permute.xlu0 %966
      %968 = vrot.lane.b32.xlu0 %v377, 127
      %v969 = vpop.permute.xlu0 %968
      %970 = vrot.lane.b32.xlu0 %v375, 127
      %v971 = vpop.permute.xlu0 %970
      %972 = vrot.lane.b32.xlu0 %v378, 127
      %v973 = vpop.permute.xlu0 %972
      %974 = vrot.lane.b32.xlu0 %v376, 127
      %v975 = vpop.permute.xlu0 %974
      %976 = vrot.lane.b32.xlu0 %v379, 127
      %v977 = vpop.permute.xlu0 %976
      %vm978 = vcmp.lt.s32.totalorder %v393, 127
      %v979 = vsel %vm978, %v971, %v975
      %v980 = vsel %vm978, %v973, %v977
      %v981 = vsel %vm978, %v967, %v971
      %v982 = vsel %vm978, %v969, %v973
      %v983 = vsel %vm978, %v975, %v967
      %v984 = vsel %vm978, %v977, %v969
      %s985 = scalar_lea.vmem %s1, 40
      %v986 = vld [vmem:[%s985] sm:$0xf]
      %v987 = vld [vmem:[%s985 + $0x4] sm:$0xf]
      %v988 = vpack.c.bf16 %v982, %v981
      %v989 = vpack.c.bf16 %v980, %v979
      %v990 = vpack.c.bf16 %v984, %v983
      %v993 = vunpack.c.l.b16 %v986
      %v994 = vunpack.c.l.b16 %v987
      %v995 = vpack.c.b16 %v994, %v993
      %v997 = vsel %vm436, %v995, 0
      %999 = vmatprep.subr.bf16.mxu0 %v989
      %1000 = vmatpush1.bf16.msra.mxu0 %v988
      %1001 = vmatprep.subr.bf16.mxu0 0
      %1002 = vmatpush1.bf16.msra.mxu0 0
      %1003 = vmatprep.subr.bf16.mxu0 0
      %1004 = vmatpush1.bf16.msra.mxu0 0
      %1005 = vmatprep.subr.bf16.mxu0 0
      %1006 = vmatpush1.bf16.msra.mxu0 0
      %1007 = vmatprep.subr.bf16.mxu0 0
      %1008 = vmatpush1.bf16.msra.mxu0 0
      %1009 = vmatprep.subr.bf16.mxu0 0
      %1010 = vmatpush1.bf16.msra.mxu0 0
      %1011 = vmatprep.subr.bf16.mxu0 0
      %1012 = vmatpush1.bf16.msra.mxu0 0
      %1013 = vmatprep.subr.bf16.mxu0 0
      %1014 = vmatpush1.bf16.msra.mxu0 0
      %1015 = vmatprep.subr.bf16.mxu0 0
      %1016 = vmatpush1.bf16.msra.mxu0 0
      %1017 = vmatprep.subr.bf16.mxu0 0
      %1018 = vmatpush1.bf16.msra.mxu0 0
      %1019 = vmatprep.subr.bf16.mxu0 0
      %1020 = vmatpush1.bf16.msra.mxu0 0
      %1021 = vmatprep.subr.bf16.mxu0 0
      %1022 = vmatpush1.bf16.msra.mxu0 0
      %1023 = vmatprep.subr.bf16.mxu0 0
      %1024 = vmatpush1.bf16.msra.mxu0 0
      %1025 = vmatprep.subr.bf16.mxu0 0
      %1026 = vmatpush1.bf16.msra.mxu0 0
      %1027 = vmatprep.subr.bf16.mxu0 0
      %1028 = vmatpush1.bf16.msra.mxu0 0
      %1029 = vmatprep.subr.bf16.mxu0 0
      %1030 = vmatpush1.bf16.msra.mxu0 0
      %1031 = vmatprep.mubr.bf16.mxu0 0
      %1032 = vmatmul.mubr.bf16.gmra.mrb[0].mxu0 %v997
      %v1033 = vpop.f32.mrb[0].mxu0
      %v1034 = vadd.f32 0.0, %v1033
      %v1035 = vpop.f32.mrb[0].mxu0
      %v1036 = vadd.f32 0.0, %v1035
      %v1037 = vpop.f32.mrb[0].mxu0
      %v1038 = vadd.f32 0.0, %v1037
      %v1039 = vpop.f32.mrb[0].mxu0
      %v1040 = vadd.f32 0.0, %v1039
      %1041 = vdwg.mxu0
      %1042 = vmatprep.subr.bf16.mxu0 0
      %1043 = vmatpush1.bf16.msra.mxu0 %v990
      %1044 = vmatprep.subr.bf16.mxu0 0
      %1045 = vmatpush1.bf16.msra.mxu0 0
      %1046 = vmatprep.subr.bf16.mxu0 0
      %1047 = vmatpush1.bf16.msra.mxu0 0
      %1048 = vmatprep.subr.bf16.mxu0 0
      %1049 = vmatpush1.bf16.msra.mxu0 0
      %1050 = vmatprep.subr.bf16.mxu0 0
      %1051 = vmatpush1.bf16.msra.mxu0 0
      %1052 = vmatprep.subr.bf16.mxu0 0
      %1053 = vmatpush1.bf16.msra.mxu0 0
      %1054 = vmatprep.subr.bf16.mxu0 0
      %1055 = vmatpush1.bf16.msra.mxu0 0
      %1056 = vmatprep.subr.bf16.mxu0 0
      %1057 = vmatpush1.bf16.msra.mxu0 0
      %1058 = vmatprep.subr.bf16.mxu0 0
      %1059 = vmatpush1.bf16.msra.mxu0 0
      %1060 = vmatprep.subr.bf16.mxu0 0
      %1061 = vmatpush1.bf16.msra.mxu0 0
      %1062 = vmatprep.subr.bf16.mxu0 0
      %1063 = vmatpush1.bf16.msra.mxu0 0
      %1064 = vmatprep.subr.bf16.mxu0 0
      %1065 = vmatpush1.bf16.msra.mxu0 0
      %1066 = vmatprep.subr.bf16.mxu0 0
      %1067 = vmatpush1.bf16.msra.mxu0 0
      %1068 = vmatprep.subr.bf16.mxu0 0
      %1069 = vmatpush1.bf16.msra.mxu0 0
      %1070 = vmatprep.subr.bf16.mxu0 0
      %1071 = vmatpush1.bf16.msra.mxu0 0
      %1072 = vmatprep.subr.bf16.mxu0 0
      %1073 = vmatpush1.bf16.msra.mxu0 0
      %1074 = vmatprep.mubr.bf16.mxu0 0
      %1075 = vmatmul.mubr.bf16.gmra.mrb[0].mxu0 %v997
      %v1076 = vpop.f32.mrb[0].mxu0
      %v1077 = vadd.f32 0.0, %v1076
      %v1078 = vpop.f32.mrb[0].mxu0
      %v1079 = vpop.f32.mrb[0].mxu0
      %v1080 = vadd.f32 0.0, %v1079
      %v1081 = vpop.f32.mrb[0].mxu0
      %1082 = vdwg.mxu0
      %v1083 = vadd.f32 %v960, %v1034
      %v1084 = vadd.f32 %v961, %v1036
      %v1085 = vadd.f32 %v962, %v1077
      %v1086 = vadd.f32 %v963, %v1038
      %v1087 = vadd.f32 %v964, %v1040
      %v1088 = vadd.f32 %v965, %v1080
      %1089 = vrot.lane.b32.xlu0 %v374, 111
      %v1090 = vpop.permute.xlu0 %1089
      %1091 = vrot.lane.b32.xlu0 %v377, 111
      %v1092 = vpop.permute.xlu0 %1091
      %1093 = vrot.lane.b32.xlu0 %v375, 111
      %v1094 = vpop.permute.xlu0 %1093
      %1095 = vrot.lane.b32.xlu0 %v378, 111
      %v1096 = vpop.permute.xlu0 %1095
      %1097 = vrot.lane.b32.xlu0 %v376, 111
      %v1098 = vpop.permute.xlu0 %1097
      %1099 = vrot.lane.b32.xlu0 %v379, 111
      %v1100 = vpop.permute.xlu0 %1099
      %vm1101 = vcmp.lt.s32.totalorder %v393, 111
      %v1102 = vsel %vm1101, %v1094, %v1098
      %v1103 = vsel %vm1101, %v1096, %v1100
      %v1104 = vsel %vm1101, %v1090, %v1094
      %v1105 = vsel %vm1101, %v1092, %v1096
      %v1106 = vsel %vm1101, %v1098, %v1090
      %v1107 = vsel %vm1101, %v1100, %v1092
      %s1108 = scalar_lea.vmem %s1, 48
      %v1109 = vld [vmem:[%s1108] sm:$0xf]
      %v1110 = vld [vmem:[%s1108 + $0x4] sm:$0xf]
      %v1111 = vpack.c.bf16 %v1105, %v1104
      %v1112 = vpack.c.bf16 %v1103, %v1102
      %v1113 = vpack.c.bf16 %v1107, %v1106
      %v1116 = vunpack.c.l.b16 %v1109
      %v1117 = vunpack.c.l.b16 %v1110
      %v1118 = vpack.c.b16 %v1117, %v1116
      %v1120 = vsel %vm436, %v1118, 0
      %1122 = vmatprep.subr.bf16.mxu0 %v1112
      %1123 = vmatpush1.bf16.msra.mxu0 %v1111
      %1124 = vmatprep.subr.bf16.mxu0 0
      %1125 = vmatpush1.bf16.msra.mxu0 0
      %1126 = vmatprep.subr.bf16.mxu0 0
      %1127 = vmatpush1.bf16.msra.mxu0 0
      %1128 = vmatprep.subr.bf16.mxu0 0
      %1129 = vmatpush1.bf16.msra.mxu0 0
      %1130 = vmatprep.subr.bf16.mxu0 0
      %1131 = vmatpush1.bf16.msra.mxu0 0
      %1132 = vmatprep.subr.bf16.mxu0 0
      %1133 = vmatpush1.bf16.msra.mxu0 0
      %1134 = vmatprep.subr.bf16.mxu0 0
      %1135 = vmatpush1.bf16.msra.mxu0 0
      %1136 = vmatprep.subr.bf16.mxu0 0
      %1137 = vmatpush1.bf16.msra.mxu0 0
      %1138 = vmatprep.subr.bf16.mxu0 0
      %1139 = vmatpush1.bf16.msra.mxu0 0
      %1140 = vmatprep.subr.bf16.mxu0 0
      %1141 = vmatpush1.bf16.msra.mxu0 0
      %1142 = vmatprep.subr.bf16.mxu0 0
      %1143 = vmatpush1.bf16.msra.mxu0 0
      %1144 = vmatprep.subr.bf16.mxu0 0
      %1145 = vmatpush1.bf16.msra.mxu0 0
      %1146 = vmatprep.subr.bf16.mxu0 0
      %1147 = vmatpush1.bf16.msra.mxu0 0
      %1148 = vmatprep.subr.bf16.mxu0 0
      %1149 = vmatpush1.bf16.msra.mxu0 0
      %1150 = vmatprep.subr.bf16.mxu0 0
      %1151 = vmatpush1.bf16.msra.mxu0 0
      %1152 = vmatprep.subr.bf16.mxu0 0
      %1153 = vmatpush1.bf16.msra.mxu0 0
      %1154 = vmatprep.mubr.bf16.mxu0 0
      %1155 = vmatmul.mubr.bf16.gmra.mrb[0].mxu0 %v1120
      %v1156 = vpop.f32.mrb[0].mxu0
      %v1157 = vadd.f32 0.0, %v1156
      %v1158 = vpop.f32.mrb[0].mxu0
      %v1159 = vadd.f32 0.0, %v1158
      %v1160 = vpop.f32.mrb[0].mxu0
      %v1161 = vadd.f32 0.0, %v1160
      %v1162 = vpop.f32.mrb[0].mxu0
      %v1163 = vadd.f32 0.0, %v1162
      %1164 = vdwg.mxu0
      %1165 = vmatprep.subr.bf16.mxu0 0
      %1166 = vmatpush1.bf16.msra.mxu0 %v1113
      %1167 = vmatprep.subr.bf16.mxu0 0
      %1168 = vmatpush1.bf16.msra.mxu0 0
      %1169 = vmatprep.subr.bf16.mxu0 0
      %1170 = vmatpush1.bf16.msra.mxu0 0
      %1171 = vmatprep.subr.bf16.mxu0 0
      %1172 = vmatpush1.bf16.msra.mxu0 0
      %1173 = vmatprep.subr.bf16.mxu0 0
      %1174 = vmatpush1.bf16.msra.mxu0 0
      %1175 = vmatprep.subr.bf16.mxu0 0
      %1176 = vmatpush1.bf16.msra.mxu0 0
      %1177 = vmatprep.subr.bf16.mxu0 0
      %1178 = vmatpush1.bf16.msra.mxu0 0
      %1179 = vmatprep.subr.bf16.mxu0 0
      %1180 = vmatpush1.bf16.msra.mxu0 0
      %1181 = vmatprep.subr.bf16.mxu0 0
      %1182 = vmatpush1.bf16.msra.mxu0 0
      %1183 = vmatprep.subr.bf16.mxu0 0
      %1184 = vmatpush1.bf16.msra.mxu0 0
      %1185 = vmatprep.subr.bf16.mxu0 0
      %1186 = vmatpush1.bf16.msra.mxu0 0
      %1187 = vmatprep.subr.bf16.mxu0 0
      %1188 = vmatpush1.bf16.msra.mxu0 0
      %1189 = vmatprep.subr.bf16.mxu0 0
      %1190 = vmatpush1.bf16.msra.mxu0 0
      %1191 = vmatprep.subr.bf16.mxu0 0
      %1192 = vmatpush1.bf16.msra.mxu0 0
      %1193 = vmatprep.subr.bf16.mxu0 0
      %1194 = vmatpush1.bf16.msra.mxu0 0
      %1195 = vmatprep.subr.bf16.mxu0 0
      %1196 = vmatpush1.bf16.msra.mxu0 0
      %1197 = vmatprep.mubr.bf16.mxu0 0
      %1198 = vmatmul.mubr.bf16.gmra.mrb[0].mxu0 %v1120
      %v1199 = vpop.f32.mrb[0].mxu0
      %v1200 = vadd.f32 0.0, %v1199
      %v1201 = vpop.f32.mrb[0].mxu0
      %v1202 = vpop.f32.mrb[0].mxu0
      %v1203 = vadd.f32 0.0, %v1202
      %v1204 = vpop.f32.mrb[0].mxu0
      %1205 = vdwg.mxu0
      %v1206 = vadd.f32 %v1083, %v1157
      %v1207 = vadd.f32 %v1084, %v1159
      %v1208 = vadd.f32 %v1085, %v1200
      %v1209 = vadd.f32 %v1086, %v1161
      %v1210 = vadd.f32 %v1087, %v1163
      %v1211 = vadd.f32 %v1088, %v1203
      %1212 = vrot.lane.b32.xlu0 %v374, 110
      %v1213 = vpop.permute.xlu0 %1212
      %1214 = vrot.lane.b32.xlu0 %v377, 110
      %v1215 = vpop.permute.xlu0 %1214
      %1216 = vrot.lane.b32.xlu0 %v375, 110
      %v1217 = vpop.permute.xlu0 %1216
      %1218 = vrot.lane.b32.xlu0 %v378, 110
      %v1219 = vpop.permute.xlu0 %1218
      %1220 = vrot.lane.b32.xlu0 %v376, 110
      %v1221 = vpop.permute.xlu0 %1220
      %1222 = vrot.lane.b32.xlu0 %v379, 110
      %v1223 = vpop.permute.xlu0 %1222
      %vm1224 = vcmp.lt.s32.totalorder %v393, 110
      %v1225 = vsel %vm1224, %v1217, %v1221
      %v1226 = vsel %vm1224, %v1219, %v1223
      %v1227 = vsel %vm1224, %v1213, %v1217
      %v1228 = vsel %vm1224, %v1215, %v1219
      %v1229 = vsel %vm1224, %v1221, %v1213
      %v1230 = vsel %vm1224, %v1223, %v1215
      %s1231 = scalar_lea.vmem %s1, 56
      %v1232 = vld [vmem:[%s1231] sm:$0xf]
      %v1233 = vld [vmem:[%s1231 + $0x4] sm:$0xf]
      %v1234 = vpack.c.bf16 %v1228, %v1227
      %v1235 = vpack.c.bf16 %v1226, %v1225
      %v1236 = vpack.c.bf16 %v1230, %v1229
      %v1239 = vunpack.c.l.b16 %v1232
      %v1240 = vunpack.c.l.b16 %v1233
      %v1241 = vpack.c.b16 %v1240, %v1239
      %v1243 = vsel %vm436, %v1241, 0
      %1245 = vmatprep.subr.bf16.mxu0 %v1235
      %1246 = vmatpush1.bf16.msra.mxu0 %v1234
      %1247 = vmatprep.subr.bf16.mxu0 0
      %1248 = vmatpush1.bf16.msra.mxu0 0
      %1249 = vmatprep.subr.bf16.mxu0 0
      %1250 = vmatpush1.bf16.msra.mxu0 0
      %1251 = vmatprep.subr.bf16.mxu0 0
      %1252 = vmatpush1.bf16.msra.mxu0 0
      %1253 = vmatprep.subr.bf16.mxu0 0
      %1254 = vmatpush1.bf16.msra.mxu0 0
      %1255 = vmatprep.subr.bf16.mxu0 0
      %1256 = vmatpush1.bf16.msra.mxu0 0
      %1257 = vmatprep.subr.bf16.mxu0 0
      %1258 = vmatpush1.bf16.msra.mxu0 0
      %1259 = vmatprep.subr.bf16.mxu0 0
      %1260 = vmatpush1.bf16.msra.mxu0 0
      %1261 = vmatprep.subr.bf16.mxu0 0
      %1262 = vmatpush1.bf16.msra.mxu0 0
      %1263 = vmatprep.subr.bf16.mxu0 0
      %1264 = vmatpush1.bf16.msra.mxu0 0
      %1265 = vmatprep.subr.bf16.mxu0 0
      %1266 = vmatpush1.bf16.msra.mxu0 0
      %1267 = vmatprep.subr.bf16.mxu0 0
      %1268 = vmatpush1.bf16.msra.mxu0 0
      %1269 = vmatprep.subr.bf16.mxu0 0
      %1270 = vmatpush1.bf16.msra.mxu0 0
      %1271 = vmatprep.subr.bf16.mxu0 0
      %1272 = vmatpush1.bf16.msra.mxu0 0
      %1273 = vmatprep.subr.bf16.mxu0 0
      %1274 = vmatpush1.bf16.msra.mxu0 0
      %1275 = vmatprep.subr.bf16.mxu0 0
      %1276 = vmatpush1.bf16.msra.mxu0 0
      %1277 = vmatprep.mubr.bf16.mxu0 0
      %1278 = vmatmul.mubr.bf16.gmra.mrb[0].mxu0 %v1243
      %v1279 = vpop.f32.mrb[0].mxu0
      %v1280 = vadd.f32 0.0, %v1279
      %v1281 = vpop.f32.mrb[0].mxu0
      %v1282 = vadd.f32 0.0, %v1281
      %v1283 = vpop.f32.mrb[0].mxu0
      %v1284 = vadd.f32 0.0, %v1283
      %v1285 = vpop.f32.mrb[0].mxu0
      %v1286 = vadd.f32 0.0, %v1285
      %1287 = vdwg.mxu0
      %1288 = vmatprep.subr.bf16.mxu0 0
      %1289 = vmatpush1.bf16.msra.mxu0 %v1236
      %1290 = vmatprep.subr.bf16.mxu0 0
      %1291 = vmatpush1.bf16.msra.mxu0 0
      %1292 = vmatprep.subr.bf16.mxu0 0
      %1293 = vmatpush1.bf16.msra.mxu0 0
      %1294 = vmatprep.subr.bf16.mxu0 0
      %1295 = vmatpush1.bf16.msra.mxu0 0
      %1296 = vmatprep.subr.bf16.mxu0 0
      %1297 = vmatpush1.bf16.msra.mxu0 0
      %1298 = vmatprep.subr.bf16.mxu0 0
      %1299 = vmatpush1.bf16.msra.mxu0 0
      %1300 = vmatprep.subr.bf16.mxu0 0
      %1301 = vmatpush1.bf16.msra.mxu0 0
      %1302 = vmatprep.subr.bf16.mxu0 0
      %1303 = vmatpush1.bf16.msra.mxu0 0
      %1304 = vmatprep.subr.bf16.mxu0 0
      %1305 = vmatpush1.bf16.msra.mxu0 0
      %1306 = vmatprep.subr.bf16.mxu0 0
      %1307 = vmatpush1.bf16.msra.mxu0 0
      %1308 = vmatprep.subr.bf16.mxu0 0
      %1309 = vmatpush1.bf16.msra.mxu0 0
      %1310 = vmatprep.subr.bf16.mxu0 0
      %1311 = vmatpush1.bf16.msra.mxu0 0
      %1312 = vmatprep.subr.bf16.mxu0 0
      %1313 = vmatpush1.bf16.msra.mxu0 0
      %1314 = vmatprep.subr.bf16.mxu0 0
      %1315 = vmatpush1.bf16.msra.mxu0 0
      %1316 = vmatprep.subr.bf16.mxu0 0
      %1317 = vmatpush1.bf16.msra.mxu0 0
      %1318 = vmatprep.subr.bf16.mxu0 0
      %1319 = vmatpush1.bf16.msra.mxu0 0
      %1320 = vmatprep.mubr.bf16.mxu0 0
      %1321 = vmatmul.mubr.bf16.gmra.mrb[0].mxu0 %v1243
      %v1322 = vpop.f32.mrb[0].mxu0
      %v1323 = vadd.f32 0.0, %v1322
      %v1324 = vpop.f32.mrb[0].mxu0
      %v1325 = vpop.f32.mrb[0].mxu0
      %v1326 = vadd.f32 0.0, %v1325
      %v1327 = vpop.f32.mrb[0].mxu0
      %1328 = vdwg.mxu0
      %v1329 = vadd.f32 %v1206, %v1280
      %v1330 = vadd.f32 %v1207, %v1282
      %v1331 = vadd.f32 %v1208, %v1323
      %v1332 = vadd.f32 %v1209, %v1284
      %v1333 = vadd.f32 %v1210, %v1286
      %v1334 = vadd.f32 %v1211, %v1326
      %1335 = vrot.lane.b32.xlu0 %v374, 109
      %v1336 = vpop.permute.xlu0 %1335
      %1337 = vrot.lane.b32.xlu0 %v377, 109
      %v1338 = vpop.permute.xlu0 %1337
      %1339 = vrot.lane.b32.xlu0 %v375, 109
      %v1340 = vpop.permute.xlu0 %1339
      %1341 = vrot.lane.b32.xlu0 %v378, 109
      %v1342 = vpop.permute.xlu0 %1341
      %1343 = vrot.lane.b32.xlu0 %v376, 109
      %v1344 = vpop.permute.xlu0 %1343
      %1345 = vrot.lane.b32.xlu0 %v379, 109
      %v1346 = vpop.permute.xlu0 %1345
      %vm1347 = vcmp.lt.s32.totalorder %v393, 109
      %v1348 = vsel %vm1347, %v1340, %v1344
      %v1349 = vsel %vm1347, %v1342, %v1346
      %v1350 = vsel %vm1347, %v1336, %v1340
      %v1351 = vsel %vm1347, %v1338, %v1342
      %v1352 = vsel %vm1347, %v1344, %v1336
      %v1353 = vsel %vm1347, %v1346, %v1338
      %s1354 = scalar_lea.vmem %s1, 64
      %v1355 = vld [vmem:[%s1354] sm:$0xf]
      %v1356 = vld [vmem:[%s1354 + $0x4] sm:$0xf]
      %v1357 = vpack.c.bf16 %v1351, %v1350
      %v1358 = vpack.c.bf16 %v1349, %v1348
      %v1359 = vpack.c.bf16 %v1353, %v1352
      %v1362 = vunpack.c.l.b16 %v1355
      %v1363 = vunpack.c.l.b16 %v1356
      %v1364 = vpack.c.b16 %v1363, %v1362
      %v1366 = vsel %vm436, %v1364, 0
      %1368 = vmatprep.subr.bf16.mxu0 %v1358
      %1369 = vmatpush1.bf16.msra.mxu0 %v1357
      %1370 = vmatprep.subr.bf16.mxu0 0
      %1371 = vmatpush1.bf16.msra.mxu0 0
      %1372 = vmatprep.subr.bf16.mxu0 0
      %1373 = vmatpush1.bf16.msra.mxu0 0
      %1374 = vmatprep.subr.bf16.mxu0 0
      %1375 = vmatpush1.bf16.msra.mxu0 0
      %1376 = vmatprep.subr.bf16.mxu0 0
      %1377 = vmatpush1.bf16.msra.mxu0 0
      %1378 = vmatprep.subr.bf16.mxu0 0
      %1379 = vmatpush1.bf16.msra.mxu0 0
      %1380 = vmatprep.subr.bf16.mxu0 0
      %1381 = vmatpush1.bf16.msra.mxu0 0
      %1382 = vmatprep.subr.bf16.mxu0 0
      %1383 = vmatpush1.bf16.msra.mxu0 0
      %1384 = vmatprep.subr.bf16.mxu0 0
      %1385 = vmatpush1.bf16.msra.mxu0 0
      %1386 = vmatprep.subr.bf16.mxu0 0
      %1387 = vmatpush1.bf16.msra.mxu0 0
      %1388 = vmatprep.subr.bf16.mxu0 0
      %1389 = vmatpush1.bf16.msra.mxu0 0
      %1390 = vmatprep.subr.bf16.mxu0 0
      %1391 = vmatpush1.bf16.msra.mxu0 0
      %1392 = vmatprep.subr.bf16.mxu0 0
      %1393 = vmatpush1.bf16.msra.mxu0 0
      %1394 = vmatprep.subr.bf16.mxu0 0
      %1395 = vmatpush1.bf16.msra.mxu0 0
      %1396 = vmatprep.subr.bf16.mxu0 0
      %1397 = vmatpush1.bf16.msra.mxu0 0
      %1398 = vmatprep.subr.bf16.mxu0 0
      %1399 = vmatpush1.bf16.msra.mxu0 0
      %1400 = vmatprep.mubr.bf16.mxu0 0
      %1401 = vmatmul.mubr.bf16.gmra.mrb[0].mxu0 %v1366
      %v1402 = vpop.f32.mrb[0].mxu0
      %v1403 = vadd.f32 0.0, %v1402
      %v1404 = vpop.f32.mrb[0].mxu0
      %v1405 = vadd.f32 0.0, %v1404
      %v1406 = vpop.f32.mrb[0].mxu0
      %v1407 = vadd.f32 0.0, %v1406
      %v1408 = vpop.f32.mrb[0].mxu0
      %v1409 = vadd.f32 0.0, %v1408
      %1410 = vdwg.mxu0
      %1411 = vmatprep.subr.bf16.mxu0 0
      %1412 = vmatpush1.bf16.msra.mxu0 %v1359
      %1413 = vmatprep.subr.bf16.mxu0 0
      %1414 = vmatpush1.bf16.msra.mxu0 0
      %1415 = vmatprep.subr.bf16.mxu0 0
      %1416 = vmatpush1.bf16.msra.mxu0 0
      %1417 = vmatprep.subr.bf16.mxu0 0
      %1418 = vmatpush1.bf16.msra.mxu0 0
      %1419 = vmatprep.subr.bf16.mxu0 0
      %1420 = vmatpush1.bf16.msra.mxu0 0
      %1421 = vmatprep.subr.bf16.mxu0 0
      %1422 = vmatpush1.bf16.msra.mxu0 0
      %1423 = vmatprep.subr.bf16.mxu0 0
      %1424 = vmatpush1.bf16.msra.mxu0 0
      %1425 = vmatprep.subr.bf16.mxu0 0
      %1426 = vmatpush1.bf16.msra.mxu0 0
      %1427 = vmatprep.subr.bf16.mxu0 0
      %1428 = vmatpush1.bf16.msra.mxu0 0
      %1429 = vmatprep.subr.bf16.mxu0 0
      %1430 = vmatpush1.bf16.msra.mxu0 0
      %1431 = vmatprep.subr.bf16.mxu0 0
      %1432 = vmatpush1.bf16.msra.mxu0 0
      %1433 = vmatprep.subr.bf16.mxu0 0
      %1434 = vmatpush1.bf16.msra.mxu0 0
      %1435 = vmatprep.subr.bf16.mxu0 0
      %1436 = vmatpush1.bf16.msra.mxu0 0
      %1437 = vmatprep.subr.bf16.mxu0 0
      %1438 = vmatpush1.bf16.msra.mxu0 0
      %1439 = vmatprep.subr.bf16.mxu0 0
      %1440 = vmatpush1.bf16.msra.mxu0 0
      %1441 = vmatprep.subr.bf16.mxu0 0
      %1442 = vmatpush1.bf16.msra.mxu0 0
      %1443 = vmatprep.mubr.bf16.mxu0 0
      %1444 = vmatmul.mubr.bf16.gmra.mrb[0].mxu0 %v1366
      %v1445 = vpop.f32.mrb[0].mxu0
      %v1446 = vadd.f32 0.0, %v1445
      %v1447 = vpop.f32.mrb[0].mxu0
      %v1448 = vpop.f32.mrb[0].mxu0
      %v1449 = vadd.f32 0.0, %v1448
      %v1450 = vpop.f32.mrb[0].mxu0
      %1451 = vdwg.mxu0
      %v1452 = vadd.f32 %v1329, %v1403
      %v1453 = vadd.f32 %v1330, %v1405
      %v1454 = vadd.f32 %v1331, %v1446
      %v1455 = vadd.f32 %v1332, %v1407
      %v1456 = vadd.f32 %v1333, %v1409
      %v1457 = vadd.f32 %v1334, %v1449
      %v1458 = vmul.f32 %v1452, %v362
      %v1459 = vmul.f32 %v1453, %v366
      %v1460 = vmul.f32 %v1454, %v370
      %v1461 = vmul.f32 %v1455, %v362
      %v1462 = vmul.f32 %v1456, %v366
      %v1463 = vmul.f32 %v1457, %v370
      %v1464 = vpack.c.bf16 %v1455, %v1452
      %v1465 = vpack.c.bf16 %v1456, %v1453
      %v1466 = vpack.c.bf16 %v1457, %v1454
      %v1470 = vunpack.c.l.b16 %v1464
      %v1471 = vunpack.c.l.b16 %v1465
      %v1472 = vunpack.c.l.b16 %v1466
      %v1473 = vunpack.c.h.b16 %v1464
      %v1474 = vunpack.c.h.b16 %v1465
      %v1475 = vunpack.c.h.b16 %v1466
      %v1476 = vpack.c.b16 %v1471, %v1470
      %v1477 = vpack.c.b16 %v1472, %v1472
      %v1478 = vpack.c.b16 %v1474, %v1473
      %v1479 = vpack.c.b16 %v1475, %v1475
      %1484 = vst [vmem:[%s293] sm:$0xff] %v1476
      %1485 = vst [vmem:[%s293 + $0x8] sm:$0xf] %v1477
      %1486 = vst [vmem:[%s293 + $0xc] sm:$0xff] %v1478
      %1487 = vst [vmem:[%s293 + $0x14] sm:$0xf] %v1479
      %v1488 = vadd.f32 %v1458, %v1459
      %v1489 = vadd.f32 %v1488, %v1460
      %1490 = vadd.xlane.f32.xlu0 %v1489
      %v1491 = vpop.xlane.xlu0 %1490
      %v1492 = vadd.f32 %v1461, %v1462
      %v1493 = vadd.f32 %v1492, %v1463
      %1494 = vadd.xlane.f32.xlu0 %v1493
      %v1495 = vpop.xlane.xlu0 %1494
      %vm1496 = vcmask 7168
      %1497 = vst.msk [vmem:[%s298] sm:$0xff] %vm1496, %v1491
      %1498 = vst.msk [vmem:[%s298 + $0x8] sm:$0xff] %vm1496, %v1495
      %v1499 = vmul.f32 %v1458, %v1458
      %v1500 = vmul.f32 %v1459, %v1459
      %v1501 = vmul.f32 %v1460, %v1460
      %v1502 = vmul.f32 %v1461, %v1461
      %v1503 = vmul.f32 %v1462, %v1462
      %v1504 = vmul.f32 %v1463, %v1463
      %v1505 = vadd.f32 %v1499, %v1500
      %v1506 = vadd.f32 %v1505, %v1501
      %1507 = vadd.xlane.f32.xlu0 %v1506
      %v1508 = vpop.xlane.xlu0 %1507
      %v1509 = vadd.f32 %v1502, %v1503
      %v1510 = vadd.f32 %v1509, %v1504
      %1511 = vadd.xlane.f32.xlu0 %v1510
      %v1512 = vpop.xlane.xlu0 %1511
      %1513 = vst.msk [vmem:[%s303] sm:$0xff] %vm1496, %v1508
      %1514 = vst.msk [vmem:[%s303 + $0x8] sm:$0xff] %vm1496, %v1512
      %p1515 = scmp.lt.s32.totalorder %s19, 1
      %s1516 = scalar_select %p1515, %s19, 1
      %s1517 = smul.addr %s1516, 6
      %s1518 = smul.addr %s1517, 4
      %s1519 = scalar_lea.vmem %s5, %s1518
      %p1520 = scmp.lt.s32.totalorder %s19, 1
      %s1521 = scalar_select %p1520, %s19, 1
      %s1522 = smul.addr %s1521, 2
      %s1523 = smul.addr %s1522, 8
      %s1524 = scalar_lea.vmem %s6, %s1523
      %p1525 = scmp.lt.s32.totalorder %s19, 1
      %s1526 = scalar_select %p1525, %s19, 1
      %s1527 = smul.addr %s1526, 2
      %s1528 = smul.addr %s1527, 8
      %s1529 = scalar_lea.vmem %s7, %s1528
      // Predicated region
      $region41: #{res_block_forward.4} parent=39 // pred_check
        %p1530 = pneg %p147
      $region42: #{res_block_forward.4} parent=39 // pred_check_branch
        %1532 = sbr.rel (%p1530) target = $region44
      $region43: #{res_block_forward.4} parent=39 // pred_region
        _
      $region44: #{res_block_forward.4} parent=39 // pred_fallthru
        _
      // Predicated region
      $region45: #{res_block_forward.4} parent=39 // pred_check
        %p1533 = pneg %p173
      $region46: #{res_block_forward.4} parent=39 // pred_check_branch
        %1535 = sbr.rel (%p1533) target = $region48
      $region47: #{res_block_forward.4} parent=39 // pred_region
        _
      $region48: #{res_block_forward.4} parent=39 // pred_fallthru
        _
      // Predicated region
      $region49: #{res_block_forward.4} parent=39 // pred_check
        %p1536 = pneg %p199
      $region50: #{res_block_forward.4} parent=39 // pred_check_branch
        %1538 = sbr.rel (%p1536) target = $region52
      $region51: #{res_block_forward.4} parent=39 // pred_region
        _
      $region52: #{res_block_forward.4} parent=39 // pred_fallthru
        _
    $region40: #{res_block_forward.4} parent=5 // pred_fallthru
      _
    %p1539 = scmp.le.s32.totalorder 2, %s14
    // Predicated region
    $region53: #{res_block_forward.4} parent=5 // pred_check
      %p1540 = pneg %p1539
    $region54: #{res_block_forward.4} parent=5 // pred_check_branch
      %1542 = sbr.rel (%p1540) target = $region56
    $region55: #{res_block_forward.4} parent=5 // pred_region
      %s1543 = ssub.s32 %s14, 2
      // Predicated region
      $region57: #{res_block_forward.4} parent=55 // pred_check
        %p1544 = pneg %p153
      $region58: #{res_block_forward.4} parent=55 // pred_check_branch
        %1546 = sbr.rel (%p1544) target = $region60
      $region59: #{res_block_forward.4} parent=55 // pred_region
        %p1547 = scmp.lt.s32.totalorder %s20, 1
        %s1548 = scalar_select %p1547, %s20, 1
        %s1549 = smul.addr %s1548, 6
        %s1550 = smul.addr %s1549, 4
        %s1551 = scalar_lea.vmem %s5, %s1550
      $region60: #{res_block_forward.4} parent=55 // pred_fallthru
        _
      // Predicated region
      $region61: #{res_block_forward.4} parent=55 // pred_check
        %p1552 = pneg %p179
      $region62: #{res_block_forward.4} parent=55 // pred_check_branch
        %1554 = sbr.rel (%p1552) target = $region64
      $region63: #{res_block_forward.4} parent=55 // pred_region
        %p1555 = scmp.lt.s32.totalorder %s20, 1
        %s1556 = scalar_select %p1555, %s20, 1
        %s1557 = smul.addr %s1556, 2
        %s1558 = smul.addr %s1557, 8
        %s1559 = scalar_lea.vmem %s6, %s1558
      $region64: #{res_block_forward.4} parent=55 // pred_fallthru
        _
      // Predicated region
      $region65: #{res_block_forward.4} parent=55 // pred_check
        %p1560 = pneg %p205
      $region66: #{res_block_forward.4} parent=55 // pred_check_branch
        %1562 = sbr.rel (%p1560) target = $region68
      $region67: #{res_block_forward.4} parent=55 // pred_region
        %p1563 = scmp.lt.s32.totalorder %s20, 1
        %s1564 = scalar_select %p1563, %s20, 1
        %s1565 = smul.addr %s1564, 2
        %s1566 = smul.addr %s1565, 8
        %s1567 = scalar_lea.vmem %s7, %s1566
      $region68: #{res_block_forward.4} parent=55 // pred_fallthru
        _
    $region56: #{res_block_forward.4} parent=5 // pred_fallthru
      _
  $region6: #{res_block_forward.4} parent=0 // loop_footer
    %s18 = sadd.s32 1, %s14
  $region7: #{res_block_forward.4} parent=0 // loop_footer_branch
    %13 = sbr.rel target = $region3
  $region8: #{res_block_forward.4} parent=0 // loop_exit
    _

</llo_original>
